<compile_context>
chip_gen: v7x
topology: tpu7x:2x2x1
jax: 0.10.0
libtpu: 0.0.40
codegen_flags: <defaults>
</compile_context>

<pallas_src>
import math
from functools import partial

import numpy as np
import jax
import jax.numpy as jnp
from jax.experimental import pallas as pl
from jax.experimental.pallas import tpu as pltpu

# ---------------- configuration (small, consistent with the module) ----------
DIM = 32                   # C
INPUT_RES = (8, 8)         # (H, W)
WINDOW_SIZE = 4
SHIFT_SIZE = 2             # shifted-window branch (exercises attn_mask)
NUM_HEADS = 4
HEAD_DIM = DIM // NUM_HEADS
MLP_RATIO = 4.0
HIDDEN = int(DIM * MLP_RATIO)
BATCH = 2
EPS = 1e-5
NEG_BIG = -1e9             # cross-window mask value (exp underflows to 0)


# ---------------- numpy helpers (buffers built at init time) -----------------
def get_relative_position_index(win_h, win_w):
    coords = np.stack(np.meshgrid(np.arange(win_h), np.arange(win_w), indexing="ij"))
    coords_flatten = coords.reshape(2, -1)
    rel = coords_flatten[:, :, None] - coords_flatten[:, None, :]
    rel = rel.transpose(1, 2, 0).copy()
    rel[:, :, 0] += win_h - 1
    rel[:, :, 1] += win_w - 1
    rel[:, :, 0] *= 2 * win_w - 1
    return rel.sum(-1)  # (N, N) int


def window_partition_np(x, ws):
    B, H, W, C = x.shape
    x = x.reshape(B, H // ws, ws, W // ws, ws, C)
    return x.transpose(0, 1, 3, 2, 4, 5).reshape(-1, ws, ws, C)


def build_attn_mask(H, W, ws, ss):
    """(nW, N, N) mask of 0 / -100 for shifted windows."""
    img_mask = np.zeros((1, H, W, 1), dtype=np.float32)
    cnt = 0
    for h in (slice(0, -ws), slice(-ws, -ss), slice(-ss, None)):
        for w in (slice(0, -ws), slice(-ws, -ss), slice(-ss, None)):
            img_mask[:, h, w, :] = cnt
            cnt += 1
    mask_windows = window_partition_np(img_mask, ws).reshape(-1, ws * ws)
    attn_mask = mask_windows[:, None, :] - mask_windows[:, :, None]
    attn_mask = np.where(attn_mask != 0, -100.0, 0.0).astype(np.float32)
    return attn_mask


# ---------------- JAX glue: window partition / reverse -----------------------
def window_partition(x, ws):
    B, H, W, C = x.shape
    x = x.reshape(B, H // ws, ws, W // ws, ws, C)
    return x.transpose(0, 1, 3, 2, 4, 5).reshape(-1, ws * ws, C)


def window_reverse(windows, ws, H, W):
    B = windows.shape[0] // (H * W // ws // ws)
    x = windows.reshape(B, H // ws, W // ws, ws, ws, -1)
    return x.transpose(0, 1, 3, 2, 4, 5).reshape(B, H, W, -1)


# ---------------- Pallas kernel: fully fused Swin block (one image / step) ---
def _swin_block_kernel(x_ref, bias_ref, wqkv_ref, bqkv_ref, wp_ref, bp_ref,
                       g1_ref, b1_ref, g2_ref, b2_ref, w1_ref, bb1_ref,
                       w2_ref, bb2_ref, o_ref, *, C, nH, D, scale):
    x = x_ref[0]                                       # (T, C) tokens (windowed order)
    # ---- LayerNorm1 (per-token, commutes with roll / window partition) ------
    mu = jnp.mean(x, axis=-1, keepdims=True)
    xc = x - mu
    var = jnp.mean(xc * xc, axis=-1, keepdims=True)
    xn = xc * jax.lax.rsqrt(var + EPS) * g1_ref[0] + b1_ref[0]
    # ---- QKV projection: one matmul for ALL windows of the image ------------
    qkv = jnp.dot(xn, wqkv_ref[...], preferred_element_type=jnp.float32) + bqkv_ref[0]
    # ---- multi-head attention over all windows at once ----------------------
    # bias_ref[h] is (T, T): rel-pos bias + shift mask on the per-window
    # diagonal blocks, -1e9 everywhere else, so one (T,T) score matrix per
    # head replaces the per-window loop.  The output projection is folded into
    # the head loop (sum_h o_h @ Wp[h*D:(h+1)*D, :]) -> no lane concatenate.
    proj = None
    for h in range(nH):                                # static, nH = 4
        qh = qkv[:, h * D:(h + 1) * D] * scale
        kh = qkv[:, C + h * D:C + (h + 1) * D]
        vh = qkv[:, 2 * C + h * D:2 * C + (h + 1) * D]
        s = jax.lax.dot_general(qh, kh, (((1,), (1,)), ((), ())),
                                preferred_element_type=jnp.float32)    # (T, T)
        s = s + bias_ref[h]
        m = jnp.max(s, axis=-1, keepdims=True)
        p = jnp.exp(s - m)
        denom = jnp.sum(p, axis=-1, keepdims=True)
        p = p * pl.reciprocal(denom, approx=True)      # divide on the EUP slot
        oh = jnp.dot(p, vh, preferred_element_type=jnp.float32)        # (T, D)
        ph = jnp.dot(oh, wp_ref[h * D:(h + 1) * D, :],
                     preferred_element_type=jnp.float32)               # (T, C)
        proj = ph if proj is None else proj + ph
    x1 = x + proj + bp_ref[0]                          # proj bias + first residual
    # ---- LayerNorm2 + MLP (exact GELU) + second residual ---------------------
    mu2 = jnp.mean(x1, axis=-1, keepdims=True)
    xc2 = x1 - mu2
    var2 = jnp.mean(xc2 * xc2, axis=-1, keepdims=True)
    xn2 = xc2 * jax.lax.rsqrt(var2 + EPS) * g2_ref[0] + b2_ref[0]
    hdn = jnp.dot(xn2, w1_ref[...], preferred_element_type=jnp.float32) + bb1_ref[0]
    hdn = 0.5 * hdn * (1.0 + jax.lax.erf(hdn * (1.0 / math.sqrt(2.0))))
    y = jnp.dot(hdn, w2_ref[...], preferred_element_type=jnp.float32) + bb2_ref[0]
    o_ref[0] = (x1 + y).astype(o_ref.dtype)


def fused_swin_pallas(xw, bias_big, p):
    """xw: (B, T, C) tokens of each image in windowed (shifted) order."""
    B, T, C = xw.shape
    nH, Hh = NUM_HEADS, HIDDEN
    kern = partial(_swin_block_kernel, C=C, nH=nH, D=HEAD_DIM,
                   scale=HEAD_DIM ** (-0.5))
    return pl.pallas_call(
        kern,
        out_shape=jax.ShapeDtypeStruct((B, T, C), xw.dtype),
        grid=(B,),
        in_specs=[
            pl.BlockSpec((1, T, C), lambda b: (b, 0, 0)),      # x: one image / step
            pl.BlockSpec((nH, T, T), lambda b: (0, 0, 0)),     # bias: resident, DMA once
            pl.BlockSpec((C, 3 * C), lambda b: (0, 0)),        # wqkv
            pl.BlockSpec((1, 3 * C), lambda b: (0, 0)),        # bqkv
            pl.BlockSpec((C, C), lambda b: (0, 0)),            # wproj
            pl.BlockSpec((1, C), lambda b: (0, 0)),            # bproj
            pl.BlockSpec((1, C), lambda b: (0, 0)),            # g1
            pl.BlockSpec((1, C), lambda b: (0, 0)),            # b1
            pl.BlockSpec((1, C), lambda b: (0, 0)),            # g2
            pl.BlockSpec((1, C), lambda b: (0, 0)),            # b2
            pl.BlockSpec((C, Hh), lambda b: (0, 0)),           # w1
            pl.BlockSpec((1, Hh), lambda b: (0, 0)),           # b_fc1
            pl.BlockSpec((Hh, C), lambda b: (0, 0)),           # w2
            pl.BlockSpec((1, C), lambda b: (0, 0)),            # b_fc2
        ],
        out_specs=pl.BlockSpec((1, T, C), lambda b: (b, 0, 0)),
        compiler_params=pltpu.CompilerParams(dimension_semantics=("parallel",)),
    )(xw, bias_big, p["wqkv"], p["bqkv"], p["wproj"], p["bproj"],
      p["g1"], p["b1"], p["g2"], p["b2"], p["w1"], p["bb1"], p["w2"], p["bb2"])


# ---------------- full Swin block forward ------------------------------------
def swin_block_forward(x, params, bias_big):
    B, L, C = x.shape
    H, W = INPUT_RES
    ws, ss = WINDOW_SIZE, SHIFT_SIZE
    nW = (H // ws) * (W // ws)
    N = ws * ws
    # roll + window-partition is a pure token permutation P.  LN1 is fused in
    # the kernel (per-token, commutes with P); every op after the attention
    # (residuals, LN2, MLP) is also per-token, so the whole fused block is
    # computed in windowed order and P^-1 is applied once at the end.
    xv = x.reshape(B, H, W, C)
    if ss > 0:
        xv = jnp.roll(xv, shift=(-ss, -ss), axis=(1, 2))
    xw = window_partition(xv, ws).reshape(B, nW * N, C)       # (B, T, C)
    yw = fused_swin_pallas(xw, bias_big, params)              # (B, T, C)
    yv = window_reverse(yw.reshape(B * nW, N, C), ws, H, W)
    if ss > 0:
        yv = jnp.roll(yv, shift=(ss, ss), axis=(1, 2))
    return yv.reshape(B, L, C)


# ---------------- pure-JAX reference (for correctness check) -----------------
def reference_forward(x, p, bias_all):
    B, L, C = x.shape
    H, W = INPUT_RES
    ws, ss = WINDOW_SIZE, SHIFT_SIZE
    nH, D = NUM_HEADS, HEAD_DIM

    def ln(z, g, b):
        mu = jnp.mean(z, -1, keepdims=True)
        var = jnp.mean((z - mu) ** 2, -1, keepdims=True)
        return (z - mu) / jnp.sqrt(var + EPS) * g + b

    shortcut = x
    xv = ln(x, p["g1"][0], p["b1"][0]).reshape(B, H, W, C)
    if ss > 0:
        xv = jnp.roll(xv, (-ss, -ss), (1, 2))
    xw = window_partition(xv, ws)
    B_, N, _ = xw.shape
    qkv = xw @ p["wqkv"] + p["bqkv"][0]
    qkv = qkv.reshape(B_, N, 3, nH, D).transpose(2, 0, 3, 1, 4)
    q, k, v = qkv[0] * (D ** -0.5), qkv[1], qkv[2]
    attn = jnp.einsum("bhqd,bhkd->bhqk", q, k)
    nW = bias_all.shape[0]
    attn = attn + jnp.tile(bias_all, (B_ // nW, 1, 1, 1))
    attn = jax.nn.softmax(attn, -1)
    out = jnp.einsum("bhqk,bhkd->bhqd", attn, v).transpose(0, 2, 1, 3).reshape(B_, N, C)
    out = out @ p["wproj"] + p["bproj"][0]
    xv = window_reverse(out, ws, H, W)
    if ss > 0:
        xv = jnp.roll(xv, (ss, ss), (1, 2))
    x = shortcut + xv.reshape(B, L, C)
    h = ln(x, p["g2"][0], p["b2"][0]) @ p["w1"] + p["bb1"][0]
    h = 0.5 * h * (1.0 + jax.lax.erf(h / math.sqrt(2.0)))
    return x + h @ p["w2"] + p["bb2"][0]


# ---------------- parameter construction -------------------------------------
def init_params(key):
    C, Hh, nH = DIM, HIDDEN, NUM_HEADS
    ks = jax.random.split(key, 12)
    f32 = jnp.float32
    p = {
        "g1": 1.0 + 0.1 * jax.random.normal(ks[0], (1, C), f32),
        "b1": 0.1 * jax.random.normal(ks[1], (1, C), f32),
        "wqkv": 0.02 * jax.random.normal(ks[2], (C, 3 * C), f32),
        "bqkv": 0.02 * jax.random.normal(ks[3], (1, 3 * C), f32),
        "wproj": 0.02 * jax.random.normal(ks[4], (C, C), f32),
        "bproj": 0.02 * jax.random.normal(ks[5], (1, C), f32),
        "g2": 1.0 + 0.1 * jax.random.normal(ks[6], (1, C), f32),
        "b2": 0.1 * jax.random.normal(ks[7], (1, C), f32),
        "w1": 0.02 * jax.random.normal(ks[8], (C, Hh), f32),
        "bb1": 0.02 * jax.random.normal(ks[9], (1, Hh), f32),
        "w2": 0.02 * jax.random.normal(ks[10], (Hh, C), f32),
        "bb2": 0.02 * jax.random.normal(ks[11], (1, C), f32),
    }
    # relative position bias table, trunc-normal(std=0.02)-like init
    table = 0.02 * jax.random.truncated_normal(
        jax.random.PRNGKey(1), -2.0, 2.0,
        ((2 * WINDOW_SIZE - 1) * (2 * WINDOW_SIZE - 1), nH), f32)
    rel_idx = get_relative_position_index(WINDOW_SIZE, WINDOW_SIZE)  # (N, N)
    N = WINDOW_SIZE * WINDOW_SIZE
    rel_bias = jnp.asarray(table)[jnp.asarray(rel_idx.reshape(-1))]
    rel_bias = rel_bias.reshape(N, N, nH).transpose(2, 0, 1)          # (nH, N, N)
    # shift-window mask, combined with rel-pos bias per window
    mask = jnp.asarray(build_attn_mask(*INPUT_RES, WINDOW_SIZE, SHIFT_SIZE))  # (nW,N,N)
    bias_all = rel_bias[None, :, :, :] + mask[:, None, :, :]          # (nW,nH,N,N)
    return p, bias_all


def build_big_bias(bias_all):
    """(nW, nH, N, N) -> (nH, nW*N, nW*N) block-diagonal bias.

    Diagonal blocks: rel-pos bias + shift mask (exactly as the reference adds
    them).  Off-diagonal (cross-window) entries: -1e9 so exp() underflows to 0
    and the single big softmax is numerically identical to per-window softmax.
    """
    nW, nH, N, _ = bias_all.shape
    T = nW * N
    big = jnp.full((nH, T, T), NEG_BIG, dtype=jnp.float32)
    for w in range(nW):
        big = big.at[:, w * N:(w + 1) * N, w * N:(w + 1) * N].set(bias_all[w])
    return big


# ---------------- main --------------------------------------------------------
if __name__ == "__main__":
    key = jax.random.PRNGKey(0)
    kx, kp = jax.random.split(key)
    H, W = INPUT_RES
    x = jax.random.normal(kx, (BATCH, H * W, DIM), jnp.float32)

    params, bias_all = init_params(kp)
    bias_big = build_big_bias(bias_all)                 # (nH, 64, 64)

    fwd = jax.jit(lambda x: swin_block_forward(x, params, bias_big))
    out = jax.block_until_ready(fwd(x))

    ref = jax.block_until_ready(reference_forward(x, params, bias_all))
    assert out.shape == (BATCH, H * W, DIM)
    np.testing.assert_allclose(np.asarray(out), np.asarray(ref), atol=2e-4, rtol=2e-4)

    print("KERNEL_OK")
</pallas_src>

<mosaic_0001>
module attributes {stable_mosaic.version = 11 : i64} {
  func.func @_swin_block_kernel(%arg0: i32, %arg1: memref<1x64x32xf32, #tpu.memory_space<vmem>>, %arg2: memref<4x64x64xf32, #tpu.memory_space<vmem>>, %arg3: memref<32x96xf32, #tpu.memory_space<vmem>>, %arg4: memref<1x96xf32, #tpu.memory_space<vmem>>, %arg5: memref<32x32xf32, #tpu.memory_space<vmem>>, %arg6: memref<1x32xf32, #tpu.memory_space<vmem>>, %arg7: memref<1x32xf32, #tpu.memory_space<vmem>>, %arg8: memref<1x32xf32, #tpu.memory_space<vmem>>, %arg9: memref<1x32xf32, #tpu.memory_space<vmem>>, %arg10: memref<1x32xf32, #tpu.memory_space<vmem>>, %arg11: memref<32x128xf32, #tpu.memory_space<vmem>>, %arg12: memref<1x128xf32, #tpu.memory_space<vmem>>, %arg13: memref<128x32xf32, #tpu.memory_space<vmem>>, %arg14: memref<1x32xf32, #tpu.memory_space<vmem>>, %arg15: memref<1x64x32xf32, #tpu.memory_space<vmem>>) attributes {dimension_semantics = [#tpu.dimension_semantics<parallel>], iteration_bounds = array<i64: 2>, scalar_prefetch = 0 : i64, scratch_operands = 0 : i64, tpu.core_type = #tpu.core_type<tc>, window_params = [{transform_indices = @transform_0, window_bounds = array<i64: 1, 64, 32>}, {pipeline_mode = #tpu.pipeline_mode<synchronous>, transform_indices = @transform_1, window_bounds = array<i64: 4, 64, 64>}, {pipeline_mode = #tpu.pipeline_mode<synchronous>, transform_indices = @transform_2, window_bounds = array<i64: 32, 96>}, {pipeline_mode = #tpu.pipeline_mode<synchronous>, transform_indices = @transform_3, window_bounds = array<i64: 1, 96>}, {pipeline_mode = #tpu.pipeline_mode<synchronous>, transform_indices = @transform_4, window_bounds = array<i64: 32, 32>}, {pipeline_mode = #tpu.pipeline_mode<synchronous>, transform_indices = @transform_5, window_bounds = array<i64: 1, 32>}, {pipeline_mode = #tpu.pipeline_mode<synchronous>, transform_indices = @transform_6, window_bounds = array<i64: 1, 32>}, {pipeline_mode = #tpu.pipeline_mode<synchronous>, transform_indices = @transform_7, window_bounds = array<i64: 1, 32>}, {pipeline_mode = #tpu.pipeline_mode<synchronous>, transform_indices = @transform_8, window_bounds = array<i64: 1, 32>}, {pipeline_mode = #tpu.pipeline_mode<synchronous>, transform_indices = @transform_9, window_bounds = array<i64: 1, 32>}, {pipeline_mode = #tpu.pipeline_mode<synchronous>, transform_indices = @transform_10, window_bounds = array<i64: 32, 128>}, {pipeline_mode = #tpu.pipeline_mode<synchronous>, transform_indices = @transform_11, window_bounds = array<i64: 1, 128>}, {pipeline_mode = #tpu.pipeline_mode<synchronous>, transform_indices = @transform_12, window_bounds = array<i64: 128, 32>}, {pipeline_mode = #tpu.pipeline_mode<synchronous>, transform_indices = @transform_13, window_bounds = array<i64: 1, 32>}, {transform_indices = @transform_14, window_bounds = array<i64: 1, 64, 32>}]} {
    %c0 = arith.constant 0 : index
    %c0_0 = arith.constant 0 : index
    %c0_1 = arith.constant 0 : index
    %0 = vector.load %arg1[%c0, %c0_0, %c0_1] : memref<1x64x32xf32, #tpu.memory_space<vmem>>, vector<1x64x32xf32>
    %1 = vector.shape_cast %0 : vector<1x64x32xf32> to vector<64x32xf32>
    %cst = arith.constant dense<0.000000e+00> : vector<64xf32>
    %2 = vector.multi_reduction <add>, %1, %cst [1] : vector<64x32xf32> to vector<64xf32>
    %3 = vector.shape_cast %2 : vector<64xf32> to vector<64x1xf32>
    %cst_2 = arith.constant 3.200000e+01 : f32
    %4 = vector.broadcast %cst_2 : f32 to vector<64x1xf32>
    %5 = arith.divf %3, %4 : vector<64x1xf32>
    %6 = vector.broadcast %5 : vector<64x1xf32> to vector<64x32xf32>
    %7 = arith.subf %1, %6 : vector<64x32xf32>
    %8 = arith.mulf %7, %7 : vector<64x32xf32>
    %cst_3 = arith.constant dense<0.000000e+00> : vector<64xf32>
    %9 = vector.multi_reduction <add>, %8, %cst_3 [1] : vector<64x32xf32> to vector<64xf32>
    %10 = vector.shape_cast %9 : vector<64xf32> to vector<64x1xf32>
    %cst_4 = arith.constant 3.200000e+01 : f32
    %11 = vector.broadcast %cst_4 : f32 to vector<64x1xf32>
    %12 = arith.divf %10, %11 : vector<64x1xf32>
    %cst_5 = arith.constant 9.99999974E-6 : f32
    %13 = vector.broadcast %cst_5 : f32 to vector<64x1xf32>
    %14 = arith.addf %12, %13 : vector<64x1xf32>
    %15 = math.rsqrt %14 : vector<64x1xf32>
    %16 = vector.broadcast %15 : vector<64x1xf32> to vector<64x32xf32>
    %17 = arith.mulf %7, %16 : vector<64x32xf32>
    %c0_6 = arith.constant 0 : index
    %c0_7 = arith.constant 0 : index
    %18 = vector.load %arg7[%c0_6, %c0_7] : memref<1x32xf32, #tpu.memory_space<vmem>>, vector<1x32xf32>
    %19 = vector.shape_cast %18 : vector<1x32xf32> to vector<32xf32>
    %20 = vector.shape_cast %19 : vector<32xf32> to vector<1x32xf32>
    %21 = vector.broadcast %20 : vector<1x32xf32> to vector<64x32xf32>
    %22 = arith.mulf %17, %21 : vector<64x32xf32>
    %c0_8 = arith.constant 0 : index
    %c0_9 = arith.constant 0 : index
    %23 = vector.load %arg8[%c0_8, %c0_9] : memref<1x32xf32, #tpu.memory_space<vmem>>, vector<1x32xf32>
    %24 = vector.shape_cast %23 : vector<1x32xf32> to vector<32xf32>
    %25 = vector.shape_cast %24 : vector<32xf32> to vector<1x32xf32>
    %26 = vector.broadcast %25 : vector<1x32xf32> to vector<64x32xf32>
    %27 = arith.addf %22, %26 : vector<64x32xf32>
    %c0_10 = arith.constant 0 : index
    %c0_11 = arith.constant 0 : index
    %28 = vector.load %arg3[%c0_10, %c0_11] : memref<32x96xf32, #tpu.memory_space<vmem>>, vector<32x96xf32>
    %cst_12 = arith.constant dense<0.000000e+00> : vector<64x96xf32>
    %29 = tpu.matmul %27, %28, %cst_12 {dimension_numbers = #tpu.dot_dimension_numbers<[1], [0], [0], [1], [0, 0, 1, 1], [], []>} : vector<64x32xf32>, vector<32x96xf32>, vector<64x96xf32> -> vector<64x96xf32>
    %c0_13 = arith.constant 0 : index
    %c0_14 = arith.constant 0 : index
    %30 = vector.load %arg4[%c0_13, %c0_14] : memref<1x96xf32, #tpu.memory_space<vmem>>, vector<1x96xf32>
    %31 = vector.shape_cast %30 : vector<1x96xf32> to vector<96xf32>
    %32 = vector.shape_cast %31 : vector<96xf32> to vector<1x96xf32>
    %33 = vector.broadcast %32 : vector<1x96xf32> to vector<64x96xf32>
    %34 = arith.addf %29, %33 : vector<64x96xf32>
    %35 = vector.extract_strided_slice %34 {offsets = [0, 0], sizes = [64, 8], strides = [1, 1]} : vector<64x96xf32> to vector<64x8xf32>
    %cst_15 = arith.constant 0.353553385 : f32
    %36 = vector.broadcast %cst_15 : f32 to vector<64x8xf32>
    %37 = arith.mulf %35, %36 : vector<64x8xf32>
    %38 = vector.extract_strided_slice %34 {offsets = [0, 32], sizes = [64, 8], strides = [1, 1]} : vector<64x96xf32> to vector<64x8xf32>
    %39 = vector.extract_strided_slice %34 {offsets = [0, 64], sizes = [64, 8], strides = [1, 1]} : vector<64x96xf32> to vector<64x8xf32>
    %cst_16 = arith.constant dense<0.000000e+00> : vector<64x64xf32>
    %40 = tpu.matmul %37, %38, %cst_16 {dimension_numbers = #tpu.dot_dimension_numbers<[1], [1], [0], [0], [0, 0, 1, 0], [], []>} : vector<64x8xf32>, vector<64x8xf32>, vector<64x64xf32> -> vector<64x64xf32>
    %c0_17 = arith.constant 0 : index
    %c0_18 = arith.constant 0 : index
    %c0_19 = arith.constant 0 : index
    %41 = vector.load %arg2[%c0_17, %c0_18, %c0_19] : memref<4x64x64xf32, #tpu.memory_space<vmem>>, vector<1x64x64xf32>
    %42 = vector.shape_cast %41 : vector<1x64x64xf32> to vector<64x64xf32>
    %43 = arith.addf %40, %42 : vector<64x64xf32>
    %cst_20 = arith.constant dense<0xFF800000> : vector<64xf32>
    %44 = vector.multi_reduction <maximumf>, %43, %cst_20 [1] : vector<64x64xf32> to vector<64xf32>
    %45 = vector.shape_cast %44 : vector<64xf32> to vector<64x1xf32>
    %46 = vector.broadcast %45 : vector<64x1xf32> to vector<64x64xf32>
    %47 = arith.subf %43, %46 : vector<64x64xf32>
    %48 = math.exp %47 : vector<64x64xf32>
    %cst_21 = arith.constant dense<0.000000e+00> : vector<64xf32>
    %49 = vector.multi_reduction <add>, %48, %cst_21 [1] : vector<64x64xf32> to vector<64xf32>
    %50 = vector.shape_cast %49 : vector<64xf32> to vector<64x1xf32>
    %51 = tpu.reciprocal %50 {approx = true} : vector<64x1xf32> -> vector<64x1xf32>
    %52 = vector.broadcast %51 : vector<64x1xf32> to vector<64x64xf32>
    %53 = arith.mulf %48, %52 : vector<64x64xf32>
    %cst_22 = arith.constant dense<0.000000e+00> : vector<64x8xf32>
    %54 = tpu.matmul %53, %39, %cst_22 {dimension_numbers = #tpu.dot_dimension_numbers<[1], [0], [0], [1], [0, 0, 1, 1], [], []>} : vector<64x64xf32>, vector<64x8xf32>, vector<64x8xf32> -> vector<64x8xf32>
    %c0_23 = arith.constant 0 : index
    %c0_24 = arith.constant 0 : index
    %55 = vector.load %arg5[%c0_23, %c0_24] : memref<32x32xf32, #tpu.memory_space<vmem>>, vector<8x32xf32>
    %cst_25 = arith.constant dense<0.000000e+00> : vector<64x32xf32>
    %56 = tpu.matmul %54, %55, %cst_25 {dimension_numbers = #tpu.dot_dimension_numbers<[1], [0], [0], [1], [0, 0, 1, 1], [], []>} : vector<64x8xf32>, vector<8x32xf32>, vector<64x32xf32> -> vector<64x32xf32>
    %57 = vector.extract_strided_slice %34 {offsets = [0, 8], sizes = [64, 8], strides = [1, 1]} : vector<64x96xf32> to vector<64x8xf32>
    %cst_26 = arith.constant 0.353553385 : f32
    %58 = vector.broadcast %cst_26 : f32 to vector<64x8xf32>
    %59 = arith.mulf %57, %58 : vector<64x8xf32>
    %60 = vector.extract_strided_slice %34 {offsets = [0, 40], sizes = [64, 8], strides = [1, 1]} : vector<64x96xf32> to vector<64x8xf32>
    %61 = vector.extract_strided_slice %34 {offsets = [0, 72], sizes = [64, 8], strides = [1, 1]} : vector<64x96xf32> to vector<64x8xf32>
    %cst_27 = arith.constant dense<0.000000e+00> : vector<64x64xf32>
    %62 = tpu.matmul %59, %60, %cst_27 {dimension_numbers = #tpu.dot_dimension_numbers<[1], [1], [0], [0], [0, 0, 1, 0], [], []>} : vector<64x8xf32>, vector<64x8xf32>, vector<64x64xf32> -> vector<64x64xf32>
    %c1 = arith.constant 1 : index
    %c0_28 = arith.constant 0 : index
    %c0_29 = arith.constant 0 : index
    %63 = vector.load %arg2[%c1, %c0_28, %c0_29] : memref<4x64x64xf32, #tpu.memory_space<vmem>>, vector<1x64x64xf32>
    %64 = vector.shape_cast %63 : vector<1x64x64xf32> to vector<64x64xf32>
    %65 = arith.addf %62, %64 : vector<64x64xf32>
    %cst_30 = arith.constant dense<0xFF800000> : vector<64xf32>
    %66 = vector.multi_reduction <maximumf>, %65, %cst_30 [1] : vector<64x64xf32> to vector<64xf32>
    %67 = vector.shape_cast %66 : vector<64xf32> to vector<64x1xf32>
    %68 = vector.broadcast %67 : vector<64x1xf32> to vector<64x64xf32>
    %69 = arith.subf %65, %68 : vector<64x64xf32>
    %70 = math.exp %69 : vector<64x64xf32>
    %cst_31 = arith.constant dense<0.000000e+00> : vector<64xf32>
    %71 = vector.multi_reduction <add>, %70, %cst_31 [1] : vector<64x64xf32> to vector<64xf32>
    %72 = vector.shape_cast %71 : vector<64xf32> to vector<64x1xf32>
    %73 = tpu.reciprocal %72 {approx = true} : vector<64x1xf32> -> vector<64x1xf32>
    %74 = vector.broadcast %73 : vector<64x1xf32> to vector<64x64xf32>
    %75 = arith.mulf %70, %74 : vector<64x64xf32>
    %cst_32 = arith.constant dense<0.000000e+00> : vector<64x8xf32>
    %76 = tpu.matmul %75, %61, %cst_32 {dimension_numbers = #tpu.dot_dimension_numbers<[1], [0], [0], [1], [0, 0, 1, 1], [], []>} : vector<64x64xf32>, vector<64x8xf32>, vector<64x8xf32> -> vector<64x8xf32>
    %c8 = arith.constant 8 : index
    %c0_33 = arith.constant 0 : index
    %77 = vector.load %arg5[%c8, %c0_33] : memref<32x32xf32, #tpu.memory_space<vmem>>, vector<8x32xf32>
    %cst_34 = arith.constant dense<0.000000e+00> : vector<64x32xf32>
    %78 = tpu.matmul %76, %77, %cst_34 {dimension_numbers = #tpu.dot_dimension_numbers<[1], [0], [0], [1], [0, 0, 1, 1], [], []>} : vector<64x8xf32>, vector<8x32xf32>, vector<64x32xf32> -> vector<64x32xf32>
    %79 = arith.addf %56, %78 : vector<64x32xf32>
    %80 = vector.extract_strided_slice %34 {offsets = [0, 16], sizes = [64, 8], strides = [1, 1]} : vector<64x96xf32> to vector<64x8xf32>
    %cst_35 = arith.constant 0.353553385 : f32
    %81 = vector.broadcast %cst_35 : f32 to vector<64x8xf32>
    %82 = arith.mulf %80, %81 : vector<64x8xf32>
    %83 = vector.extract_strided_slice %34 {offsets = [0, 48], sizes = [64, 8], strides = [1, 1]} : vector<64x96xf32> to vector<64x8xf32>
    %84 = vector.extract_strided_slice %34 {offsets = [0, 80], sizes = [64, 8], strides = [1, 1]} : vector<64x96xf32> to vector<64x8xf32>
    %cst_36 = arith.constant dense<0.000000e+00> : vector<64x64xf32>
    %85 = tpu.matmul %82, %83, %cst_36 {dimension_numbers = #tpu.dot_dimension_numbers<[1], [1], [0], [0], [0, 0, 1, 0], [], []>} : vector<64x8xf32>, vector<64x8xf32>, vector<64x64xf32> -> vector<64x64xf32>
    %c2 = arith.constant 2 : index
    %c0_37 = arith.constant 0 : index
    %c0_38 = arith.constant 0 : index
    %86 = vector.load %arg2[%c2, %c0_37, %c0_38] : memref<4x64x64xf32, #tpu.memory_space<vmem>>, vector<1x64x64xf32>
    %87 = vector.shape_cast %86 : vector<1x64x64xf32> to vector<64x64xf32>
    %88 = arith.addf %85, %87 : vector<64x64xf32>
    %cst_39 = arith.constant dense<0xFF800000> : vector<64xf32>
    %89 = vector.multi_reduction <maximumf>, %88, %cst_39 [1] : vector<64x64xf32> to vector<64xf32>
    %90 = vector.shape_cast %89 : vector<64xf32> to vector<64x1xf32>
    %91 = vector.broadcast %90 : vector<64x1xf32> to vector<64x64xf32>
    %92 = arith.subf %88, %91 : vector<64x64xf32>
    %93 = math.exp %92 : vector<64x64xf32>
    %cst_40 = arith.constant dense<0.000000e+00> : vector<64xf32>
    %94 = vector.multi_reduction <add>, %93, %cst_40 [1] : vector<64x64xf32> to vector<64xf32>
    %95 = vector.shape_cast %94 : vector<64xf32> to vector<64x1xf32>
    %96 = tpu.reciprocal %95 {approx = true} : vector<64x1xf32> -> vector<64x1xf32>
    %97 = vector.broadcast %96 : vector<64x1xf32> to vector<64x64xf32>
    %98 = arith.mulf %93, %97 : vector<64x64xf32>
    %cst_41 = arith.constant dense<0.000000e+00> : vector<64x8xf32>
    %99 = tpu.matmul %98, %84, %cst_41 {dimension_numbers = #tpu.dot_dimension_numbers<[1], [0], [0], [1], [0, 0, 1, 1], [], []>} : vector<64x64xf32>, vector<64x8xf32>, vector<64x8xf32> -> vector<64x8xf32>
    %c16 = arith.constant 16 : index
    %c0_42 = arith.constant 0 : index
    %100 = vector.load %arg5[%c16, %c0_42] : memref<32x32xf32, #tpu.memory_space<vmem>>, vector<8x32xf32>
    %cst_43 = arith.constant dense<0.000000e+00> : vector<64x32xf32>
    %101 = tpu.matmul %99, %100, %cst_43 {dimension_numbers = #tpu.dot_dimension_numbers<[1], [0], [0], [1], [0, 0, 1, 1], [], []>} : vector<64x8xf32>, vector<8x32xf32>, vector<64x32xf32> -> vector<64x32xf32>
    %102 = arith.addf %79, %101 : vector<64x32xf32>
    %103 = vector.extract_strided_slice %34 {offsets = [0, 24], sizes = [64, 8], strides = [1, 1]} : vector<64x96xf32> to vector<64x8xf32>
    %cst_44 = arith.constant 0.353553385 : f32
    %104 = vector.broadcast %cst_44 : f32 to vector<64x8xf32>
    %105 = arith.mulf %103, %104 : vector<64x8xf32>
    %106 = vector.extract_strided_slice %34 {offsets = [0, 56], sizes = [64, 8], strides = [1, 1]} : vector<64x96xf32> to vector<64x8xf32>
    %107 = vector.extract_strided_slice %34 {offsets = [0, 88], sizes = [64, 8], strides = [1, 1]} : vector<64x96xf32> to vector<64x8xf32>
    %cst_45 = arith.constant dense<0.000000e+00> : vector<64x64xf32>
    %108 = tpu.matmul %105, %106, %cst_45 {dimension_numbers = #tpu.dot_dimension_numbers<[1], [1], [0], [0], [0, 0, 1, 0], [], []>} : vector<64x8xf32>, vector<64x8xf32>, vector<64x64xf32> -> vector<64x64xf32>
    %c3 = arith.constant 3 : index
    %c0_46 = arith.constant 0 : index
    %c0_47 = arith.constant 0 : index
    %109 = vector.load %arg2[%c3, %c0_46, %c0_47] : memref<4x64x64xf32, #tpu.memory_space<vmem>>, vector<1x64x64xf32>
    %110 = vector.shape_cast %109 : vector<1x64x64xf32> to vector<64x64xf32>
    %111 = arith.addf %108, %110 : vector<64x64xf32>
    %cst_48 = arith.constant dense<0xFF800000> : vector<64xf32>
    %112 = vector.multi_reduction <maximumf>, %111, %cst_48 [1] : vector<64x64xf32> to vector<64xf32>
    %113 = vector.shape_cast %112 : vector<64xf32> to vector<64x1xf32>
    %114 = vector.broadcast %113 : vector<64x1xf32> to vector<64x64xf32>
    %115 = arith.subf %111, %114 : vector<64x64xf32>
    %116 = math.exp %115 : vector<64x64xf32>
    %cst_49 = arith.constant dense<0.000000e+00> : vector<64xf32>
    %117 = vector.multi_reduction <add>, %116, %cst_49 [1] : vector<64x64xf32> to vector<64xf32>
    %118 = vector.shape_cast %117 : vector<64xf32> to vector<64x1xf32>
    %119 = tpu.reciprocal %118 {approx = true} : vector<64x1xf32> -> vector<64x1xf32>
    %120 = vector.broadcast %119 : vector<64x1xf32> to vector<64x64xf32>
    %121 = arith.mulf %116, %120 : vector<64x64xf32>
    %cst_50 = arith.constant dense<0.000000e+00> : vector<64x8xf32>
    %122 = tpu.matmul %121, %107, %cst_50 {dimension_numbers = #tpu.dot_dimension_numbers<[1], [0], [0], [1], [0, 0, 1, 1], [], []>} : vector<64x64xf32>, vector<64x8xf32>, vector<64x8xf32> -> vector<64x8xf32>
    %c24 = arith.constant 24 : index
    %c0_51 = arith.constant 0 : index
    %123 = vector.load %arg5[%c24, %c0_51] : memref<32x32xf32, #tpu.memory_space<vmem>>, vector<8x32xf32>
    %cst_52 = arith.constant dense<0.000000e+00> : vector<64x32xf32>
    %124 = tpu.matmul %122, %123, %cst_52 {dimension_numbers = #tpu.dot_dimension_numbers<[1], [0], [0], [1], [0, 0, 1, 1], [], []>} : vector<64x8xf32>, vector<8x32xf32>, vector<64x32xf32> -> vector<64x32xf32>
    %125 = arith.addf %102, %124 : vector<64x32xf32>
    %126 = arith.addf %1, %125 : vector<64x32xf32>
    %c0_53 = arith.constant 0 : index
    %c0_54 = arith.constant 0 : index
    %127 = vector.load %arg6[%c0_53, %c0_54] : memref<1x32xf32, #tpu.memory_space<vmem>>, vector<1x32xf32>
    %128 = vector.shape_cast %127 : vector<1x32xf32> to vector<32xf32>
    %129 = vector.shape_cast %128 : vector<32xf32> to vector<1x32xf32>
    %130 = vector.broadcast %129 : vector<1x32xf32> to vector<64x32xf32>
    %131 = arith.addf %126, %130 : vector<64x32xf32>
    %cst_55 = arith.constant dense<0.000000e+00> : vector<64xf32>
    %132 = vector.multi_reduction <add>, %131, %cst_55 [1] : vector<64x32xf32> to vector<64xf32>
    %133 = vector.shape_cast %132 : vector<64xf32> to vector<64x1xf32>
    %cst_56 = arith.constant 3.200000e+01 : f32
    %134 = vector.broadcast %cst_56 : f32 to vector<64x1xf32>
    %135 = arith.divf %133, %134 : vector<64x1xf32>
    %136 = vector.broadcast %135 : vector<64x1xf32> to vector<64x32xf32>
    %137 = arith.subf %131, %136 : vector<64x32xf32>
    %138 = arith.mulf %137, %137 : vector<64x32xf32>
    %cst_57 = arith.constant dense<0.000000e+00> : vector<64xf32>
    %139 = vector.multi_reduction <add>, %138, %cst_57 [1] : vector<64x32xf32> to vector<64xf32>
    %140 = vector.shape_cast %139 : vector<64xf32> to vector<64x1xf32>
    %cst_58 = arith.constant 3.200000e+01 : f32
    %141 = vector.broadcast %cst_58 : f32 to vector<64x1xf32>
    %142 = arith.divf %140, %141 : vector<64x1xf32>
    %cst_59 = arith.constant 9.99999974E-6 : f32
    %143 = vector.broadcast %cst_59 : f32 to vector<64x1xf32>
    %144 = arith.addf %142, %143 : vector<64x1xf32>
    %145 = math.rsqrt %144 : vector<64x1xf32>
    %146 = vector.broadcast %145 : vector<64x1xf32> to vector<64x32xf32>
    %147 = arith.mulf %137, %146 : vector<64x32xf32>
    %c0_60 = arith.constant 0 : index
    %c0_61 = arith.constant 0 : index
    %148 = vector.load %arg9[%c0_60, %c0_61] : memref<1x32xf32, #tpu.memory_space<vmem>>, vector<1x32xf32>
    %149 = vector.shape_cast %148 : vector<1x32xf32> to vector<32xf32>
    %150 = vector.shape_cast %149 : vector<32xf32> to vector<1x32xf32>
    %151 = vector.broadcast %150 : vector<1x32xf32> to vector<64x32xf32>
    %152 = arith.mulf %147, %151 : vector<64x32xf32>
    %c0_62 = arith.constant 0 : index
    %c0_63 = arith.constant 0 : index
    %153 = vector.load %arg10[%c0_62, %c0_63] : memref<1x32xf32, #tpu.memory_space<vmem>>, vector<1x32xf32>
    %154 = vector.shape_cast %153 : vector<1x32xf32> to vector<32xf32>
    %155 = vector.shape_cast %154 : vector<32xf32> to vector<1x32xf32>
    %156 = vector.broadcast %155 : vector<1x32xf32> to vector<64x32xf32>
    %157 = arith.addf %152, %156 : vector<64x32xf32>
    %c0_64 = arith.constant 0 : index
    %c0_65 = arith.constant 0 : index
    %158 = vector.load %arg11[%c0_64, %c0_65] : memref<32x128xf32, #tpu.memory_space<vmem>>, vector<32x128xf32>
    %cst_66 = arith.constant dense<0.000000e+00> : vector<64x128xf32>
    %159 = tpu.matmul %157, %158, %cst_66 {dimension_numbers = #tpu.dot_dimension_numbers<[1], [0], [0], [1], [0, 0, 1, 1], [], []>} : vector<64x32xf32>, vector<32x128xf32>, vector<64x128xf32> -> vector<64x128xf32>
    %c0_67 = arith.constant 0 : index
    %c0_68 = arith.constant 0 : index
    %160 = vector.load %arg12[%c0_67, %c0_68] : memref<1x128xf32, #tpu.memory_space<vmem>>, vector<1x128xf32>
    %161 = vector.shape_cast %160 : vector<1x128xf32> to vector<128xf32>
    %162 = vector.shape_cast %161 : vector<128xf32> to vector<1x128xf32>
    %163 = vector.broadcast %162 : vector<1x128xf32> to vector<64x128xf32>
    %164 = arith.addf %159, %163 : vector<64x128xf32>
    %cst_69 = arith.constant 5.000000e-01 : f32
    %165 = vector.broadcast %cst_69 : f32 to vector<64x128xf32>
    %166 = arith.mulf %165, %164 : vector<64x128xf32>
    %cst_70 = arith.constant 0.707106769 : f32
    %167 = vector.broadcast %cst_70 : f32 to vector<64x128xf32>
    %168 = arith.mulf %164, %167 : vector<64x128xf32>
    %169 = math.erf %168 : vector<64x128xf32>
    %cst_71 = arith.constant 1.000000e+00 : f32
    %170 = vector.broadcast %cst_71 : f32 to vector<64x128xf32>
    %171 = arith.addf %170, %169 : vector<64x128xf32>
    %172 = arith.mulf %166, %171 : vector<64x128xf32>
    %c0_72 = arith.constant 0 : index
    %c0_73 = arith.constant 0 : index
    %173 = vector.load %arg13[%c0_72, %c0_73] : memref<128x32xf32, #tpu.memory_space<vmem>>, vector<128x32xf32>
    %cst_74 = arith.constant dense<0.000000e+00> : vector<64x32xf32>
    %174 = tpu.matmul %172, %173, %cst_74 {dimension_numbers = #tpu.dot_dimension_numbers<[1], [0], [0], [1], [0, 0, 1, 1], [], []>} : vector<64x128xf32>, vector<128x32xf32>, vector<64x32xf32> -> vector<64x32xf32>
    %c0_75 = arith.constant 0 : index
    %c0_76 = arith.constant 0 : index
    %175 = vector.load %arg14[%c0_75, %c0_76] : memref<1x32xf32, #tpu.memory_space<vmem>>, vector<1x32xf32>
    %176 = vector.shape_cast %175 : vector<1x32xf32> to vector<32xf32>
    %177 = vector.shape_cast %176 : vector<32xf32> to vector<1x32xf32>
    %178 = vector.broadcast %177 : vector<1x32xf32> to vector<64x32xf32>
    %179 = arith.addf %174, %178 : vector<64x32xf32>
    %180 = arith.addf %131, %179 : vector<64x32xf32>
    %c0_77 = arith.constant 0 : index
    %c0_78 = arith.constant 0 : index
    %c0_79 = arith.constant 0 : index
    %181 = vector.load %arg15[%c0_77, %c0_78, %c0_79] : memref<1x64x32xf32, #tpu.memory_space<vmem>>, vector<1x64x32xf32>
    %182 = vector.shape_cast %181 : vector<1x64x32xf32> to vector<64x32xf32>
    %183 = vector.shape_cast %180 : vector<64x32xf32> to vector<1x64x32xf32>
    tpu.vector_store %arg15[%c0_77, %c0_78, %c0_79], %183 {strides = array<i32>} : memref<1x64x32xf32, #tpu.memory_space<vmem>>, vector<1x64x32xf32>,
    return
  }
  func.func @transform_0(%arg0: i32) -> (i32, i32, i32) {
    %c0_i32 = arith.constant 0 : i32
    %c0_i32_0 = arith.constant 0 : i32
    %c0_i32_1 = arith.constant 0 : i32
    return %arg0, %c0_i32, %c0_i32_0 : i32, i32, i32
  }
  func.func @transform_1(%arg0: i32) -> (i32, i32, i32) {
    %c0_i32 = arith.constant 0 : i32
    %c0_i32_0 = arith.constant 0 : i32
    %c0_i32_1 = arith.constant 0 : i32
    %c0_i32_2 = arith.constant 0 : i32
    return %c0_i32, %c0_i32_0, %c0_i32_1 : i32, i32, i32
  }
  func.func @transform_2(%arg0: i32) -> (i32, i32) {
    %c0_i32 = arith.constant 0 : i32
    %c0_i32_0 = arith.constant 0 : i32
    %c0_i32_1 = arith.constant 0 : i32
    return %c0_i32, %c0_i32_0 : i32, i32
  }
  func.func @transform_3(%arg0: i32) -> (i32, i32) {
    %c0_i32 = arith.constant 0 : i32
    %c0_i32_0 = arith.constant 0 : i32
    %c0_i32_1 = arith.constant 0 : i32
    return %c0_i32, %c0_i32_0 : i32, i32
  }
  func.func @transform_4(%arg0: i32) -> (i32, i32) {
    %c0_i32 = arith.constant 0 : i32
    %c0_i32_0 = arith.constant 0 : i32
    %c0_i32_1 = arith.constant 0 : i32
    return %c0_i32, %c0_i32_0 : i32, i32
  }
  func.func @transform_5(%arg0: i32) -> (i32, i32) {
    %c0_i32 = arith.constant 0 : i32
    %c0_i32_0 = arith.constant 0 : i32
    %c0_i32_1 = arith.constant 0 : i32
    return %c0_i32, %c0_i32_0 : i32, i32
  }
  func.func @transform_6(%arg0: i32) -> (i32, i32) {
    %c0_i32 = arith.constant 0 : i32
    %c0_i32_0 = arith.constant 0 : i32
    %c0_i32_1 = arith.constant 0 : i32
    return %c0_i32, %c0_i32_0 : i32, i32
  }
  func.func @transform_7(%arg0: i32) -> (i32, i32) {
    %c0_i32 = arith.constant 0 : i32
    %c0_i32_0 = arith.constant 0 : i32
    %c0_i32_1 = arith.constant 0 : i32
    return %c0_i32, %c0_i32_0 : i32, i32
  }
  func.func @transform_8(%arg0: i32) -> (i32, i32) {
    %c0_i32 = arith.constant 0 : i32
    %c0_i32_0 = arith.constant 0 : i32
    %c0_i32_1 = arith.constant 0 : i32
    return %c0_i32, %c0_i32_0 : i32, i32
  }
  func.func @transform_9(%arg0: i32) -> (i32, i32) {
    %c0_i32 = arith.constant 0 : i32
    %c0_i32_0 = arith.constant 0 : i32
    %c0_i32_1 = arith.constant 0 : i32
    return %c0_i32, %c0_i32_0 : i32, i32
  }
  func.func @transform_10(%arg0: i32) -> (i32, i32) {
    %c0_i32 = arith.constant 0 : i32
    %c0_i32_0 = arith.constant 0 : i32
    %c0_i32_1 = arith.constant 0 : i32
    return %c0_i32, %c0_i32_0 : i32, i32
  }
  func.func @transform_11(%arg0: i32) -> (i32, i32) {
    %c0_i32 = arith.constant 0 : i32
    %c0_i32_0 = arith.constant 0 : i32
    %c0_i32_1 = arith.constant 0 : i32
    return %c0_i32, %c0_i32_0 : i32, i32
  }
  func.func @transform_12(%arg0: i32) -> (i32, i32) {
    %c0_i32 = arith.constant 0 : i32
    %c0_i32_0 = arith.constant 0 : i32
    %c0_i32_1 = arith.constant 0 : i32
    return %c0_i32, %c0_i32_0 : i32, i32
  }
  func.func @transform_13(%arg0: i32) -> (i32, i32) {
    %c0_i32 = arith.constant 0 : i32
    %c0_i32_0 = arith.constant 0 : i32
    %c0_i32_1 = arith.constant 0 : i32
    return %c0_i32, %c0_i32_0 : i32, i32
  }
  func.func @transform_14(%arg0: i32) -> (i32, i32, i32) {
    %c0_i32 = arith.constant 0 : i32
    %c0_i32_0 = arith.constant 0 : i32
    %c0_i32_1 = arith.constant 0 : i32
    return %arg0, %c0_i32, %c0_i32_0 : i32, i32, i32
  }
}

</mosaic_0001>

<llo_original>
// kernel: _lambda_.1
$region0: #{_lambda_.1}
  #allocation0 [shape = 'u32[]', space=smem, size = 0x4, offset = 0x4, fixed_abs, tag = 'smem constant byte address 0x4 - core index']
  #allocation1 [shape = 'u32[144,128]{1,0:T(1,128)}', space=vmem, size = 0x12000, scoped, tag = 'internal scratch']
  %s0 = inlined_call_operand.vmem [shape: f32[2,64,32], index: 0, kind: input, shape index: {}]
  %s1 = inlined_call_operand.vmem [shape: f32[4,64,64], index: 1, kind: input, shape index: {}]
  %s2 = inlined_call_operand.vmem [shape: f32[32,96], index: 2, kind: input, shape index: {}]
  %s3 = inlined_call_operand.vmem [shape: f32[1,96], index: 3, kind: input, shape index: {}]
  %s4 = inlined_call_operand.vmem [shape: f32[32,32], index: 4, kind: input, shape index: {}]
  %s5 = inlined_call_operand.vmem [shape: f32[1,32], index: 5, kind: input, shape index: {}]
  %s6 = inlined_call_operand.vmem [shape: f32[1,32], index: 6, kind: input, shape index: {}]
  %s7 = inlined_call_operand.vmem [shape: f32[1,32], index: 7, kind: input, shape index: {}]
  %s8 = inlined_call_operand.vmem [shape: f32[1,32], index: 8, kind: input, shape index: {}]
  %s9 = inlined_call_operand.vmem [shape: f32[1,32], index: 9, kind: input, shape index: {}]
  %s10 = inlined_call_operand.vmem [shape: f32[32,128], index: 10, kind: input, shape index: {}]
  %s11 = inlined_call_operand.vmem [shape: f32[1,128], index: 11, kind: input, shape index: {}]
  %s12 = inlined_call_operand.vmem [shape: f32[128,32], index: 12, kind: input, shape index: {}]
  %s13 = inlined_call_operand.vmem [shape: f32[1,32], index: 13, kind: input, shape index: {}]
  %s14 = inlined_call_operand.vmem [shape: f32[2,64,32], index: 14, kind: output, shape index: {}]
  %s15 = sld [smem:[#allocation0]]
  $region89: #{_lambda_.1} parent=0
    _
  %s17 = ssub.s32 1, %s15
  %s18 = scalar_select 0, %s17, %s15
  loop: start=0, step=1, limit=4
  $region2: #{_lambda_.1} parent=0 // loop_pre_header
    _
  $region3: #{_lambda_.1} parent=0 // loop_header
    %s20 = sphi 0, %s24
    %p21 = scmp.ge.s32.totalorder %s20, 4
    %s30 = sphi 0, %s32
    %s33 = sphi 0, %s30
    %s34 = sphi 0, %s33
    %s50 = sphi 0, %s34
    %s54 = sphi 0, %s54
    %s56 = sphi 0, %s54
    %s57 = sphi 0, %s56
    %s71 = sphi 0, %s57
    %s75 = sphi 0, %s75
    %s77 = sphi 0, %s75
    %s78 = sphi 0, %s77
    %s92 = sphi 0, %s78
    %s96 = sphi 0, %s96
    %s98 = sphi 0, %s96
    %s99 = sphi 0, %s98
    %s113 = sphi 0, %s99
    %s117 = sphi 0, %s117
    %s119 = sphi 0, %s117
    %s120 = sphi 0, %s119
    %s134 = sphi 0, %s120
    %s138 = sphi 0, %s138
    %s140 = sphi 0, %s138
    %s141 = sphi 0, %s140
    %s155 = sphi 0, %s141
    %s159 = sphi 0, %s159
    %s161 = sphi 0, %s159
    %s162 = sphi 0, %s161
    %s176 = sphi 0, %s162
    %s180 = sphi 0, %s180
    %s182 = sphi 0, %s180
    %s183 = sphi 0, %s182
    %s197 = sphi 0, %s183
    %s201 = sphi 0, %s201
    %s203 = sphi 0, %s201
    %s204 = sphi 0, %s203
    %s218 = sphi 0, %s204
    %s222 = sphi 0, %s222
    %s224 = sphi 0, %s222
    %s225 = sphi 0, %s224
    %s239 = sphi 0, %s225
    %s243 = sphi 0, %s243
    %s245 = sphi 0, %s243
    %s246 = sphi 0, %s245
    %s260 = sphi 0, %s246
    %s264 = sphi 0, %s264
    %s266 = sphi 0, %s264
    %s267 = sphi 0, %s266
    %s281 = sphi 0, %s267
    %s285 = sphi 0, %s285
    %s287 = sphi 0, %s285
    %s288 = sphi 0, %s287
    %s302 = sphi 0, %s288
    %s306 = sphi 0, %s306
    %s308 = sphi 0, %s306
    %s309 = sphi 0, %s308
    %s323 = sphi 0, %s309
    %s329 = sphi 0, %s331
    %s332 = sphi 0, %s329
    %s333 = sphi 0, %s332
    %s349 = sphi 0, %s333
  $region4: #{_lambda_.1} parent=0 // loop_header_branch
    %23 = sbr.rel (%p21) target = $region8
  $region5: #{_lambda_.1} parent=0 // loop_body
    %s25 = ssub.s32 %s20, 1
    %s26 = ssub.s32 %s20, 2
    %s27 = sadd.s32 %s20, 1
    %s28 = ssub.s32 %s20, %s27
    %p29 = scmp.eq.s32.totalorder %s28, 0
    %s31 = sadd.s32 %s30, 1
    %s32 = scalar_select %p29, %s30, %s31
    %p35 = pneg %p29
    %p36 = scmp.eq.s32.totalorder %s20, 1
    %p37 = por %p35, %p36
    %p38 = scmp.ne.s32.totalorder %s30, %s33
    %p39 = scmp.eq.s32.totalorder %s20, 0
    %p40 = por %p38, %p39
    %p41 = scmp.ne.s32.totalorder %s30, %s33
    %p42 = scmp.eq.s32.totalorder %s25, 1
    %p43 = por %p41, %p42
    %p44 = scmp.ne.s32.totalorder %s33, %s34
    %p45 = scmp.eq.s32.totalorder %s25, 0
    %p46 = por %p44, %p45
    %p47 = scmp.ne.s32.totalorder %s33, %s34
    %p48 = scmp.eq.s32.totalorder %s26, 1
    %p49 = por %p47, %p48
    %p51 = scmp.ne.s32.totalorder %s34, %s50
    %p52 = scmp.eq.s32.totalorder %s26, 0
    %p53 = por %p51, %p52
    %s55 = sadd.s32 %s54, 1
    %p58 = scmp.eq.s32.totalorder %s20, 1
    %p59 = scmp.ne.s32.totalorder %s54, %s56
    %p60 = scmp.eq.s32.totalorder %s20, 0
    %p61 = por %p59, %p60
    %p62 = scmp.ne.s32.totalorder %s54, %s56
    %p63 = scmp.eq.s32.totalorder %s25, 1
    %p64 = por %p62, %p63
    %p65 = scmp.ne.s32.totalorder %s56, %s57
    %p66 = scmp.eq.s32.totalorder %s25, 0
    %p67 = por %p65, %p66
    %p68 = scmp.ne.s32.totalorder %s56, %s57
    %p69 = scmp.eq.s32.totalorder %s26, 1
    %p70 = por %p68, %p69
    %p72 = scmp.ne.s32.totalorder %s57, %s71
    %p73 = scmp.eq.s32.totalorder %s26, 0
    %p74 = por %p72, %p73
    %s76 = sadd.s32 %s75, 1
    %p79 = scmp.eq.s32.totalorder %s20, 1
    %p80 = scmp.ne.s32.totalorder %s75, %s77
    %p81 = scmp.eq.s32.totalorder %s20, 0
    %p82 = por %p80, %p81
    %p83 = scmp.ne.s32.totalorder %s75, %s77
    %p84 = scmp.eq.s32.totalorder %s25, 1
    %p85 = por %p83, %p84
    %p86 = scmp.ne.s32.totalorder %s77, %s78
    %p87 = scmp.eq.s32.totalorder %s25, 0
    %p88 = por %p86, %p87
    %p89 = scmp.ne.s32.totalorder %s77, %s78
    %p90 = scmp.eq.s32.totalorder %s26, 1
    %p91 = por %p89, %p90
    %p93 = scmp.ne.s32.totalorder %s78, %s92
    %p94 = scmp.eq.s32.totalorder %s26, 0
    %p95 = por %p93, %p94
    %s97 = sadd.s32 %s96, 1
    %p100 = scmp.eq.s32.totalorder %s20, 1
    %p101 = scmp.ne.s32.totalorder %s96, %s98
    %p102 = scmp.eq.s32.totalorder %s20, 0
    %p103 = por %p101, %p102
    %p104 = scmp.ne.s32.totalorder %s96, %s98
    %p105 = scmp.eq.s32.totalorder %s25, 1
    %p106 = por %p104, %p105
    %p107 = scmp.ne.s32.totalorder %s98, %s99
    %p108 = scmp.eq.s32.totalorder %s25, 0
    %p109 = por %p107, %p108
    %p110 = scmp.ne.s32.totalorder %s98, %s99
    %p111 = scmp.eq.s32.totalorder %s26, 1
    %p112 = por %p110, %p111
    %p114 = scmp.ne.s32.totalorder %s99, %s113
    %p115 = scmp.eq.s32.totalorder %s26, 0
    %p116 = por %p114, %p115
    %s118 = sadd.s32 %s117, 1
    %p121 = scmp.eq.s32.totalorder %s20, 1
    %p122 = scmp.ne.s32.totalorder %s117, %s119
    %p123 = scmp.eq.s32.totalorder %s20, 0
    %p124 = por %p122, %p123
    %p125 = scmp.ne.s32.totalorder %s117, %s119
    %p126 = scmp.eq.s32.totalorder %s25, 1
    %p127 = por %p125, %p126
    %p128 = scmp.ne.s32.totalorder %s119, %s120
    %p129 = scmp.eq.s32.totalorder %s25, 0
    %p130 = por %p128, %p129
    %p131 = scmp.ne.s32.totalorder %s119, %s120
    %p132 = scmp.eq.s32.totalorder %s26, 1
    %p133 = por %p131, %p132
    %p135 = scmp.ne.s32.totalorder %s120, %s134
    %p136 = scmp.eq.s32.totalorder %s26, 0
    %p137 = por %p135, %p136
    %s139 = sadd.s32 %s138, 1
    %p142 = scmp.eq.s32.totalorder %s20, 1
    %p143 = scmp.ne.s32.totalorder %s138, %s140
    %p144 = scmp.eq.s32.totalorder %s20, 0
    %p145 = por %p143, %p144
    %p146 = scmp.ne.s32.totalorder %s138, %s140
    %p147 = scmp.eq.s32.totalorder %s25, 1
    %p148 = por %p146, %p147
    %p149 = scmp.ne.s32.totalorder %s140, %s141
    %p150 = scmp.eq.s32.totalorder %s25, 0
    %p151 = por %p149, %p150
    %p152 = scmp.ne.s32.totalorder %s140, %s141
    %p153 = scmp.eq.s32.totalorder %s26, 1
    %p154 = por %p152, %p153
    %p156 = scmp.ne.s32.totalorder %s141, %s155
    %p157 = scmp.eq.s32.totalorder %s26, 0
    %p158 = por %p156, %p157
    %s160 = sadd.s32 %s159, 1
    %p163 = scmp.eq.s32.totalorder %s20, 1
    %p164 = scmp.ne.s32.totalorder %s159, %s161
    %p165 = scmp.eq.s32.totalorder %s20, 0
    %p166 = por %p164, %p165
    %p167 = scmp.ne.s32.totalorder %s159, %s161
    %p168 = scmp.eq.s32.totalorder %s25, 1
    %p169 = por %p167, %p168
    %p170 = scmp.ne.s32.totalorder %s161, %s162
    %p171 = scmp.eq.s32.totalorder %s25, 0
    %p172 = por %p170, %p171
    %p173 = scmp.ne.s32.totalorder %s161, %s162
    %p174 = scmp.eq.s32.totalorder %s26, 1
    %p175 = por %p173, %p174
    %p177 = scmp.ne.s32.totalorder %s162, %s176
    %p178 = scmp.eq.s32.totalorder %s26, 0
    %p179 = por %p177, %p178
    %s181 = sadd.s32 %s180, 1
    %p184 = scmp.eq.s32.totalorder %s20, 1
    %p185 = scmp.ne.s32.totalorder %s180, %s182
    %p186 = scmp.eq.s32.totalorder %s20, 0
    %p187 = por %p185, %p186
    %p188 = scmp.ne.s32.totalorder %s180, %s182
    %p189 = scmp.eq.s32.totalorder %s25, 1
    %p190 = por %p188, %p189
    %p191 = scmp.ne.s32.totalorder %s182, %s183
    %p192 = scmp.eq.s32.totalorder %s25, 0
    %p193 = por %p191, %p192
    %p194 = scmp.ne.s32.totalorder %s182, %s183
    %p195 = scmp.eq.s32.totalorder %s26, 1
    %p196 = por %p194, %p195
    %p198 = scmp.ne.s32.totalorder %s183, %s197
    %p199 = scmp.eq.s32.totalorder %s26, 0
    %p200 = por %p198, %p199
    %s202 = sadd.s32 %s201, 1
    %p205 = scmp.eq.s32.totalorder %s20, 1
    %p206 = scmp.ne.s32.totalorder %s201, %s203
    %p207 = scmp.eq.s32.totalorder %s20, 0
    %p208 = por %p206, %p207
    %p209 = scmp.ne.s32.totalorder %s201, %s203
    %p210 = scmp.eq.s32.totalorder %s25, 1
    %p211 = por %p209, %p210
    %p212 = scmp.ne.s32.totalorder %s203, %s204
    %p213 = scmp.eq.s32.totalorder %s25, 0
    %p214 = por %p212, %p213
    %p215 = scmp.ne.s32.totalorder %s203, %s204
    %p216 = scmp.eq.s32.totalorder %s26, 1
    %p217 = por %p215, %p216
    %p219 = scmp.ne.s32.totalorder %s204, %s218
    %p220 = scmp.eq.s32.totalorder %s26, 0
    %p221 = por %p219, %p220
    %s223 = sadd.s32 %s222, 1
    %p226 = scmp.eq.s32.totalorder %s20, 1
    %p227 = scmp.ne.s32.totalorder %s222, %s224
    %p228 = scmp.eq.s32.totalorder %s20, 0
    %p229 = por %p227, %p228
    %p230 = scmp.ne.s32.totalorder %s222, %s224
    %p231 = scmp.eq.s32.totalorder %s25, 1
    %p232 = por %p230, %p231
    %p233 = scmp.ne.s32.totalorder %s224, %s225
    %p234 = scmp.eq.s32.totalorder %s25, 0
    %p235 = por %p233, %p234
    %p236 = scmp.ne.s32.totalorder %s224, %s225
    %p237 = scmp.eq.s32.totalorder %s26, 1
    %p238 = por %p236, %p237
    %p240 = scmp.ne.s32.totalorder %s225, %s239
    %p241 = scmp.eq.s32.totalorder %s26, 0
    %p242 = por %p240, %p241
    %s244 = sadd.s32 %s243, 1
    %p247 = scmp.eq.s32.totalorder %s20, 1
    %p248 = scmp.ne.s32.totalorder %s243, %s245
    %p249 = scmp.eq.s32.totalorder %s20, 0
    %p250 = por %p248, %p249
    %p251 = scmp.ne.s32.totalorder %s243, %s245
    %p252 = scmp.eq.s32.totalorder %s25, 1
    %p253 = por %p251, %p252
    %p254 = scmp.ne.s32.totalorder %s245, %s246
    %p255 = scmp.eq.s32.totalorder %s25, 0
    %p256 = por %p254, %p255
    %p257 = scmp.ne.s32.totalorder %s245, %s246
    %p258 = scmp.eq.s32.totalorder %s26, 1
    %p259 = por %p257, %p258
    %p261 = scmp.ne.s32.totalorder %s246, %s260
    %p262 = scmp.eq.s32.totalorder %s26, 0
    %p263 = por %p261, %p262
    %s265 = sadd.s32 %s264, 1
    %p268 = scmp.eq.s32.totalorder %s20, 1
    %p269 = scmp.ne.s32.totalorder %s264, %s266
    %p270 = scmp.eq.s32.totalorder %s20, 0
    %p271 = por %p269, %p270
    %p272 = scmp.ne.s32.totalorder %s264, %s266
    %p273 = scmp.eq.s32.totalorder %s25, 1
    %p274 = por %p272, %p273
    %p275 = scmp.ne.s32.totalorder %s266, %s267
    %p276 = scmp.eq.s32.totalorder %s25, 0
    %p277 = por %p275, %p276
    %p278 = scmp.ne.s32.totalorder %s266, %s267
    %p279 = scmp.eq.s32.totalorder %s26, 1
    %p280 = por %p278, %p279
    %p282 = scmp.ne.s32.totalorder %s267, %s281
    %p283 = scmp.eq.s32.totalorder %s26, 0
    %p284 = por %p282, %p283
    %s286 = sadd.s32 %s285, 1
    %p289 = scmp.eq.s32.totalorder %s20, 1
    %p290 = scmp.ne.s32.totalorder %s285, %s287
    %p291 = scmp.eq.s32.totalorder %s20, 0
    %p292 = por %p290, %p291
    %p293 = scmp.ne.s32.totalorder %s285, %s287
    %p294 = scmp.eq.s32.totalorder %s25, 1
    %p295 = por %p293, %p294
    %p296 = scmp.ne.s32.totalorder %s287, %s288
    %p297 = scmp.eq.s32.totalorder %s25, 0
    %p298 = por %p296, %p297
    %p299 = scmp.ne.s32.totalorder %s287, %s288
    %p300 = scmp.eq.s32.totalorder %s26, 1
    %p301 = por %p299, %p300
    %p303 = scmp.ne.s32.totalorder %s288, %s302
    %p304 = scmp.eq.s32.totalorder %s26, 0
    %p305 = por %p303, %p304
    %s307 = sadd.s32 %s306, 1
    %p310 = scmp.eq.s32.totalorder %s20, 1
    %p311 = scmp.ne.s32.totalorder %s306, %s308
    %p312 = scmp.eq.s32.totalorder %s20, 0
    %p313 = por %p311, %p312
    %p314 = scmp.ne.s32.totalorder %s306, %s308
    %p315 = scmp.eq.s32.totalorder %s25, 1
    %p316 = por %p314, %p315
    %p317 = scmp.ne.s32.totalorder %s308, %s309
    %p318 = scmp.eq.s32.totalorder %s25, 0
    %p319 = por %p317, %p318
    %p320 = scmp.ne.s32.totalorder %s308, %s309
    %p321 = scmp.eq.s32.totalorder %s26, 1
    %p322 = por %p320, %p321
    %p324 = scmp.ne.s32.totalorder %s309, %s323
    %p325 = scmp.eq.s32.totalorder %s26, 0
    %p326 = por %p324, %p325
    %s327 = ssub.s32 %s20, %s27
    %p328 = scmp.eq.s32.totalorder %s327, 0
    %s330 = sadd.s32 %s329, 1
    %s331 = scalar_select %p328, %s329, %s330
    %p334 = pneg %p328
    %p335 = scmp.eq.s32.totalorder %s20, 1
    %p336 = por %p334, %p335
    %p337 = scmp.ne.s32.totalorder %s329, %s332
    %p338 = scmp.eq.s32.totalorder %s20, 0
    %p339 = por %p337, %p338
    %p340 = scmp.ne.s32.totalorder %s329, %s332
    %p341 = scmp.eq.s32.totalorder %s25, 1
    %p342 = por %p340, %p341
    %p343 = scmp.ne.s32.totalorder %s332, %s333
    %p344 = scmp.eq.s32.totalorder %s25, 0
    %p345 = por %p343, %p344
    %p346 = scmp.ne.s32.totalorder %s332, %s333
    %p347 = scmp.eq.s32.totalorder %s26, 1
    %p348 = por %p346, %p347
    %p350 = scmp.ne.s32.totalorder %s333, %s349
    %p351 = scmp.eq.s32.totalorder %s26, 0
    %p352 = por %p350, %p351
    %p353 = scmp.le.s32.totalorder 1, %s20
    %p354 = scmp.lt.s32.totalorder %s20, 3
    %p355 = pnand %p353, %p354
    %p356 = pneg %p355
    // Predicated region
    $region9: #{_lambda_.1} parent=5 // pred_check
      _
    $region10: #{_lambda_.1} parent=5 // pred_check_branch
      %358 = sbr.rel (%p355) target = $region12
    $region11: #{_lambda_.1} parent=5 // pred_region
      %s359 = ssub.s32 %s20, 1
      // Predicated region
      $region13: #{_lambda_.1} parent=11 // pred_check
        %p360 = pneg %p67
      $region14: #{_lambda_.1} parent=11 // pred_check_branch
        %362 = sbr.rel (%p360) target = $region16
      $region15: #{_lambda_.1} parent=11 // pred_region
        _
      $region16: #{_lambda_.1} parent=11 // pred_fallthru
        _
      // Predicated region
      $region17: #{_lambda_.1} parent=11 // pred_check
        %p363 = pneg %p88
      $region18: #{_lambda_.1} parent=11 // pred_check_branch
        %365 = sbr.rel (%p363) target = $region20
      $region19: #{_lambda_.1} parent=11 // pred_region
        _
      $region20: #{_lambda_.1} parent=11 // pred_fallthru
        _
      // Predicated region
      $region21: #{_lambda_.1} parent=11 // pred_check
        %p366 = pneg %p109
      $region22: #{_lambda_.1} parent=11 // pred_check_branch
        %368 = sbr.rel (%p366) target = $region24
      $region23: #{_lambda_.1} parent=11 // pred_region
        _
      $region24: #{_lambda_.1} parent=11 // pred_fallthru
        _
      // Predicated region
      $region25: #{_lambda_.1} parent=11 // pred_check
        %p369 = pneg %p130
      $region26: #{_lambda_.1} parent=11 // pred_check_branch
        %371 = sbr.rel (%p369) target = $region28
      $region27: #{_lambda_.1} parent=11 // pred_region
        _
      $region28: #{_lambda_.1} parent=11 // pred_fallthru
        _
      // Predicated region
      $region29: #{_lambda_.1} parent=11 // pred_check
        %p372 = pneg %p151
      $region30: #{_lambda_.1} parent=11 // pred_check_branch
        %374 = sbr.rel (%p372) target = $region32
      $region31: #{_lambda_.1} parent=11 // pred_region
        _
      $region32: #{_lambda_.1} parent=11 // pred_fallthru
        _
      // Predicated region
      $region33: #{_lambda_.1} parent=11 // pred_check
        %p375 = pneg %p172
      $region34: #{_lambda_.1} parent=11 // pred_check_branch
        %377 = sbr.rel (%p375) target = $region36
      $region35: #{_lambda_.1} parent=11 // pred_region
        _
      $region36: #{_lambda_.1} parent=11 // pred_fallthru
        _
      // Predicated region
      $region37: #{_lambda_.1} parent=11 // pred_check
        %p378 = pneg %p193
      $region38: #{_lambda_.1} parent=11 // pred_check_branch
        %380 = sbr.rel (%p378) target = $region40
      $region39: #{_lambda_.1} parent=11 // pred_region
        _
      $region40: #{_lambda_.1} parent=11 // pred_fallthru
        _
      // Predicated region
      $region41: #{_lambda_.1} parent=11 // pred_check
        %p381 = pneg %p214
      $region42: #{_lambda_.1} parent=11 // pred_check_branch
        %383 = sbr.rel (%p381) target = $region44
      $region43: #{_lambda_.1} parent=11 // pred_region
        _
      $region44: #{_lambda_.1} parent=11 // pred_fallthru
        _
      // Predicated region
      $region45: #{_lambda_.1} parent=11 // pred_check
        %p384 = pneg %p235
      $region46: #{_lambda_.1} parent=11 // pred_check_branch
        %386 = sbr.rel (%p384) target = $region48
      $region47: #{_lambda_.1} parent=11 // pred_region
        _
      $region48: #{_lambda_.1} parent=11 // pred_fallthru
        _
      // Predicated region
      $region49: #{_lambda_.1} parent=11 // pred_check
        %p387 = pneg %p256
      $region50: #{_lambda_.1} parent=11 // pred_check_branch
        %389 = sbr.rel (%p387) target = $region52
      $region51: #{_lambda_.1} parent=11 // pred_region
        _
      $region52: #{_lambda_.1} parent=11 // pred_fallthru
        _
      // Predicated region
      $region53: #{_lambda_.1} parent=11 // pred_check
        %p390 = pneg %p277
      $region54: #{_lambda_.1} parent=11 // pred_check_branch
        %392 = sbr.rel (%p390) target = $region56
      $region55: #{_lambda_.1} parent=11 // pred_region
        _
      $region56: #{_lambda_.1} parent=11 // pred_fallthru
        _
      // Predicated region
      $region57: #{_lambda_.1} parent=11 // pred_check
        %p393 = pneg %p298
      $region58: #{_lambda_.1} parent=11 // pred_check_branch
        %395 = sbr.rel (%p393) target = $region60
      $region59: #{_lambda_.1} parent=11 // pred_region
        _
      $region60: #{_lambda_.1} parent=11 // pred_fallthru
        _
      // Predicated region
      $region61: #{_lambda_.1} parent=11 // pred_check
        %p396 = pneg %p319
      $region62: #{_lambda_.1} parent=11 // pred_check_branch
        %398 = sbr.rel (%p396) target = $region64
      $region63: #{_lambda_.1} parent=11 // pred_region
        _
      $region64: #{_lambda_.1} parent=11 // pred_fallthru
        _
    $region12: #{_lambda_.1} parent=5 // pred_fallthru
      _
    %p399 = scmp.lt.s32.totalorder %s20, 2
    // Predicated region
    $region65: #{_lambda_.1} parent=5 // pred_check
      %p400 = pneg %p399
    $region66: #{_lambda_.1} parent=5 // pred_check_branch
      %402 = sbr.rel (%p400) target = $region68
    $region67: #{_lambda_.1} parent=5 // pred_region
      // Predicated region
      $region69: #{_lambda_.1} parent=67 // pred_check
        %p403 = pneg %p40
      $region70: #{_lambda_.1} parent=67 // pred_check_branch
        %405 = sbr.rel (%p403) target = $region72
      $region71: #{_lambda_.1} parent=67 // pred_region
        %p406 = scmp.lt.s32.totalorder %s20, 1
        %s407 = scalar_select %p406, %s20, 1
        %s408 = smul.addr %s407, 8
        %s409 = smul.addr %s408, 8
        %s410 = scalar_lea.vmem %s0, %s409
      $region72: #{_lambda_.1} parent=67 // pred_fallthru
        _
    $region68: #{_lambda_.1} parent=5 // pred_fallthru
      _
    %p411 = scmp.le.s32.totalorder 1, %s20
    %p412 = scmp.lt.s32.totalorder %s20, 3
    %p413 = pnand %p411, %p412
    %p414 = pneg %p413
    // Predicated region
    $region73: #{_lambda_.1} parent=5 // pred_check
      _
    $region74: #{_lambda_.1} parent=5 // pred_check_branch
      %416 = sbr.rel (%p413) target = $region76
    $region75: #{_lambda_.1} parent=5 // pred_region
      %s417 = ssub.s32 %s20, 1
      %p418 = scmp.lt.s32.totalorder %s25, 1
      %s419 = scalar_select %p418, %s25, 1
      %s420 = smul.addr %s419, 8
      %s421 = smul.addr %s420, 8
      %s422 = scalar_lea.vmem %s0, %s421
      %p423 = pneg %p46
      %p424 = pneg %p43
      %p425 = pneg %p67
      %p426 = pneg %p64
      %p427 = pneg %p88
      %p428 = pneg %p85
      %p429 = pneg %p109
      %p430 = pneg %p106
      %p431 = pneg %p130
      %p432 = pneg %p127
      %p433 = pneg %p151
      %p434 = pneg %p148
      %p435 = pneg %p172
      %p436 = pneg %p169
      %p437 = pneg %p193
      %p438 = pneg %p190
      %p439 = pneg %p214
      %p440 = pneg %p211
      %p441 = pneg %p235
      %p442 = pneg %p232
      %p443 = pneg %p256
      %p444 = pneg %p253
      %p445 = pneg %p277
      %p446 = pneg %p274
      %p447 = pneg %p298
      %p448 = pneg %p295
      %p449 = pneg %p319
      %p450 = pneg %p316
      %p451 = pneg %p345
      %p452 = pneg %p342
      %p453 = scmp.lt.s32.totalorder %s25, 1
      %s454 = scalar_select %p453, %s25, 1
      %s455 = smul.addr %s454, 8
      %s456 = smul.addr %s455, 8
      %s457 = scalar_lea.vmem %s14, %s456
      %p458 = scmp.lt.s32.totalorder %s25, 1
      %s459 = scalar_select %p458, %s25, 1
      %s460 = smul.addr %s459, 8
      %s461 = smul.addr %s460, 8
      %s462 = scalar_lea.vmem %s0, %s461
      %p463 = scmp.lt.s32.totalorder %s25, 1
      %s464 = scalar_select %p463, %s25, 1
      %s465 = smul.addr %s464, 8
      %s466 = smul.addr %s465, 8
      %s467 = scalar_lea.vmem %s14, %s466
      %v468 = vld [vmem:[%s462] sm:$0xff]
      %v469 = vld [vmem:[%s462 + $0x8] sm:$0xff]
      %v470 = vld [vmem:[%s462 + $0x10] sm:$0xff]
      %v471 = vld [vmem:[%s462 + $0x18] sm:$0xff]
      %v472 = vld [vmem:[%s462 + $0x20] sm:$0xff]
      %v473 = vld [vmem:[%s462 + $0x28] sm:$0xff]
      %v474 = vld [vmem:[%s462 + $0x30] sm:$0xff]
      %v475 = vld [vmem:[%s462 + $0x38] sm:$0xff]
      %vm476 = vcmask 261120
      %v477 = vsel %vm476, %v468, 0.0
      %478 = vadd.xlane.f32.xlu0 %v477
      %v479 = vpop.xlane.xlu0 %478
      %v480 = vsel %vm476, %v469, 0.0
      %481 = vadd.xlane.f32.xlu0 %v480
      %v482 = vpop.xlane.xlu0 %481
      %v483 = vsel %vm476, %v470, 0.0
      %484 = vadd.xlane.f32.xlu0 %v483
      %v485 = vpop.xlane.xlu0 %484
      %v486 = vsel %vm476, %v471, 0.0
      %487 = vadd.xlane.f32.xlu0 %v486
      %v488 = vpop.xlane.xlu0 %487
      %v489 = vsel %vm476, %v472, 0.0
      %490 = vadd.xlane.f32.xlu0 %v489
      %v491 = vpop.xlane.xlu0 %490
      %v492 = vsel %vm476, %v473, 0.0
      %493 = vadd.xlane.f32.xlu0 %v492
      %v494 = vpop.xlane.xlu0 %493
      %v495 = vsel %vm476, %v474, 0.0
      %496 = vadd.xlane.f32.xlu0 %v495
      %v497 = vpop.xlane.xlu0 %496
      %v498 = vsel %vm476, %v475, 0.0
      %499 = vadd.xlane.f32.xlu0 %v498
      %v500 = vpop.xlane.xlu0 %499
      %v501 = vrcp.pop 32.0
      %v502 = vmul.f32 %v479, %v501
      %v503 = vmul.f32 %v482, %v501
      %v504 = vmul.f32 %v485, %v501
      %v505 = vmul.f32 %v488, %v501
      %v506 = vmul.f32 %v491, %v501
      %v507 = vmul.f32 %v494, %v501
      %v508 = vmul.f32 %v497, %v501
      %v509 = vmul.f32 %v500, %v501
      %v510 = vsub.f32 %v468, %v502
      %v511 = vsub.f32 %v469, %v503
      %v512 = vsub.f32 %v470, %v504
      %v513 = vsub.f32 %v471, %v505
      %v514 = vsub.f32 %v472, %v506
      %v515 = vsub.f32 %v473, %v507
      %v516 = vsub.f32 %v474, %v508
      %v517 = vsub.f32 %v475, %v509
      %v518 = vmul.f32 %v510, %v510
      %v519 = vmul.f32 %v511, %v511
      %v520 = vmul.f32 %v512, %v512
      %v521 = vmul.f32 %v513, %v513
      %v522 = vmul.f32 %v514, %v514
      %v523 = vmul.f32 %v515, %v515
      %v524 = vmul.f32 %v516, %v516
      %v525 = vmul.f32 %v517, %v517
      %v526 = vsel %vm476, %v518, 0.0
      %527 = vadd.xlane.f32.xlu0 %v526
      %v528 = vpop.xlane.xlu0 %527
      %v529 = vsel %vm476, %v519, 0.0
      %530 = vadd.xlane.f32.xlu0 %v529
      %v531 = vpop.xlane.xlu0 %530
      %v532 = vsel %vm476, %v520, 0.0
      %533 = vadd.xlane.f32.xlu0 %v532
      %v534 = vpop.xlane.xlu0 %533
      %v535 = vsel %vm476, %v521, 0.0
      %536 = vadd.xlane.f32.xlu0 %v535
      %v537 = vpop.xlane.xlu0 %536
      %v538 = vsel %vm476, %v522, 0.0
      %539 = vadd.xlane.f32.xlu0 %v538
      %v540 = vpop.xlane.xlu0 %539
      %v541 = vsel %vm476, %v523, 0.0
      %542 = vadd.xlane.f32.xlu0 %v541
      %v543 = vpop.xlane.xlu0 %542
      %v544 = vsel %vm476, %v524, 0.0
      %545 = vadd.xlane.f32.xlu0 %v544
      %v546 = vpop.xlane.xlu0 %545
      %v547 = vsel %vm476, %v525, 0.0
      %548 = vadd.xlane.f32.xlu0 %v547
      %v549 = vpop.xlane.xlu0 %548
      %v550 = vmul.f32 %v528, %v501
      %v551 = vmul.f32 %v531, %v501
      %v552 = vmul.f32 %v534, %v501
      %v553 = vmul.f32 %v537, %v501
      %v554 = vmul.f32 %v540, %v501
      %v555 = vmul.f32 %v543, %v501
      %v556 = vmul.f32 %v546, %v501
      %v557 = vmul.f32 %v549, %v501
      %v558 = vadd.f32 %v550, 1e-05
      %v559 = vadd.f32 %v551, 1e-05
      %v560 = vadd.f32 %v552, 1e-05
      %v561 = vadd.f32 %v553, 1e-05
      %v562 = vadd.f32 %v554, 1e-05
      %v563 = vadd.f32 %v555, 1e-05
      %v564 = vadd.f32 %v556, 1e-05
      %v565 = vadd.f32 %v557, 1e-05
      %v566 = vrsqrt.pop %v558
      %v567 = vrsqrt.pop %v559
      %v568 = vrsqrt.pop %v560
      %v569 = vrsqrt.pop %v561
      %v570 = vrsqrt.pop %v562
      %v571 = vrsqrt.pop %v563
      %v572 = vrsqrt.pop %v564
      %v573 = vrsqrt.pop %v565
      %v574 = vmul.f32 %v510, %v566
      %v575 = vmul.f32 %v511, %v567
      %v576 = vmul.f32 %v512, %v568
      %v577 = vmul.f32 %v513, %v569
      %v578 = vmul.f32 %v514, %v570
      %v579 = vmul.f32 %v515, %v571
      %v580 = vmul.f32 %v516, %v572
      %v581 = vmul.f32 %v517, %v573
      %v582 = vld [vmem:[%s6] sm:$0x1]
      %v584 = vlaneseq
      %v585 = vshrl.u32 %v584, 7
      %v586 = vsub.s32 0, %v585
      %v587 = vrot.slane %v582, %v586
      %v589 = vmul.f32 %v574, %v587
      %v590 = vmul.f32 %v575, %v587
      %v591 = vmul.f32 %v576, %v587
      %v592 = vmul.f32 %v577, %v587
      %v593 = vmul.f32 %v578, %v587
      %v594 = vmul.f32 %v579, %v587
      %v595 = vmul.f32 %v580, %v587
      %v596 = vmul.f32 %v581, %v587
      %v597 = vld [vmem:[%s7] sm:$0x1]
      %v599 = vlaneseq
      %v600 = vshrl.u32 %v599, 7
      %v601 = vsub.s32 0, %v600
      %v602 = vrot.slane %v597, %v601
      %v604 = vadd.f32 %v589, %v602
      %v605 = vadd.f32 %v590, %v602
      %v606 = vadd.f32 %v591, %v602
      %v607 = vadd.f32 %v592, %v602
      %v608 = vadd.f32 %v593, %v602
      %v609 = vadd.f32 %v594, %v602
      %v610 = vadd.f32 %v595, %v602
      %v611 = vadd.f32 %v596, %v602
      %v612 = vld [vmem:[%s2] sm:$0xff]
      %v613 = vld [vmem:[%s2 + $0x8] sm:$0xff]
      %v614 = vld [vmem:[%s2 + $0x10] sm:$0xff]
      %v615 = vld [vmem:[%s2 + $0x18] sm:$0xff]
      %v616 = vld [vmem:[%s3] sm:$0x1]
      %v618 = vlaneseq
      %v619 = vshrl.u32 %v618, 7
      %v620 = vsub.s32 0, %v619
      %v621 = vrot.slane %v616, %v620
      %v624 = vsel %vm476, %v604, 0
      %v627 = vsel %vm476, %v605, 0
      %v630 = vsel %vm476, %v606, 0
      %v633 = vsel %vm476, %v607, 0
      %v636 = vsel %vm476, %v608, 0
      %v639 = vsel %vm476, %v609, 0
      %v642 = vsel %vm476, %v610, 0
      %v645 = vsel %vm476, %v611, 0
      %647 = vmatprep.subr.mxu0 0.0
      %648 = vmatpush1.msra.mxu0 %v612
      %649 = vmatprep.subr.mxu0 0.0
      %650 = vmatpush1.msra.mxu0 %v613
      %651 = vmatprep.subr.mxu0 0.0
      %652 = vmatpush1.msra.mxu0 %v614
      %653 = vmatprep.subr.mxu0 0.0
      %654 = vmatpush1.msra.mxu0 %v615
      %655 = vmatprep.subr.mxu0 0.0
      %656 = vmatpush1.msra.mxu0 0.0
      %657 = vmatprep.subr.mxu0 0.0
      %658 = vmatpush1.msra.mxu0 0.0
      %659 = vmatprep.subr.mxu0 0.0
      %660 = vmatpush1.msra.mxu0 0.0
      %661 = vmatprep.subr.mxu0 0.0
      %662 = vmatpush1.msra.mxu0 0.0
      %663 = vmatprep.subr.mxu0 0.0
      %664 = vmatpush1.msra.mxu0 0.0
      %665 = vmatprep.subr.mxu0 0.0
      %666 = vmatpush1.msra.mxu0 0.0
      %667 = vmatprep.subr.mxu0 0.0
      %668 = vmatpush1.msra.mxu0 0.0
      %669 = vmatprep.subr.mxu0 0.0
      %670 = vmatpush1.msra.mxu0 0.0
      %671 = vmatprep.subr.mxu0 0.0
      %672 = vmatpush1.msra.mxu0 0.0
      %673 = vmatprep.subr.mxu0 0.0
      %674 = vmatpush1.msra.mxu0 0.0
      %675 = vmatprep.subr.mxu0 0.0
      %676 = vmatpush1.msra.mxu0 0.0
      %677 = vmatprep.subr.mxu0 0.0
      %678 = vmatpush1.msra.mxu0 0.0
      %679 = vmatprep.subr.mxu0 0.0
      %680 = vmatpush1.msra.mxu0 0.0
      %681 = vmatprep.subr.mxu0 0.0
      %682 = vmatpush1.msra.mxu0 0.0
      %683 = vmatprep.subr.mxu0 0.0
      %684 = vmatpush1.msra.mxu0 0.0
      %685 = vmatprep.subr.mxu0 0.0
      %686 = vmatpush1.msra.mxu0 0.0
      %687 = vmatprep.subr.mxu0 0.0
      %688 = vmatpush1.msra.mxu0 0.0
      %689 = vmatprep.subr.mxu0 0.0
      %690 = vmatpush1.msra.mxu0 0.0
      %691 = vmatprep.subr.mxu0 0.0
      %692 = vmatpush1.msra.mxu0 0.0
      %693 = vmatprep.subr.mxu0 0.0
      %694 = vmatpush1.msra.mxu0 0.0
      %695 = vmatprep.subr.mxu0 0.0
      %696 = vmatpush1.msra.mxu0 0.0
      %697 = vmatprep.subr.mxu0 0.0
      %698 = vmatpush1.msra.mxu0 0.0
      %699 = vmatprep.subr.mxu0 0.0
      %700 = vmatpush1.msra.mxu0 0.0
      %701 = vmatprep.subr.mxu0 0.0
      %702 = vmatpush1.msra.mxu0 0.0
      %703 = vmatprep.subr.mxu0 0.0
      %704 = vmatpush1.msra.mxu0 0.0
      %705 = vmatprep.subr.mxu0 0.0
      %706 = vmatpush1.msra.mxu0 0.0
      %707 = vmatprep.subr.mxu0 0.0
      %708 = vmatpush1.msra.mxu0 0.0
      %709 = vmatprep.subr.mxu0 0.0
      %710 = vmatpush1.msra.mxu0 0.0
      %711 = vmatprep.mubr.f32.mxu0 0.0
      %712 = vmatmul.mubr.f32.gmra.mrb[0].mxu0 %v624
      %v713 = vpop.f32.mrb[0].mxu0
      %v714 = vadd.f32 %v621, %v713
      %v715 = vpop.f32.mrb[0].mxu0
      %716 = vmatprep.mubr.f32.mxu0 0.0
      %717 = vmatmul.mubr.f32.gmra.mrb[0].mxu0 %v627
      %v718 = vpop.f32.mrb[0].mxu0
      %v719 = vadd.f32 %v621, %v718
      %v720 = vpop.f32.mrb[0].mxu0
      %721 = vmatprep.mubr.f32.mxu0 0.0
      %722 = vmatmul.mubr.f32.gmra.mrb[0].mxu0 %v630
      %v723 = vpop.f32.mrb[0].mxu0
      %v724 = vadd.f32 %v621, %v723
      %v725 = vpop.f32.mrb[0].mxu0
      %726 = vmatprep.mubr.f32.mxu0 0.0
      %727 = vmatmul.mubr.f32.gmra.mrb[0].mxu0 %v633
      %v728 = vpop.f32.mrb[0].mxu0
      %v729 = vadd.f32 %v621, %v728
      %v730 = vpop.f32.mrb[0].mxu0
      %731 = vmatprep.mubr.f32.mxu0 0.0
      %732 = vmatmul.mubr.f32.gmra.mrb[0].mxu0 %v636
      %v733 = vpop.f32.mrb[0].mxu0
      %v734 = vadd.f32 %v621, %v733
      %v735 = vpop.f32.mrb[0].mxu0
      %736 = vmatprep.mubr.f32.mxu0 0.0
      %737 = vmatmul.mubr.f32.gmra.mrb[0].mxu0 %v639
      %v738 = vpop.f32.mrb[0].mxu0
      %v739 = vadd.f32 %v621, %v738
      %v740 = vpop.f32.mrb[0].mxu0
      %741 = vmatprep.mubr.f32.mxu0 0.0
      %742 = vmatmul.mubr.f32.gmra.mrb[0].mxu0 %v642
      %v743 = vpop.f32.mrb[0].mxu0
      %v744 = vadd.f32 %v621, %v743
      %v745 = vpop.f32.mrb[0].mxu0
      %746 = vmatprep.mubr.f32.mxu0 0.0
      %747 = vmatmul.mubr.f32.gmra.mrb[0].mxu0 %v645
      %v748 = vpop.f32.mrb[0].mxu0
      %v749 = vadd.f32 %v621, %v748
      %v750 = vpop.f32.mrb[0].mxu0
      %751 = vdwg.mxu0
      %v752 = vmul.f32 %v714, 0.35355338
      %v753 = vmul.f32 %v719, 0.35355338
      %v754 = vmul.f32 %v724, 0.35355338
      %v755 = vmul.f32 %v729, 0.35355338
      %v756 = vmul.f32 %v734, 0.35355338
      %v757 = vmul.f32 %v739, 0.35355338
      %v758 = vmul.f32 %v744, 0.35355338
      %v759 = vmul.f32 %v749, 0.35355338
      %v760 = vld [vmem:[%s1] sm:$0xff]
      %v761 = vld [vmem:[%s1 + $0x8] sm:$0xff]
      %v762 = vld [vmem:[%s1 + $0x10] sm:$0xff]
      %v763 = vld [vmem:[%s1 + $0x18] sm:$0xff]
      %v764 = vld [vmem:[%s1 + $0x20] sm:$0xff]
      %v765 = vld [vmem:[%s1 + $0x28] sm:$0xff]
      %v766 = vld [vmem:[%s1 + $0x30] sm:$0xff]
      %v767 = vld [vmem:[%s1 + $0x38] sm:$0xff]
      %776 = vrot.lane.b32.xlu0 %v714, 96
      %v777 = vpop.permute.xlu0 %776
      %778 = vrot.lane.b32.xlu0 %v719, 96
      %v779 = vpop.permute.xlu0 %778
      %780 = vrot.lane.b32.xlu0 %v724, 96
      %v781 = vpop.permute.xlu0 %780
      %782 = vrot.lane.b32.xlu0 %v729, 96
      %v783 = vpop.permute.xlu0 %782
      %784 = vrot.lane.b32.xlu0 %v734, 96
      %v785 = vpop.permute.xlu0 %784
      %786 = vrot.lane.b32.xlu0 %v739, 96
      %v787 = vpop.permute.xlu0 %786
      %788 = vrot.lane.b32.xlu0 %v744, 96
      %v789 = vpop.permute.xlu0 %788
      %790 = vrot.lane.b32.xlu0 %v749, 96
      %v791 = vpop.permute.xlu0 %790
      %vm792 = vcmask 64512
      %v794 = vsel %vm792, %v752, 0
      %v797 = vsel %vm792, %v753, 0
      %v800 = vsel %vm792, %v754, 0
      %v803 = vsel %vm792, %v755, 0
      %v806 = vsel %vm792, %v756, 0
      %v809 = vsel %vm792, %v757, 0
      %v812 = vsel %vm792, %v758, 0
      %v815 = vsel %vm792, %v759, 0
      %v817 = vsel %vm792, %v777, 0
      %v819 = vsel %vm792, %v779, 0
      %v821 = vsel %vm792, %v781, 0
      %v823 = vsel %vm792, %v783, 0
      %v825 = vsel %vm792, %v785, 0
      %v827 = vsel %vm792, %v787, 0
      %v829 = vsel %vm792, %v789, 0
      %v831 = vsel %vm792, %v791, 0
      %833 = vmatprep.subr.mxu0 0.0
      %834 = vmatpush1.xpose.msra.mxu0 %v817
      %835 = vmatprep.subr.mxu0 0.0
      %836 = vmatpush1.xpose.msra.mxu0 %v819
      %837 = vmatprep.subr.mxu0 0.0
      %838 = vmatpush1.xpose.msra.mxu0 %v821
      %839 = vmatprep.subr.mxu0 0.0
      %840 = vmatpush1.xpose.msra.mxu0 %v823
      %841 = vmatprep.subr.mxu0 0.0
      %842 = vmatpush1.xpose.msra.mxu0 %v825
      %843 = vmatprep.subr.mxu0 0.0
      %844 = vmatpush1.xpose.msra.mxu0 %v827
      %845 = vmatprep.subr.mxu0 0.0
      %846 = vmatpush1.xpose.msra.mxu0 %v829
      %847 = vmatprep.subr.mxu0 0.0
      %848 = vmatpush1.xpose.msra.mxu0 %v831
      %849 = vmatprep.subr.mxu0 0.0
      %850 = vmatpush1.xpose.msra.mxu0 0.0
      %851 = vmatprep.subr.mxu0 0.0
      %852 = vmatpush1.xpose.msra.mxu0 0.0
      %853 = vmatprep.subr.mxu0 0.0
      %854 = vmatpush1.xpose.msra.mxu0 0.0
      %855 = vmatprep.subr.mxu0 0.0
      %856 = vmatpush1.xpose.msra.mxu0 0.0
      %857 = vmatprep.subr.mxu0 0.0
      %858 = vmatpush1.xpose.msra.mxu0 0.0
      %859 = vmatprep.subr.mxu0 0.0
      %860 = vmatpush1.xpose.msra.mxu0 0.0
      %861 = vmatprep.subr.mxu0 0.0
      %862 = vmatpush1.xpose.msra.mxu0 0.0
      %863 = vmatprep.subr.mxu0 0.0
      %864 = vmatpush1.xpose.msra.mxu0 0.0
      %865 = vmatprep.subr.mxu0 0.0
      %866 = vmatpush1.xpose.msra.mxu0 0.0
      %867 = vmatprep.subr.mxu0 0.0
      %868 = vmatpush1.xpose.msra.mxu0 0.0
      %869 = vmatprep.subr.mxu0 0.0
      %870 = vmatpush1.xpose.msra.mxu0 0.0
      %871 = vmatprep.subr.mxu0 0.0
      %872 = vmatpush1.xpose.msra.mxu0 0.0
      %873 = vmatprep.subr.mxu0 0.0
      %874 = vmatpush1.xpose.msra.mxu0 0.0
      %875 = vmatprep.subr.mxu0 0.0
      %876 = vmatpush1.xpose.msra.mxu0 0.0
      %877 = vmatprep.subr.mxu0 0.0
      %878 = vmatpush1.xpose.msra.mxu0 0.0
      %879 = vmatprep.subr.mxu0 0.0
      %880 = vmatpush1.xpose.msra.mxu0 0.0
      %881 = vmatprep.subr.mxu0 0.0
      %882 = vmatpush1.xpose.msra.mxu0 0.0
      %883 = vmatprep.subr.mxu0 0.0
      %884 = vmatpush1.xpose.msra.mxu0 0.0
      %885 = vmatprep.subr.mxu0 0.0
      %886 = vmatpush1.xpose.msra.mxu0 0.0
      %887 = vmatprep.subr.mxu0 0.0
      %888 = vmatpush1.xpose.msra.mxu0 0.0
      %889 = vmatprep.subr.mxu0 0.0
      %890 = vmatpush1.xpose.msra.mxu0 0.0
      %891 = vmatprep.subr.mxu0 0.0
      %892 = vmatpush1.xpose.msra.mxu0 0.0
      %893 = vmatprep.subr.mxu0 0.0
      %894 = vmatpush1.xpose.msra.mxu0 0.0
      %895 = vmatprep.subr.mxu0 0.0
      %896 = vmatpush1.xpose.msra.mxu0 0.0
      %897 = vmatprep.mubr.f32.mxu0 0.0
      %898 = vmatmul.mubr.f32.gmra.mrb[0].mxu0 %v794
      %v899 = vpop.f32.mrb[0].mxu0
      %v900 = vadd.f32 %v760, %v899
      %v901 = vpop.f32.mrb[0].mxu0
      %902 = vmatprep.mubr.f32.mxu0 0.0
      %903 = vmatmul.mubr.f32.gmra.mrb[0].mxu0 %v797
      %v904 = vpop.f32.mrb[0].mxu0
      %v905 = vadd.f32 %v761, %v904
      %v906 = vpop.f32.mrb[0].mxu0
      %907 = vmatprep.mubr.f32.mxu0 0.0
      %908 = vmatmul.mubr.f32.gmra.mrb[0].mxu0 %v800
      %v909 = vpop.f32.mrb[0].mxu0
      %v910 = vadd.f32 %v762, %v909
      %v911 = vpop.f32.mrb[0].mxu0
      %912 = vmatprep.mubr.f32.mxu0 0.0
      %913 = vmatmul.mubr.f32.gmra.mrb[0].mxu0 %v803
      %v914 = vpop.f32.mrb[0].mxu0
      %v915 = vadd.f32 %v763, %v914
      %v916 = vpop.f32.mrb[0].mxu0
      %917 = vmatprep.mubr.f32.mxu0 0.0
      %918 = vmatmul.mubr.f32.gmra.mrb[0].mxu0 %v806
      %v919 = vpop.f32.mrb[0].mxu0
      %v920 = vadd.f32 %v764, %v919
      %v921 = vpop.f32.mrb[0].mxu0
      %922 = vmatprep.mubr.f32.mxu0 0.0
      %923 = vmatmul.mubr.f32.gmra.mrb[0].mxu0 %v809
      %v924 = vpop.f32.mrb[0].mxu0
      %v925 = vadd.f32 %v765, %v924
      %v926 = vpop.f32.mrb[0].mxu0
      %927 = vmatprep.mubr.f32.mxu0 0.0
      %928 = vmatmul.mubr.f32.gmra.mrb[0].mxu0 %v812
      %v929 = vpop.f32.mrb[0].mxu0
      %v930 = vadd.f32 %v766, %v929
      %v931 = vpop.f32.mrb[0].mxu0
      %932 = vmatprep.mubr.f32.mxu0 0.0
      %933 = vmatmul.mubr.f32.gmra.mrb[0].mxu0 %v815
      %v934 = vpop.f32.mrb[0].mxu0
      %v935 = vadd.f32 %v767, %v934
      %v936 = vpop.f32.mrb[0].mxu0
      %937 = vdwg.mxu0
      %vm938 = vcmask 523264
      %v939 = vsel %vm938, %v900, -inf
      %940 = vmax.xlane.f32.xlu0 %v939
      %v941 = vpop.xlane.xlu0 %940
      %v942 = vsel %vm938, %v905, -inf
      %943 = vmax.xlane.f32.xlu0 %v942
      %v944 = vpop.xlane.xlu0 %943
      %v945 = vsel %vm938, %v910, -inf
      %946 = vmax.xlane.f32.xlu0 %v945
      %v947 = vpop.xlane.xlu0 %946
      %v948 = vsel %vm938, %v915, -inf
      %949 = vmax.xlane.f32.xlu0 %v948
      %v950 = vpop.xlane.xlu0 %949
      %v951 = vsel %vm938, %v920, -inf
      %952 = vmax.xlane.f32.xlu0 %v951
      %v953 = vpop.xlane.xlu0 %952
      %v954 = vsel %vm938, %v925, -inf
      %955 = vmax.xlane.f32.xlu0 %v954
      %v956 = vpop.xlane.xlu0 %955
      %v957 = vsel %vm938, %v930, -inf
      %958 = vmax.xlane.f32.xlu0 %v957
      %v959 = vpop.xlane.xlu0 %958
      %v960 = vsel %vm938, %v935, -inf
      %961 = vmax.xlane.f32.xlu0 %v960
      %v962 = vpop.xlane.xlu0 %961
      %v963 = vsub.f32 %v900, %v941
      %v964 = vsub.f32 %v905, %v944
      %v965 = vsub.f32 %v910, %v947
      %v966 = vsub.f32 %v915, %v950
      %v967 = vsub.f32 %v920, %v953
      %v968 = vsub.f32 %v925, %v956
      %v969 = vsub.f32 %v930, %v959
      %v970 = vsub.f32 %v935, %v962
      %v971 = vmul.f32 %v963, 1.442695
      %v972 = vpow.pop %v971
      %v973 = vmul.f32 %v964, 1.442695
      %v974 = vpow.pop %v973
      %v975 = vmul.f32 %v965, 1.442695
      %v976 = vpow.pop %v975
      %v977 = vmul.f32 %v966, 1.442695
      %v978 = vpow.pop %v977
      %v979 = vmul.f32 %v967, 1.442695
      %v980 = vpow.pop %v979
      %v981 = vmul.f32 %v968, 1.442695
      %v982 = vpow.pop %v981
      %v983 = vmul.f32 %v969, 1.442695
      %v984 = vpow.pop %v983
      %v985 = vmul.f32 %v970, 1.442695
      %v986 = vpow.pop %v985
      %v987 = vsel %vm938, %v972, 0.0
      %988 = vadd.xlane.f32.xlu0 %v987
      %v989 = vpop.xlane.xlu0 %988
      %v990 = vsel %vm938, %v974, 0.0
      %991 = vadd.xlane.f32.xlu0 %v990
      %v992 = vpop.xlane.xlu0 %991
      %v993 = vsel %vm938, %v976, 0.0
      %994 = vadd.xlane.f32.xlu0 %v993
      %v995 = vpop.xlane.xlu0 %994
      %v996 = vsel %vm938, %v978, 0.0
      %997 = vadd.xlane.f32.xlu0 %v996
      %v998 = vpop.xlane.xlu0 %997
      %v999 = vsel %vm938, %v980, 0.0
      %1000 = vadd.xlane.f32.xlu0 %v999
      %v1001 = vpop.xlane.xlu0 %1000
      %v1002 = vsel %vm938, %v982, 0.0
      %1003 = vadd.xlane.f32.xlu0 %v1002
      %v1004 = vpop.xlane.xlu0 %1003
      %v1005 = vsel %vm938, %v984, 0.0
      %1006 = vadd.xlane.f32.xlu0 %v1005
      %v1007 = vpop.xlane.xlu0 %1006
      %v1008 = vsel %vm938, %v986, 0.0
      %1009 = vadd.xlane.f32.xlu0 %v1008
      %v1010 = vpop.xlane.xlu0 %1009
      %v1011 = vrcp.pop %v989
      %v1012 = vrcp.pop %v992
      %v1013 = vrcp.pop %v995
      %v1014 = vrcp.pop %v998
      %v1015 = vrcp.pop %v1001
      %v1016 = vrcp.pop %v1004
      %v1017 = vrcp.pop %v1007
      %v1018 = vrcp.pop %v1010
      %v1019 = vmul.f32 %v972, %v1011
      %v1020 = vmul.f32 %v974, %v1012
      %v1021 = vmul.f32 %v976, %v1013
      %v1022 = vmul.f32 %v978, %v1014
      %v1023 = vmul.f32 %v980, %v1015
      %v1024 = vmul.f32 %v982, %v1016
      %v1025 = vmul.f32 %v984, %v1017
      %v1026 = vmul.f32 %v986, %v1018
      %1027 = vrot.lane.b32.xlu0 %v714, 64
      %v1028 = vpop.permute.xlu0 %1027
      %1029 = vrot.lane.b32.xlu0 %v719, 64
      %v1030 = vpop.permute.xlu0 %1029
      %1031 = vrot.lane.b32.xlu0 %v724, 64
      %v1032 = vpop.permute.xlu0 %1031
      %1033 = vrot.lane.b32.xlu0 %v729, 64
      %v1034 = vpop.permute.xlu0 %1033
      %1035 = vrot.lane.b32.xlu0 %v734, 64
      %v1036 = vpop.permute.xlu0 %1035
      %1037 = vrot.lane.b32.xlu0 %v739, 64
      %v1038 = vpop.permute.xlu0 %1037
      %1039 = vrot.lane.b32.xlu0 %v744, 64
      %v1040 = vpop.permute.xlu0 %1039
      %1041 = vrot.lane.b32.xlu0 %v749, 64
      %v1042 = vpop.permute.xlu0 %1041
      %v1052 = vsel %vm938, %v1019, 0
      %v1055 = vsel %vm938, %v1020, 0
      %v1058 = vsel %vm938, %v1021, 0
      %v1061 = vsel %vm938, %v1022, 0
      %v1064 = vsel %vm938, %v1023, 0
      %v1067 = vsel %vm938, %v1024, 0
      %v1070 = vsel %vm938, %v1025, 0
      %v1073 = vsel %vm938, %v1026, 0
      %1075 = vmatprep.subr.mxu0 0.0
      %1076 = vmatpush1.msra.mxu0 %v1028
      %1077 = vmatprep.subr.mxu0 0.0
      %1078 = vmatpush1.msra.mxu0 %v1030
      %1079 = vmatprep.subr.mxu0 0.0
      %1080 = vmatpush1.msra.mxu0 %v1032
      %1081 = vmatprep.subr.mxu0 0.0
      %1082 = vmatpush1.msra.mxu0 %v1034
      %1083 = vmatprep.subr.mxu0 0.0
      %1084 = vmatpush1.msra.mxu0 %v1036
      %1085 = vmatprep.subr.mxu0 0.0
      %1086 = vmatpush1.msra.mxu0 %v1038
      %1087 = vmatprep.subr.mxu0 0.0
      %1088 = vmatpush1.msra.mxu0 %v1040
      %1089 = vmatprep.subr.mxu0 0.0
      %1090 = vmatpush1.msra.mxu0 %v1042
      %1091 = vmatprep.subr.mxu0 0.0
      %1092 = vmatpush1.msra.mxu0 0.0
      %1093 = vmatprep.subr.mxu0 0.0
      %1094 = vmatpush1.msra.mxu0 0.0
      %1095 = vmatprep.subr.mxu0 0.0
      %1096 = vmatpush1.msra.mxu0 0.0
      %1097 = vmatprep.subr.mxu0 0.0
      %1098 = vmatpush1.msra.mxu0 0.0
      %1099 = vmatprep.subr.mxu0 0.0
      %1100 = vmatpush1.msra.mxu0 0.0
      %1101 = vmatprep.subr.mxu0 0.0
      %1102 = vmatpush1.msra.mxu0 0.0
      %1103 = vmatprep.subr.mxu0 0.0
      %1104 = vmatpush1.msra.mxu0 0.0
      %1105 = vmatprep.subr.mxu0 0.0
      %1106 = vmatpush1.msra.mxu0 0.0
      %1107 = vmatprep.subr.mxu0 0.0
      %1108 = vmatpush1.msra.mxu0 0.0
      %1109 = vmatprep.subr.mxu0 0.0
      %1110 = vmatpush1.msra.mxu0 0.0
      %1111 = vmatprep.subr.mxu0 0.0
      %1112 = vmatpush1.msra.mxu0 0.0
      %1113 = vmatprep.subr.mxu0 0.0
      %1114 = vmatpush1.msra.mxu0 0.0
      %1115 = vmatprep.subr.mxu0 0.0
      %1116 = vmatpush1.msra.mxu0 0.0
      %1117 = vmatprep.subr.mxu0 0.0
      %1118 = vmatpush1.msra.mxu0 0.0
      %1119 = vmatprep.subr.mxu0 0.0
      %1120 = vmatpush1.msra.mxu0 0.0
      %1121 = vmatprep.subr.mxu0 0.0
      %1122 = vmatpush1.msra.mxu0 0.0
      %1123 = vmatprep.subr.mxu0 0.0
      %1124 = vmatpush1.msra.mxu0 0.0
      %1125 = vmatprep.subr.mxu0 0.0
      %1126 = vmatpush1.msra.mxu0 0.0
      %1127 = vmatprep.subr.mxu0 0.0
      %1128 = vmatpush1.msra.mxu0 0.0
      %1129 = vmatprep.subr.mxu0 0.0
      %1130 = vmatpush1.msra.mxu0 0.0
      %1131 = vmatprep.subr.mxu0 0.0
      %1132 = vmatpush1.msra.mxu0 0.0
      %1133 = vmatprep.subr.mxu0 0.0
      %1134 = vmatpush1.msra.mxu0 0.0
      %1135 = vmatprep.subr.mxu0 0.0
      %1136 = vmatpush1.msra.mxu0 0.0
      %1137 = vmatprep.subr.mxu0 0.0
      %1138 = vmatpush1.msra.mxu0 0.0
      %1139 = vmatprep.mubr.f32.mxu0 0.0
      %1140 = vmatmul.mubr.f32.gmra.mrb[0].mxu0 %v1052
      %v1141 = vpop.f32.mrb[0].mxu0
      %v1142 = vadd.f32 0.0, %v1141
      %v1143 = vpop.f32.mrb[0].mxu0
      %1144 = vmatprep.mubr.f32.mxu0 0.0
      %1145 = vmatmul.mubr.f32.gmra.mrb[0].mxu0 %v1055
      %v1146 = vpop.f32.mrb[0].mxu0
      %v1147 = vadd.f32 0.0, %v1146
      %v1148 = vpop.f32.mrb[0].mxu0
      %1149 = vmatprep.mubr.f32.mxu0 0.0
      %1150 = vmatmul.mubr.f32.gmra.mrb[0].mxu0 %v1058
      %v1151 = vpop.f32.mrb[0].mxu0
      %v1152 = vadd.f32 0.0, %v1151
      %v1153 = vpop.f32.mrb[0].mxu0
      %1154 = vmatprep.mubr.f32.mxu0 0.0
      %1155 = vmatmul.mubr.f32.gmra.mrb[0].mxu0 %v1061
      %v1156 = vpop.f32.mrb[0].mxu0
      %v1157 = vadd.f32 0.0, %v1156
      %v1158 = vpop.f32.mrb[0].mxu0
      %1159 = vmatprep.mubr.f32.mxu0 0.0
      %1160 = vmatmul.mubr.f32.gmra.mrb[0].mxu0 %v1064
      %v1161 = vpop.f32.mrb[0].mxu0
      %v1162 = vadd.f32 0.0, %v1161
      %v1163 = vpop.f32.mrb[0].mxu0
      %1164 = vmatprep.mubr.f32.mxu0 0.0
      %1165 = vmatmul.mubr.f32.gmra.mrb[0].mxu0 %v1067
      %v1166 = vpop.f32.mrb[0].mxu0
      %v1167 = vadd.f32 0.0, %v1166
      %v1168 = vpop.f32.mrb[0].mxu0
      %1169 = vmatprep.mubr.f32.mxu0 0.0
      %1170 = vmatmul.mubr.f32.gmra.mrb[0].mxu0 %v1070
      %v1171 = vpop.f32.mrb[0].mxu0
      %v1172 = vadd.f32 0.0, %v1171
      %v1173 = vpop.f32.mrb[0].mxu0
      %1174 = vmatprep.mubr.f32.mxu0 0.0
      %1175 = vmatmul.mubr.f32.gmra.mrb[0].mxu0 %v1073
      %v1176 = vpop.f32.mrb[0].mxu0
      %v1177 = vadd.f32 0.0, %v1176
      %v1178 = vpop.f32.mrb[0].mxu0
      %1179 = vdwg.mxu0
      %v1180 = vld [vmem:[%s4] sm:$0xff]
      %s1181 = scalar_lea.vmem %s1, 64
      %v1182 = vld [vmem:[%s1181] sm:$0xff]
      %v1183 = vld [vmem:[%s1181 + $0x8] sm:$0xff]
      %v1184 = vld [vmem:[%s1181 + $0x10] sm:$0xff]
      %v1185 = vld [vmem:[%s1181 + $0x18] sm:$0xff]
      %v1186 = vld [vmem:[%s1181 + $0x20] sm:$0xff]
      %v1187 = vld [vmem:[%s1181 + $0x28] sm:$0xff]
      %v1188 = vld [vmem:[%s1181 + $0x30] sm:$0xff]
      %v1189 = vld [vmem:[%s1181 + $0x38] sm:$0xff]
      %1190 = vrot.lane.b32.xlu0 %v752, 120
      %v1191 = vpop.permute.xlu0 %1190
      %1192 = vrot.lane.b32.xlu0 %v753, 120
      %v1193 = vpop.permute.xlu0 %1192
      %1194 = vrot.lane.b32.xlu0 %v754, 120
      %v1195 = vpop.permute.xlu0 %1194
      %1196 = vrot.lane.b32.xlu0 %v755, 120
      %v1197 = vpop.permute.xlu0 %1196
      %1198 = vrot.lane.b32.xlu0 %v756, 120
      %v1199 = vpop.permute.xlu0 %1198
      %1200 = vrot.lane.b32.xlu0 %v757, 120
      %v1201 = vpop.permute.xlu0 %1200
      %1202 = vrot.lane.b32.xlu0 %v758, 120
      %v1203 = vpop.permute.xlu0 %1202
      %1204 = vrot.lane.b32.xlu0 %v759, 120
      %v1205 = vpop.permute.xlu0 %1204
      %1206 = vrot.lane.b32.xlu0 %v714, 88
      %v1207 = vpop.permute.xlu0 %1206
      %1208 = vrot.lane.b32.xlu0 %v719, 88
      %v1209 = vpop.permute.xlu0 %1208
      %1210 = vrot.lane.b32.xlu0 %v724, 88
      %v1211 = vpop.permute.xlu0 %1210
      %1212 = vrot.lane.b32.xlu0 %v729, 88
      %v1213 = vpop.permute.xlu0 %1212
      %1214 = vrot.lane.b32.xlu0 %v734, 88
      %v1215 = vpop.permute.xlu0 %1214
      %1216 = vrot.lane.b32.xlu0 %v739, 88
      %v1217 = vpop.permute.xlu0 %1216
      %1218 = vrot.lane.b32.xlu0 %v744, 88
      %v1219 = vpop.permute.xlu0 %1218
      %1220 = vrot.lane.b32.xlu0 %v749, 88
      %v1221 = vpop.permute.xlu0 %1220
      %v1222 = vsel %vm792, %v1191, 0
      %v1224 = vsel %vm792, %v1193, 0
      %v1226 = vsel %vm792, %v1195, 0
      %v1228 = vsel %vm792, %v1197, 0
      %v1230 = vsel %vm792, %v1199, 0
      %v1232 = vsel %vm792, %v1201, 0
      %v1234 = vsel %vm792, %v1203, 0
      %v1236 = vsel %vm792, %v1205, 0
      %v1238 = vsel %vm792, %v1207, 0
      %v1240 = vsel %vm792, %v1209, 0
      %v1242 = vsel %vm792, %v1211, 0
      %v1244 = vsel %vm792, %v1213, 0
      %v1246 = vsel %vm792, %v1215, 0
      %v1248 = vsel %vm792, %v1217, 0
      %v1250 = vsel %vm792, %v1219, 0
      %v1252 = vsel %vm792, %v1221, 0
      %1254 = vmatprep.subr.mxu0 0.0
      %1255 = vmatpush1.xpose.msra.mxu0 %v1238
      %1256 = vmatprep.subr.mxu0 0.0
      %1257 = vmatpush1.xpose.msra.mxu0 %v1240
      %1258 = vmatprep.subr.mxu0 0.0
      %1259 = vmatpush1.xpose.msra.mxu0 %v1242
      %1260 = vmatprep.subr.mxu0 0.0
      %1261 = vmatpush1.xpose.msra.mxu0 %v1244
      %1262 = vmatprep.subr.mxu0 0.0
      %1263 = vmatpush1.xpose.msra.mxu0 %v1246
      %1264 = vmatprep.subr.mxu0 0.0
      %1265 = vmatpush1.xpose.msra.mxu0 %v1248
      %1266 = vmatprep.subr.mxu0 0.0
      %1267 = vmatpush1.xpose.msra.mxu0 %v1250
      %1268 = vmatprep.subr.mxu0 0.0
      %1269 = vmatpush1.xpose.msra.mxu0 %v1252
      %1270 = vmatprep.subr.mxu0 0.0
      %1271 = vmatpush1.xpose.msra.mxu0 0.0
      %1272 = vmatprep.subr.mxu0 0.0
      %1273 = vmatpush1.xpose.msra.mxu0 0.0
      %1274 = vmatprep.subr.mxu0 0.0
      %1275 = vmatpush1.xpose.msra.mxu0 0.0
      %1276 = vmatprep.subr.mxu0 0.0
      %1277 = vmatpush1.xpose.msra.mxu0 0.0
      %1278 = vmatprep.subr.mxu0 0.0
      %1279 = vmatpush1.xpose.msra.mxu0 0.0
      %1280 = vmatprep.subr.mxu0 0.0
      %1281 = vmatpush1.xpose.msra.mxu0 0.0
      %1282 = vmatprep.subr.mxu0 0.0
      %1283 = vmatpush1.xpose.msra.mxu0 0.0
      %1284 = vmatprep.subr.mxu0 0.0
      %1285 = vmatpush1.xpose.msra.mxu0 0.0
      %1286 = vmatprep.subr.mxu0 0.0
      %1287 = vmatpush1.xpose.msra.mxu0 0.0
      %1288 = vmatprep.subr.mxu0 0.0
      %1289 = vmatpush1.xpose.msra.mxu0 0.0
      %1290 = vmatprep.subr.mxu0 0.0
      %1291 = vmatpush1.xpose.msra.mxu0 0.0
      %1292 = vmatprep.subr.mxu0 0.0
      %1293 = vmatpush1.xpose.msra.mxu0 0.0
      %1294 = vmatprep.subr.mxu0 0.0
      %1295 = vmatpush1.xpose.msra.mxu0 0.0
      %1296 = vmatprep.subr.mxu0 0.0
      %1297 = vmatpush1.xpose.msra.mxu0 0.0
      %1298 = vmatprep.subr.mxu0 0.0
      %1299 = vmatpush1.xpose.msra.mxu0 0.0
      %1300 = vmatprep.subr.mxu0 0.0
      %1301 = vmatpush1.xpose.msra.mxu0 0.0
      %1302 = vmatprep.subr.mxu0 0.0
      %1303 = vmatpush1.xpose.msra.mxu0 0.0
      %1304 = vmatprep.subr.mxu0 0.0
      %1305 = vmatpush1.xpose.msra.mxu0 0.0
      %1306 = vmatprep.subr.mxu0 0.0
      %1307 = vmatpush1.xpose.msra.mxu0 0.0
      %1308 = vmatprep.subr.mxu0 0.0
      %1309 = vmatpush1.xpose.msra.mxu0 0.0
      %1310 = vmatprep.subr.mxu0 0.0
      %1311 = vmatpush1.xpose.msra.mxu0 0.0
      %1312 = vmatprep.subr.mxu0 0.0
      %1313 = vmatpush1.xpose.msra.mxu0 0.0
      %1314 = vmatprep.subr.mxu0 0.0
      %1315 = vmatpush1.xpose.msra.mxu0 0.0
      %1316 = vmatprep.subr.mxu0 0.0
      %1317 = vmatpush1.xpose.msra.mxu0 0.0
      %1318 = vmatprep.mubr.f32.mxu0 0.0
      %1319 = vmatmul.mubr.f32.gmra.mrb[0].mxu0 %v1222
      %v1320 = vpop.f32.mrb[0].mxu0
      %v1321 = vadd.f32 %v1182, %v1320
      %v1322 = vpop.f32.mrb[0].mxu0
      %1323 = vmatprep.mubr.f32.mxu0 0.0
      %1324 = vmatmul.mubr.f32.gmra.mrb[0].mxu0 %v1224
      %v1325 = vpop.f32.mrb[0].mxu0
      %v1326 = vadd.f32 %v1183, %v1325
      %v1327 = vpop.f32.mrb[0].mxu0
      %1328 = vmatprep.mubr.f32.mxu0 0.0
      %1329 = vmatmul.mubr.f32.gmra.mrb[0].mxu0 %v1226
      %v1330 = vpop.f32.mrb[0].mxu0
      %v1331 = vadd.f32 %v1184, %v1330
      %v1332 = vpop.f32.mrb[0].mxu0
      %1333 = vmatprep.mubr.f32.mxu0 0.0
      %1334 = vmatmul.mubr.f32.gmra.mrb[0].mxu0 %v1228
      %v1335 = vpop.f32.mrb[0].mxu0
      %v1336 = vadd.f32 %v1185, %v1335
      %v1337 = vpop.f32.mrb[0].mxu0
      %1338 = vmatprep.mubr.f32.mxu0 0.0
      %1339 = vmatmul.mubr.f32.gmra.mrb[0].mxu0 %v1230
      %v1340 = vpop.f32.mrb[0].mxu0
      %v1341 = vadd.f32 %v1186, %v1340
      %v1342 = vpop.f32.mrb[0].mxu0
      %1343 = vmatprep.mubr.f32.mxu0 0.0
      %1344 = vmatmul.mubr.f32.gmra.mrb[0].mxu0 %v1232
      %v1345 = vpop.f32.mrb[0].mxu0
      %v1346 = vadd.f32 %v1187, %v1345
      %v1347 = vpop.f32.mrb[0].mxu0
      %1348 = vmatprep.mubr.f32.mxu0 0.0
      %1349 = vmatmul.mubr.f32.gmra.mrb[0].mxu0 %v1234
      %v1350 = vpop.f32.mrb[0].mxu0
      %v1351 = vadd.f32 %v1188, %v1350
      %v1352 = vpop.f32.mrb[0].mxu0
      %1353 = vmatprep.mubr.f32.mxu0 0.0
      %1354 = vmatmul.mubr.f32.gmra.mrb[0].mxu0 %v1236
      %v1355 = vpop.f32.mrb[0].mxu0
      %v1356 = vadd.f32 %v1189, %v1355
      %v1357 = vpop.f32.mrb[0].mxu0
      %1358 = vdwg.mxu0
      %v1359 = vsel %vm938, %v1321, -inf
      %1360 = vmax.xlane.f32.xlu0 %v1359
      %v1361 = vpop.xlane.xlu0 %1360
      %v1362 = vsel %vm938, %v1326, -inf
      %1363 = vmax.xlane.f32.xlu0 %v1362
      %v1364 = vpop.xlane.xlu0 %1363
      %v1365 = vsel %vm938, %v1331, -inf
      %1366 = vmax.xlane.f32.xlu0 %v1365
      %v1367 = vpop.xlane.xlu0 %1366
      %v1368 = vsel %vm938, %v1336, -inf
      %1369 = vmax.xlane.f32.xlu0 %v1368
      %v1370 = vpop.xlane.xlu0 %1369
      %v1371 = vsel %vm938, %v1341, -inf
      %1372 = vmax.xlane.f32.xlu0 %v1371
      %v1373 = vpop.xlane.xlu0 %1372
      %v1374 = vsel %vm938, %v1346, -inf
      %1375 = vmax.xlane.f32.xlu0 %v1374
      %v1376 = vpop.xlane.xlu0 %1375
      %v1377 = vsel %vm938, %v1351, -inf
      %1378 = vmax.xlane.f32.xlu0 %v1377
      %v1379 = vpop.xlane.xlu0 %1378
      %v1380 = vsel %vm938, %v1356, -inf
      %1381 = vmax.xlane.f32.xlu0 %v1380
      %v1382 = vpop.xlane.xlu0 %1381
      %v1383 = vsub.f32 %v1321, %v1361
      %v1384 = vsub.f32 %v1326, %v1364
      %v1385 = vsub.f32 %v1331, %v1367
      %v1386 = vsub.f32 %v1336, %v1370
      %v1387 = vsub.f32 %v1341, %v1373
      %v1388 = vsub.f32 %v1346, %v1376
      %v1389 = vsub.f32 %v1351, %v1379
      %v1390 = vsub.f32 %v1356, %v1382
      %v1391 = vmul.f32 %v1383, 1.442695
      %v1392 = vpow.pop %v1391
      %v1393 = vmul.f32 %v1384, 1.442695
      %v1394 = vpow.pop %v1393
      %v1395 = vmul.f32 %v1385, 1.442695
      %v1396 = vpow.pop %v1395
      %v1397 = vmul.f32 %v1386, 1.442695
      %v1398 = vpow.pop %v1397
      %v1399 = vmul.f32 %v1387, 1.442695
      %v1400 = vpow.pop %v1399
      %v1401 = vmul.f32 %v1388, 1.442695
      %v1402 = vpow.pop %v1401
      %v1403 = vmul.f32 %v1389, 1.442695
      %v1404 = vpow.pop %v1403
      %v1405 = vmul.f32 %v1390, 1.442695
      %v1406 = vpow.pop %v1405
      %v1407 = vsel %vm938, %v1392, 0.0
      %1408 = vadd.xlane.f32.xlu0 %v1407
      %v1409 = vpop.xlane.xlu0 %1408
      %v1410 = vsel %vm938, %v1394, 0.0
      %1411 = vadd.xlane.f32.xlu0 %v1410
      %v1412 = vpop.xlane.xlu0 %1411
      %v1413 = vsel %vm938, %v1396, 0.0
      %1414 = vadd.xlane.f32.xlu0 %v1413
      %v1415 = vpop.xlane.xlu0 %1414
      %v1416 = vsel %vm938, %v1398, 0.0
      %1417 = vadd.xlane.f32.xlu0 %v1416
      %v1418 = vpop.xlane.xlu0 %1417
      %v1419 = vsel %vm938, %v1400, 0.0
      %1420 = vadd.xlane.f32.xlu0 %v1419
      %v1421 = vpop.xlane.xlu0 %1420
      %v1422 = vsel %vm938, %v1402, 0.0
      %1423 = vadd.xlane.f32.xlu0 %v1422
      %v1424 = vpop.xlane.xlu0 %1423
      %v1425 = vsel %vm938, %v1404, 0.0
      %1426 = vadd.xlane.f32.xlu0 %v1425
      %v1427 = vpop.xlane.xlu0 %1426
      %v1428 = vsel %vm938, %v1406, 0.0
      %1429 = vadd.xlane.f32.xlu0 %v1428
      %v1430 = vpop.xlane.xlu0 %1429
      %v1431 = vrcp.pop %v1409
      %v1432 = vrcp.pop %v1412
      %v1433 = vrcp.pop %v1415
      %v1434 = vrcp.pop %v1418
      %v1435 = vrcp.pop %v1421
      %v1436 = vrcp.pop %v1424
      %v1437 = vrcp.pop %v1427
      %v1438 = vrcp.pop %v1430
      %v1439 = vmul.f32 %v1392, %v1431
      %v1440 = vmul.f32 %v1394, %v1432
      %v1441 = vmul.f32 %v1396, %v1433
      %v1442 = vmul.f32 %v1398, %v1434
      %v1443 = vmul.f32 %v1400, %v1435
      %v1444 = vmul.f32 %v1402, %v1436
      %v1445 = vmul.f32 %v1404, %v1437
      %v1446 = vmul.f32 %v1406, %v1438
      %1447 = vrot.lane.b32.xlu0 %v714, 56
      %v1448 = vpop.permute.xlu0 %1447
      %1449 = vrot.lane.b32.xlu0 %v719, 56
      %v1450 = vpop.permute.xlu0 %1449
      %1451 = vrot.lane.b32.xlu0 %v724, 56
      %v1452 = vpop.permute.xlu0 %1451
      %1453 = vrot.lane.b32.xlu0 %v729, 56
      %v1454 = vpop.permute.xlu0 %1453
      %1455 = vrot.lane.b32.xlu0 %v734, 56
      %v1456 = vpop.permute.xlu0 %1455
      %1457 = vrot.lane.b32.xlu0 %v739, 56
      %v1458 = vpop.permute.xlu0 %1457
      %1459 = vrot.lane.b32.xlu0 %v744, 56
      %v1460 = vpop.permute.xlu0 %1459
      %1461 = vrot.lane.b32.xlu0 %v749, 56
      %v1462 = vpop.permute.xlu0 %1461
      %v1472 = vsel %vm938, %v1439, 0
      %v1475 = vsel %vm938, %v1440, 0
      %v1478 = vsel %vm938, %v1441, 0
      %v1481 = vsel %vm938, %v1442, 0
      %v1484 = vsel %vm938, %v1443, 0
      %v1487 = vsel %vm938, %v1444, 0
      %v1490 = vsel %vm938, %v1445, 0
      %v1493 = vsel %vm938, %v1446, 0
      %1495 = vmatprep.subr.mxu0 0.0
      %1496 = vmatpush1.msra.mxu0 %v1448
      %1497 = vmatprep.subr.mxu0 0.0
      %1498 = vmatpush1.msra.mxu0 %v1450
      %1499 = vmatprep.subr.mxu0 0.0
      %1500 = vmatpush1.msra.mxu0 %v1452
      %1501 = vmatprep.subr.mxu0 0.0
      %1502 = vmatpush1.msra.mxu0 %v1454
      %1503 = vmatprep.subr.mxu0 0.0
      %1504 = vmatpush1.msra.mxu0 %v1456
      %1505 = vmatprep.subr.mxu0 0.0
      %1506 = vmatpush1.msra.mxu0 %v1458
      %1507 = vmatprep.subr.mxu0 0.0
      %1508 = vmatpush1.msra.mxu0 %v1460
      %1509 = vmatprep.subr.mxu0 0.0
      %1510 = vmatpush1.msra.mxu0 %v1462
      %1511 = vmatprep.subr.mxu0 0.0
      %1512 = vmatpush1.msra.mxu0 0.0
      %1513 = vmatprep.subr.mxu0 0.0
      %1514 = vmatpush1.msra.mxu0 0.0
      %1515 = vmatprep.subr.mxu0 0.0
      %1516 = vmatpush1.msra.mxu0 0.0
      %1517 = vmatprep.subr.mxu0 0.0
      %1518 = vmatpush1.msra.mxu0 0.0
      %1519 = vmatprep.subr.mxu0 0.0
      %1520 = vmatpush1.msra.mxu0 0.0
      %1521 = vmatprep.subr.mxu0 0.0
      %1522 = vmatpush1.msra.mxu0 0.0
      %1523 = vmatprep.subr.mxu0 0.0
      %1524 = vmatpush1.msra.mxu0 0.0
      %1525 = vmatprep.subr.mxu0 0.0
      %1526 = vmatpush1.msra.mxu0 0.0
      %1527 = vmatprep.subr.mxu0 0.0
      %1528 = vmatpush1.msra.mxu0 0.0
      %1529 = vmatprep.subr.mxu0 0.0
      %1530 = vmatpush1.msra.mxu0 0.0
      %1531 = vmatprep.subr.mxu0 0.0
      %1532 = vmatpush1.msra.mxu0 0.0
      %1533 = vmatprep.subr.mxu0 0.0
      %1534 = vmatpush1.msra.mxu0 0.0
      %1535 = vmatprep.subr.mxu0 0.0
      %1536 = vmatpush1.msra.mxu0 0.0
      %1537 = vmatprep.subr.mxu0 0.0
      %1538 = vmatpush1.msra.mxu0 0.0
      %1539 = vmatprep.subr.mxu0 0.0
      %1540 = vmatpush1.msra.mxu0 0.0
      %1541 = vmatprep.subr.mxu0 0.0
      %1542 = vmatpush1.msra.mxu0 0.0
      %1543 = vmatprep.subr.mxu0 0.0
      %1544 = vmatpush1.msra.mxu0 0.0
      %1545 = vmatprep.subr.mxu0 0.0
      %1546 = vmatpush1.msra.mxu0 0.0
      %1547 = vmatprep.subr.mxu0 0.0
      %1548 = vmatpush1.msra.mxu0 0.0
      %1549 = vmatprep.subr.mxu0 0.0
      %1550 = vmatpush1.msra.mxu0 0.0
      %1551 = vmatprep.subr.mxu0 0.0
      %1552 = vmatpush1.msra.mxu0 0.0
      %1553 = vmatprep.subr.mxu0 0.0
      %1554 = vmatpush1.msra.mxu0 0.0
      %1555 = vmatprep.subr.mxu0 0.0
      %1556 = vmatpush1.msra.mxu0 0.0
      %1557 = vmatprep.subr.mxu0 0.0
      %1558 = vmatpush1.msra.mxu0 0.0
      %1559 = vmatprep.mubr.f32.mxu0 0.0
      %1560 = vmatmul.mubr.f32.gmra.mrb[0].mxu0 %v1472
      %v1561 = vpop.f32.mrb[0].mxu0
      %v1562 = vadd.f32 0.0, %v1561
      %v1563 = vpop.f32.mrb[0].mxu0
      %1564 = vmatprep.mubr.f32.mxu0 0.0
      %1565 = vmatmul.mubr.f32.gmra.mrb[0].mxu0 %v1475
      %v1566 = vpop.f32.mrb[0].mxu0
      %v1567 = vadd.f32 0.0, %v1566
      %v1568 = vpop.f32.mrb[0].mxu0
      %1569 = vmatprep.mubr.f32.mxu0 0.0
      %1570 = vmatmul.mubr.f32.gmra.mrb[0].mxu0 %v1478
      %v1571 = vpop.f32.mrb[0].mxu0
      %v1572 = vadd.f32 0.0, %v1571
      %v1573 = vpop.f32.mrb[0].mxu0
      %1574 = vmatprep.mubr.f32.mxu0 0.0
      %1575 = vmatmul.mubr.f32.gmra.mrb[0].mxu0 %v1481
      %v1576 = vpop.f32.mrb[0].mxu0
      %v1577 = vadd.f32 0.0, %v1576
      %v1578 = vpop.f32.mrb[0].mxu0
      %1579 = vmatprep.mubr.f32.mxu0 0.0
      %1580 = vmatmul.mubr.f32.gmra.mrb[0].mxu0 %v1484
      %v1581 = vpop.f32.mrb[0].mxu0
      %v1582 = vadd.f32 0.0, %v1581
      %v1583 = vpop.f32.mrb[0].mxu0
      %1584 = vmatprep.mubr.f32.mxu0 0.0
      %1585 = vmatmul.mubr.f32.gmra.mrb[0].mxu0 %v1487
      %v1586 = vpop.f32.mrb[0].mxu0
      %v1587 = vadd.f32 0.0, %v1586
      %v1588 = vpop.f32.mrb[0].mxu0
      %1589 = vmatprep.mubr.f32.mxu0 0.0
      %1590 = vmatmul.mubr.f32.gmra.mrb[0].mxu0 %v1490
      %v1591 = vpop.f32.mrb[0].mxu0
      %v1592 = vadd.f32 0.0, %v1591
      %v1593 = vpop.f32.mrb[0].mxu0
      %1594 = vmatprep.mubr.f32.mxu0 0.0
      %1595 = vmatmul.mubr.f32.gmra.mrb[0].mxu0 %v1493
      %v1596 = vpop.f32.mrb[0].mxu0
      %v1597 = vadd.f32 0.0, %v1596
      %v1598 = vpop.f32.mrb[0].mxu0
      %1599 = vdwg.mxu0
      %v1600 = vld [vmem:[%s4 + $0x8] sm:$0xff]
      %v1602 = vsel %vm792, %v1562, 0
      %v1605 = vsel %vm792, %v1567, 0
      %v1608 = vsel %vm792, %v1572, 0
      %v1611 = vsel %vm792, %v1577, 0
      %v1614 = vsel %vm792, %v1582, 0
      %v1617 = vsel %vm792, %v1587, 0
      %v1620 = vsel %vm792, %v1592, 0
      %v1623 = vsel %vm792, %v1597, 0
      %1625 = vmatprep.subr.mxu0 0.0
      %1626 = vmatpush1.msra.mxu0 %v1600
      %1627 = vmatprep.subr.mxu0 0.0
      %1628 = vmatpush1.msra.mxu0 0.0
      %1629 = vmatprep.subr.mxu0 0.0
      %1630 = vmatpush1.msra.mxu0 0.0
      %1631 = vmatprep.subr.mxu0 0.0
      %1632 = vmatpush1.msra.mxu0 0.0
      %1633 = vmatprep.subr.mxu0 0.0
      %1634 = vmatpush1.msra.mxu0 0.0
      %1635 = vmatprep.subr.mxu0 0.0
      %1636 = vmatpush1.msra.mxu0 0.0
      %1637 = vmatprep.subr.mxu0 0.0
      %1638 = vmatpush1.msra.mxu0 0.0
      %1639 = vmatprep.subr.mxu0 0.0
      %1640 = vmatpush1.msra.mxu0 0.0
      %1641 = vmatprep.subr.mxu0 0.0
      %1642 = vmatpush1.msra.mxu0 0.0
      %1643 = vmatprep.subr.mxu0 0.0
      %1644 = vmatpush1.msra.mxu0 0.0
      %1645 = vmatprep.subr.mxu0 0.0
      %1646 = vmatpush1.msra.mxu0 0.0
      %1647 = vmatprep.subr.mxu0 0.0
      %1648 = vmatpush1.msra.mxu0 0.0
      %1649 = vmatprep.subr.mxu0 0.0
      %1650 = vmatpush1.msra.mxu0 0.0
      %1651 = vmatprep.subr.mxu0 0.0
      %1652 = vmatpush1.msra.mxu0 0.0
      %1653 = vmatprep.subr.mxu0 0.0
      %1654 = vmatpush1.msra.mxu0 0.0
      %1655 = vmatprep.subr.mxu0 0.0
      %1656 = vmatpush1.msra.mxu0 0.0
      %1657 = vmatprep.subr.mxu0 0.0
      %1658 = vmatpush1.msra.mxu0 0.0
      %1659 = vmatprep.subr.mxu0 0.0
      %1660 = vmatpush1.msra.mxu0 0.0
      %1661 = vmatprep.subr.mxu0 0.0
      %1662 = vmatpush1.msra.mxu0 0.0
      %1663 = vmatprep.subr.mxu0 0.0
      %1664 = vmatpush1.msra.mxu0 0.0
      %1665 = vmatprep.subr.mxu0 0.0
      %1666 = vmatpush1.msra.mxu0 0.0
      %1667 = vmatprep.subr.mxu0 0.0
      %1668 = vmatpush1.msra.mxu0 0.0
      %1669 = vmatprep.subr.mxu0 0.0
      %1670 = vmatpush1.msra.mxu0 0.0
      %1671 = vmatprep.subr.mxu0 0.0
      %1672 = vmatpush1.msra.mxu0 0.0
      %1673 = vmatprep.subr.mxu0 0.0
      %1674 = vmatpush1.msra.mxu0 0.0
      %1675 = vmatprep.subr.mxu0 0.0
      %1676 = vmatpush1.msra.mxu0 0.0
      %1677 = vmatprep.subr.mxu0 0.0
      %1678 = vmatpush1.msra.mxu0 0.0
      %1679 = vmatprep.subr.mxu0 0.0
      %1680 = vmatpush1.msra.mxu0 0.0
      %1681 = vmatprep.subr.mxu0 0.0
      %1682 = vmatpush1.msra.mxu0 0.0
      %1683 = vmatprep.subr.mxu0 0.0
      %1684 = vmatpush1.msra.mxu0 0.0
      %1685 = vmatprep.subr.mxu0 0.0
      %1686 = vmatpush1.msra.mxu0 0.0
      %1687 = vmatprep.subr.mxu0 0.0
      %1688 = vmatpush1.msra.mxu0 0.0
      %1689 = vmatprep.mubr.f32.mxu0 0.0
      %1690 = vmatmul.mubr.f32.gmra.mrb[0].mxu0 %v1602
      %v1691 = vpop.f32.mrb[0].mxu0
      %v1692 = vadd.f32 0.0, %v1691
      %v1693 = vpop.f32.mrb[0].mxu0
      %1694 = vmatprep.mubr.f32.mxu0 0.0
      %1695 = vmatmul.mubr.f32.gmra.mrb[0].mxu0 %v1605
      %v1696 = vpop.f32.mrb[0].mxu0
      %v1697 = vadd.f32 0.0, %v1696
      %v1698 = vpop.f32.mrb[0].mxu0
      %1699 = vmatprep.mubr.f32.mxu0 0.0
      %1700 = vmatmul.mubr.f32.gmra.mrb[0].mxu0 %v1608
      %v1701 = vpop.f32.mrb[0].mxu0
      %v1702 = vadd.f32 0.0, %v1701
      %v1703 = vpop.f32.mrb[0].mxu0
      %1704 = vmatprep.mubr.f32.mxu0 0.0
      %1705 = vmatmul.mubr.f32.gmra.mrb[0].mxu0 %v1611
      %v1706 = vpop.f32.mrb[0].mxu0
      %v1707 = vadd.f32 0.0, %v1706
      %v1708 = vpop.f32.mrb[0].mxu0
      %1709 = vmatprep.mubr.f32.mxu0 0.0
      %1710 = vmatmul.mubr.f32.gmra.mrb[0].mxu0 %v1614
      %v1711 = vpop.f32.mrb[0].mxu0
      %v1712 = vadd.f32 0.0, %v1711
      %v1713 = vpop.f32.mrb[0].mxu0
      %1714 = vmatprep.mubr.f32.mxu0 0.0
      %1715 = vmatmul.mubr.f32.gmra.mrb[0].mxu0 %v1617
      %v1716 = vpop.f32.mrb[0].mxu0
      %v1717 = vadd.f32 0.0, %v1716
      %v1718 = vpop.f32.mrb[0].mxu0
      %1719 = vmatprep.mubr.f32.mxu0 0.0
      %1720 = vmatmul.mubr.f32.gmra.mrb[0].mxu0 %v1620
      %v1721 = vpop.f32.mrb[0].mxu0
      %v1722 = vadd.f32 0.0, %v1721
      %v1723 = vpop.f32.mrb[0].mxu0
      %1724 = vmatprep.mubr.f32.mxu0 0.0
      %1725 = vmatmul.mubr.f32.gmra.mrb[0].mxu0 %v1623
      %v1726 = vpop.f32.mrb[0].mxu0
      %v1727 = vadd.f32 0.0, %v1726
      %v1728 = vpop.f32.mrb[0].mxu0
      %1729 = vdwg.mxu0
      %v1731 = vsel %vm792, %v1142, 0
      %v1734 = vsel %vm792, %v1147, 0
      %v1737 = vsel %vm792, %v1152, 0
      %v1740 = vsel %vm792, %v1157, 0
      %v1743 = vsel %vm792, %v1162, 0
      %v1746 = vsel %vm792, %v1167, 0
      %v1749 = vsel %vm792, %v1172, 0
      %v1752 = vsel %vm792, %v1177, 0
      %1754 = vmatprep.subr.mxu0 0.0
      %1755 = vmatpush1.msra.mxu0 %v1180
      %1756 = vmatprep.subr.mxu0 0.0
      %1757 = vmatpush1.msra.mxu0 0.0
      %1758 = vmatprep.subr.mxu0 0.0
      %1759 = vmatpush1.msra.mxu0 0.0
      %1760 = vmatprep.subr.mxu0 0.0
      %1761 = vmatpush1.msra.mxu0 0.0
      %1762 = vmatprep.subr.mxu0 0.0
      %1763 = vmatpush1.msra.mxu0 0.0
      %1764 = vmatprep.subr.mxu0 0.0
      %1765 = vmatpush1.msra.mxu0 0.0
      %1766 = vmatprep.subr.mxu0 0.0
      %1767 = vmatpush1.msra.mxu0 0.0
      %1768 = vmatprep.subr.mxu0 0.0
      %1769 = vmatpush1.msra.mxu0 0.0
      %1770 = vmatprep.subr.mxu0 0.0
      %1771 = vmatpush1.msra.mxu0 0.0
      %1772 = vmatprep.subr.mxu0 0.0
      %1773 = vmatpush1.msra.mxu0 0.0
      %1774 = vmatprep.subr.mxu0 0.0
      %1775 = vmatpush1.msra.mxu0 0.0
      %1776 = vmatprep.subr.mxu0 0.0
      %1777 = vmatpush1.msra.mxu0 0.0
      %1778 = vmatprep.subr.mxu0 0.0
      %1779 = vmatpush1.msra.mxu0 0.0
      %1780 = vmatprep.subr.mxu0 0.0
      %1781 = vmatpush1.msra.mxu0 0.0
      %1782 = vmatprep.subr.mxu0 0.0
      %1783 = vmatpush1.msra.mxu0 0.0
      %1784 = vmatprep.subr.mxu0 0.0
      %1785 = vmatpush1.msra.mxu0 0.0
      %1786 = vmatprep.subr.mxu0 0.0
      %1787 = vmatpush1.msra.mxu0 0.0
      %1788 = vmatprep.subr.mxu0 0.0
      %1789 = vmatpush1.msra.mxu0 0.0
      %1790 = vmatprep.subr.mxu0 0.0
      %1791 = vmatpush1.msra.mxu0 0.0
      %1792 = vmatprep.subr.mxu0 0.0
      %1793 = vmatpush1.msra.mxu0 0.0
      %1794 = vmatprep.subr.mxu0 0.0
      %1795 = vmatpush1.msra.mxu0 0.0
      %1796 = vmatprep.subr.mxu0 0.0
      %1797 = vmatpush1.msra.mxu0 0.0
      %1798 = vmatprep.subr.mxu0 0.0
      %1799 = vmatpush1.msra.mxu0 0.0
      %1800 = vmatprep.subr.mxu0 0.0
      %1801 = vmatpush1.msra.mxu0 0.0
      %1802 = vmatprep.subr.mxu0 0.0
      %1803 = vmatpush1.msra.mxu0 0.0
      %1804 = vmatprep.subr.mxu0 0.0
      %1805 = vmatpush1.msra.mxu0 0.0
      %1806 = vmatprep.subr.mxu0 0.0
      %1807 = vmatpush1.msra.mxu0 0.0
      %1808 = vmatprep.subr.mxu0 0.0
      %1809 = vmatpush1.msra.mxu0 0.0
      %1810 = vmatprep.subr.mxu0 0.0
      %1811 = vmatpush1.msra.mxu0 0.0
      %1812 = vmatprep.subr.mxu0 0.0
      %1813 = vmatpush1.msra.mxu0 0.0
      %1814 = vmatprep.subr.mxu0 0.0
      %1815 = vmatpush1.msra.mxu0 0.0
      %1816 = vmatprep.subr.mxu0 0.0
      %1817 = vmatpush1.msra.mxu0 0.0
      %1818 = vmatprep.mubr.f32.mxu0 0.0
      %1819 = vmatmul.mubr.f32.gmra.mrb[0].mxu0 %v1731
      %v1820 = vpop.f32.mrb[0].mxu0
      %v1821 = vadd.f32 %v1692, %v1820
      %v1822 = vpop.f32.mrb[0].mxu0
      %1823 = vmatprep.mubr.f32.mxu0 0.0
      %1824 = vmatmul.mubr.f32.gmra.mrb[0].mxu0 %v1734
      %v1825 = vpop.f32.mrb[0].mxu0
      %v1826 = vadd.f32 %v1697, %v1825
      %v1827 = vpop.f32.mrb[0].mxu0
      %1828 = vmatprep.mubr.f32.mxu0 0.0
      %1829 = vmatmul.mubr.f32.gmra.mrb[0].mxu0 %v1737
      %v1830 = vpop.f32.mrb[0].mxu0
      %v1831 = vadd.f32 %v1702, %v1830
      %v1832 = vpop.f32.mrb[0].mxu0
      %1833 = vmatprep.mubr.f32.mxu0 0.0
      %1834 = vmatmul.mubr.f32.gmra.mrb[0].mxu0 %v1740
      %v1835 = vpop.f32.mrb[0].mxu0
      %v1836 = vadd.f32 %v1707, %v1835
      %v1837 = vpop.f32.mrb[0].mxu0
      %1838 = vmatprep.mubr.f32.mxu0 0.0
      %1839 = vmatmul.mubr.f32.gmra.mrb[0].mxu0 %v1743
      %v1840 = vpop.f32.mrb[0].mxu0
      %v1841 = vadd.f32 %v1712, %v1840
      %v1842 = vpop.f32.mrb[0].mxu0
      %1843 = vmatprep.mubr.f32.mxu0 0.0
      %1844 = vmatmul.mubr.f32.gmra.mrb[0].mxu0 %v1746
      %v1845 = vpop.f32.mrb[0].mxu0
      %v1846 = vadd.f32 %v1717, %v1845
      %v1847 = vpop.f32.mrb[0].mxu0
      %1848 = vmatprep.mubr.f32.mxu0 0.0
      %1849 = vmatmul.mubr.f32.gmra.mrb[0].mxu0 %v1749
      %v1850 = vpop.f32.mrb[0].mxu0
      %v1851 = vadd.f32 %v1722, %v1850
      %v1852 = vpop.f32.mrb[0].mxu0
      %1853 = vmatprep.mubr.f32.mxu0 0.0
      %1854 = vmatmul.mubr.f32.gmra.mrb[0].mxu0 %v1752
      %v1855 = vpop.f32.mrb[0].mxu0
      %v1856 = vadd.f32 %v1727, %v1855
      %v1857 = vpop.f32.mrb[0].mxu0
      %1858 = vdwg.mxu0
      %s1859 = scalar_lea.vmem %s1, 128
      %v1860 = vld [vmem:[%s1859] sm:$0xff]
      %v1861 = vld [vmem:[%s1859 + $0x8] sm:$0xff]
      %v1862 = vld [vmem:[%s1859 + $0x10] sm:$0xff]
      %v1863 = vld [vmem:[%s1859 + $0x18] sm:$0xff]
      %v1864 = vld [vmem:[%s1859 + $0x20] sm:$0xff]
      %v1865 = vld [vmem:[%s1859 + $0x28] sm:$0xff]
      %v1866 = vld [vmem:[%s1859 + $0x30] sm:$0xff]
      %v1867 = vld [vmem:[%s1859 + $0x38] sm:$0xff]
      %1868 = vrot.lane.b32.xlu0 %v752, 112
      %v1869 = vpop.permute.xlu0 %1868
      %1870 = vrot.lane.b32.xlu0 %v753, 112
      %v1871 = vpop.permute.xlu0 %1870
      %1872 = vrot.lane.b32.xlu0 %v754, 112
      %v1873 = vpop.permute.xlu0 %1872
      %1874 = vrot.lane.b32.xlu0 %v755, 112
      %v1875 = vpop.permute.xlu0 %1874
      %1876 = vrot.lane.b32.xlu0 %v756, 112
      %v1877 = vpop.permute.xlu0 %1876
      %1878 = vrot.lane.b32.xlu0 %v757, 112
      %v1879 = vpop.permute.xlu0 %1878
      %1880 = vrot.lane.b32.xlu0 %v758, 112
      %v1881 = vpop.permute.xlu0 %1880
      %1882 = vrot.lane.b32.xlu0 %v759, 112
      %v1883 = vpop.permute.xlu0 %1882
      %1884 = vrot.lane.b32.xlu0 %v714, 80
      %v1885 = vpop.permute.xlu0 %1884
      %1886 = vrot.lane.b32.xlu0 %v719, 80
      %v1887 = vpop.permute.xlu0 %1886
      %1888 = vrot.lane.b32.xlu0 %v724, 80
      %v1889 = vpop.permute.xlu0 %1888
      %1890 = vrot.lane.b32.xlu0 %v729, 80
      %v1891 = vpop.permute.xlu0 %1890
      %1892 = vrot.lane.b32.xlu0 %v734, 80
      %v1893 = vpop.permute.xlu0 %1892
      %1894 = vrot.lane.b32.xlu0 %v739, 80
      %v1895 = vpop.permute.xlu0 %1894
      %1896 = vrot.lane.b32.xlu0 %v744, 80
      %v1897 = vpop.permute.xlu0 %1896
      %1898 = vrot.lane.b32.xlu0 %v749, 80
      %v1899 = vpop.permute.xlu0 %1898
      %v1900 = vsel %vm792, %v1869, 0
      %v1902 = vsel %vm792, %v1871, 0
      %v1904 = vsel %vm792, %v1873, 0
      %v1906 = vsel %vm792, %v1875, 0
      %v1908 = vsel %vm792, %v1877, 0
      %v1910 = vsel %vm792, %v1879, 0
      %v1912 = vsel %vm792, %v1881, 0
      %v1914 = vsel %vm792, %v1883, 0
      %v1916 = vsel %vm792, %v1885, 0
      %v1918 = vsel %vm792, %v1887, 0
      %v1920 = vsel %vm792, %v1889, 0
      %v1922 = vsel %vm792, %v1891, 0
      %v1924 = vsel %vm792, %v1893, 0
      %v1926 = vsel %vm792, %v1895, 0
      %v1928 = vsel %vm792, %v1897, 0
      %v1930 = vsel %vm792, %v1899, 0
      %1932 = vmatprep.subr.mxu0 0.0
      %1933 = vmatpush1.xpose.msra.mxu0 %v1916
      %1934 = vmatprep.subr.mxu0 0.0
      %1935 = vmatpush1.xpose.msra.mxu0 %v1918
      %1936 = vmatprep.subr.mxu0 0.0
      %1937 = vmatpush1.xpose.msra.mxu0 %v1920
      %1938 = vmatprep.subr.mxu0 0.0
      %1939 = vmatpush1.xpose.msra.mxu0 %v1922
      %1940 = vmatprep.subr.mxu0 0.0
      %1941 = vmatpush1.xpose.msra.mxu0 %v1924
      %1942 = vmatprep.subr.mxu0 0.0
      %1943 = vmatpush1.xpose.msra.mxu0 %v1926
      %1944 = vmatprep.subr.mxu0 0.0
      %1945 = vmatpush1.xpose.msra.mxu0 %v1928
      %1946 = vmatprep.subr.mxu0 0.0
      %1947 = vmatpush1.xpose.msra.mxu0 %v1930
      %1948 = vmatprep.subr.mxu0 0.0
      %1949 = vmatpush1.xpose.msra.mxu0 0.0
      %1950 = vmatprep.subr.mxu0 0.0
      %1951 = vmatpush1.xpose.msra.mxu0 0.0
      %1952 = vmatprep.subr.mxu0 0.0
      %1953 = vmatpush1.xpose.msra.mxu0 0.0
      %1954 = vmatprep.subr.mxu0 0.0
      %1955 = vmatpush1.xpose.msra.mxu0 0.0
      %1956 = vmatprep.subr.mxu0 0.0
      %1957 = vmatpush1.xpose.msra.mxu0 0.0
      %1958 = vmatprep.subr.mxu0 0.0
      %1959 = vmatpush1.xpose.msra.mxu0 0.0
      %1960 = vmatprep.subr.mxu0 0.0
      %1961 = vmatpush1.xpose.msra.mxu0 0.0
      %1962 = vmatprep.subr.mxu0 0.0
      %1963 = vmatpush1.xpose.msra.mxu0 0.0
      %1964 = vmatprep.subr.mxu0 0.0
      %1965 = vmatpush1.xpose.msra.mxu0 0.0
      %1966 = vmatprep.subr.mxu0 0.0
      %1967 = vmatpush1.xpose.msra.mxu0 0.0
      %1968 = vmatprep.subr.mxu0 0.0
      %1969 = vmatpush1.xpose.msra.mxu0 0.0
      %1970 = vmatprep.subr.mxu0 0.0
      %1971 = vmatpush1.xpose.msra.mxu0 0.0
      %1972 = vmatprep.subr.mxu0 0.0
      %1973 = vmatpush1.xpose.msra.mxu0 0.0
      %1974 = vmatprep.subr.mxu0 0.0
      %1975 = vmatpush1.xpose.msra.mxu0 0.0
      %1976 = vmatprep.subr.mxu0 0.0
      %1977 = vmatpush1.xpose.msra.mxu0 0.0
      %1978 = vmatprep.subr.mxu0 0.0
      %1979 = vmatpush1.xpose.msra.mxu0 0.0
      %1980 = vmatprep.subr.mxu0 0.0
      %1981 = vmatpush1.xpose.msra.mxu0 0.0
      %1982 = vmatprep.subr.mxu0 0.0
      %1983 = vmatpush1.xpose.msra.mxu0 0.0
      %1984 = vmatprep.subr.mxu0 0.0
      %1985 = vmatpush1.xpose.msra.mxu0 0.0
      %1986 = vmatprep.subr.mxu0 0.0
      %1987 = vmatpush1.xpose.msra.mxu0 0.0
      %1988 = vmatprep.subr.mxu0 0.0
      %1989 = vmatpush1.xpose.msra.mxu0 0.0
      %1990 = vmatprep.subr.mxu0 0.0
      %1991 = vmatpush1.xpose.msra.mxu0 0.0
      %1992 = vmatprep.subr.mxu0 0.0
      %1993 = vmatpush1.xpose.msra.mxu0 0.0
      %1994 = vmatprep.subr.mxu0 0.0
      %1995 = vmatpush1.xpose.msra.mxu0 0.0
      %1996 = vmatprep.mubr.f32.mxu0 0.0
      %1997 = vmatmul.mubr.f32.gmra.mrb[0].mxu0 %v1900
      %v1998 = vpop.f32.mrb[0].mxu0
      %v1999 = vadd.f32 %v1860, %v1998
      %v2000 = vpop.f32.mrb[0].mxu0
      %2001 = vmatprep.mubr.f32.mxu0 0.0
      %2002 = vmatmul.mubr.f32.gmra.mrb[0].mxu0 %v1902
      %v2003 = vpop.f32.mrb[0].mxu0
      %v2004 = vadd.f32 %v1861, %v2003
      %v2005 = vpop.f32.mrb[0].mxu0
      %2006 = vmatprep.mubr.f32.mxu0 0.0
      %2007 = vmatmul.mubr.f32.gmra.mrb[0].mxu0 %v1904
      %v2008 = vpop.f32.mrb[0].mxu0
      %v2009 = vadd.f32 %v1862, %v2008
      %v2010 = vpop.f32.mrb[0].mxu0
      %2011 = vmatprep.mubr.f32.mxu0 0.0
      %2012 = vmatmul.mubr.f32.gmra.mrb[0].mxu0 %v1906
      %v2013 = vpop.f32.mrb[0].mxu0
      %v2014 = vadd.f32 %v1863, %v2013
      %v2015 = vpop.f32.mrb[0].mxu0
      %2016 = vmatprep.mubr.f32.mxu0 0.0
      %2017 = vmatmul.mubr.f32.gmra.mrb[0].mxu0 %v1908
      %v2018 = vpop.f32.mrb[0].mxu0
      %v2019 = vadd.f32 %v1864, %v2018
      %v2020 = vpop.f32.mrb[0].mxu0
      %2021 = vmatprep.mubr.f32.mxu0 0.0
      %2022 = vmatmul.mubr.f32.gmra.mrb[0].mxu0 %v1910
      %v2023 = vpop.f32.mrb[0].mxu0
      %v2024 = vadd.f32 %v1865, %v2023
      %v2025 = vpop.f32.mrb[0].mxu0
      %2026 = vmatprep.mubr.f32.mxu0 0.0
      %2027 = vmatmul.mubr.f32.gmra.mrb[0].mxu0 %v1912
      %v2028 = vpop.f32.mrb[0].mxu0
      %v2029 = vadd.f32 %v1866, %v2028
      %v2030 = vpop.f32.mrb[0].mxu0
      %2031 = vmatprep.mubr.f32.mxu0 0.0
      %2032 = vmatmul.mubr.f32.gmra.mrb[0].mxu0 %v1914
      %v2033 = vpop.f32.mrb[0].mxu0
      %v2034 = vadd.f32 %v1867, %v2033
      %v2035 = vpop.f32.mrb[0].mxu0
      %2036 = vdwg.mxu0
      %v2037 = vsel %vm938, %v1999, -inf
      %2038 = vmax.xlane.f32.xlu0 %v2037
      %v2039 = vpop.xlane.xlu0 %2038
      %v2040 = vsel %vm938, %v2004, -inf
      %2041 = vmax.xlane.f32.xlu0 %v2040
      %v2042 = vpop.xlane.xlu0 %2041
      %v2043 = vsel %vm938, %v2009, -inf
      %2044 = vmax.xlane.f32.xlu0 %v2043
      %v2045 = vpop.xlane.xlu0 %2044
      %v2046 = vsel %vm938, %v2014, -inf
      %2047 = vmax.xlane.f32.xlu0 %v2046
      %v2048 = vpop.xlane.xlu0 %2047
      %v2049 = vsel %vm938, %v2019, -inf
      %2050 = vmax.xlane.f32.xlu0 %v2049
      %v2051 = vpop.xlane.xlu0 %2050
      %v2052 = vsel %vm938, %v2024, -inf
      %2053 = vmax.xlane.f32.xlu0 %v2052
      %v2054 = vpop.xlane.xlu0 %2053
      %v2055 = vsel %vm938, %v2029, -inf
      %2056 = vmax.xlane.f32.xlu0 %v2055
      %v2057 = vpop.xlane.xlu0 %2056
      %v2058 = vsel %vm938, %v2034, -inf
      %2059 = vmax.xlane.f32.xlu0 %v2058
      %v2060 = vpop.xlane.xlu0 %2059
      %v2061 = vsub.f32 %v1999, %v2039
      %v2062 = vsub.f32 %v2004, %v2042
      %v2063 = vsub.f32 %v2009, %v2045
      %v2064 = vsub.f32 %v2014, %v2048
      %v2065 = vsub.f32 %v2019, %v2051
      %v2066 = vsub.f32 %v2024, %v2054
      %v2067 = vsub.f32 %v2029, %v2057
      %v2068 = vsub.f32 %v2034, %v2060
      %v2069 = vmul.f32 %v2061, 1.442695
      %v2070 = vpow.pop %v2069
      %v2071 = vmul.f32 %v2062, 1.442695
      %v2072 = vpow.pop %v2071
      %v2073 = vmul.f32 %v2063, 1.442695
      %v2074 = vpow.pop %v2073
      %v2075 = vmul.f32 %v2064, 1.442695
      %v2076 = vpow.pop %v2075
      %v2077 = vmul.f32 %v2065, 1.442695
      %v2078 = vpow.pop %v2077
      %v2079 = vmul.f32 %v2066, 1.442695
      %v2080 = vpow.pop %v2079
      %v2081 = vmul.f32 %v2067, 1.442695
      %v2082 = vpow.pop %v2081
      %v2083 = vmul.f32 %v2068, 1.442695
      %v2084 = vpow.pop %v2083
      %v2085 = vsel %vm938, %v2070, 0.0
      %2086 = vadd.xlane.f32.xlu0 %v2085
      %v2087 = vpop.xlane.xlu0 %2086
      %v2088 = vsel %vm938, %v2072, 0.0
      %2089 = vadd.xlane.f32.xlu0 %v2088
      %v2090 = vpop.xlane.xlu0 %2089
      %v2091 = vsel %vm938, %v2074, 0.0
      %2092 = vadd.xlane.f32.xlu0 %v2091
      %v2093 = vpop.xlane.xlu0 %2092
      %v2094 = vsel %vm938, %v2076, 0.0
      %2095 = vadd.xlane.f32.xlu0 %v2094
      %v2096 = vpop.xlane.xlu0 %2095
      %v2097 = vsel %vm938, %v2078, 0.0
      %2098 = vadd.xlane.f32.xlu0 %v2097
      %v2099 = vpop.xlane.xlu0 %2098
      %v2100 = vsel %vm938, %v2080, 0.0
      %2101 = vadd.xlane.f32.xlu0 %v2100
      %v2102 = vpop.xlane.xlu0 %2101
      %v2103 = vsel %vm938, %v2082, 0.0
      %2104 = vadd.xlane.f32.xlu0 %v2103
      %v2105 = vpop.xlane.xlu0 %2104
      %v2106 = vsel %vm938, %v2084, 0.0
      %2107 = vadd.xlane.f32.xlu0 %v2106
      %v2108 = vpop.xlane.xlu0 %2107
      %v2109 = vrcp.pop %v2087
      %v2110 = vrcp.pop %v2090
      %v2111 = vrcp.pop %v2093
      %v2112 = vrcp.pop %v2096
      %v2113 = vrcp.pop %v2099
      %v2114 = vrcp.pop %v2102
      %v2115 = vrcp.pop %v2105
      %v2116 = vrcp.pop %v2108
      %v2117 = vmul.f32 %v2070, %v2109
      %v2118 = vmul.f32 %v2072, %v2110
      %v2119 = vmul.f32 %v2074, %v2111
      %v2120 = vmul.f32 %v2076, %v2112
      %v2121 = vmul.f32 %v2078, %v2113
      %v2122 = vmul.f32 %v2080, %v2114
      %v2123 = vmul.f32 %v2082, %v2115
      %v2124 = vmul.f32 %v2084, %v2116
      %2125 = vrot.lane.b32.xlu0 %v714, 48
      %v2126 = vpop.permute.xlu0 %2125
      %2127 = vrot.lane.b32.xlu0 %v719, 48
      %v2128 = vpop.permute.xlu0 %2127
      %2129 = vrot.lane.b32.xlu0 %v724, 48
      %v2130 = vpop.permute.xlu0 %2129
      %2131 = vrot.lane.b32.xlu0 %v729, 48
      %v2132 = vpop.permute.xlu0 %2131
      %2133 = vrot.lane.b32.xlu0 %v734, 48
      %v2134 = vpop.permute.xlu0 %2133
      %2135 = vrot.lane.b32.xlu0 %v739, 48
      %v2136 = vpop.permute.xlu0 %2135
      %2137 = vrot.lane.b32.xlu0 %v744, 48
      %v2138 = vpop.permute.xlu0 %2137
      %2139 = vrot.lane.b32.xlu0 %v749, 48
      %v2140 = vpop.permute.xlu0 %2139
      %v2150 = vsel %vm938, %v2117, 0
      %v2153 = vsel %vm938, %v2118, 0
      %v2156 = vsel %vm938, %v2119, 0
      %v2159 = vsel %vm938, %v2120, 0
      %v2162 = vsel %vm938, %v2121, 0
      %v2165 = vsel %vm938, %v2122, 0
      %v2168 = vsel %vm938, %v2123, 0
      %v2171 = vsel %vm938, %v2124, 0
      %2173 = vmatprep.subr.mxu0 0.0
      %2174 = vmatpush1.msra.mxu0 %v2126
      %2175 = vmatprep.subr.mxu0 0.0
      %2176 = vmatpush1.msra.mxu0 %v2128
      %2177 = vmatprep.subr.mxu0 0.0
      %2178 = vmatpush1.msra.mxu0 %v2130
      %2179 = vmatprep.subr.mxu0 0.0
      %2180 = vmatpush1.msra.mxu0 %v2132
      %2181 = vmatprep.subr.mxu0 0.0
      %2182 = vmatpush1.msra.mxu0 %v2134
      %2183 = vmatprep.subr.mxu0 0.0
      %2184 = vmatpush1.msra.mxu0 %v2136
      %2185 = vmatprep.subr.mxu0 0.0
      %2186 = vmatpush1.msra.mxu0 %v2138
      %2187 = vmatprep.subr.mxu0 0.0
      %2188 = vmatpush1.msra.mxu0 %v2140
      %2189 = vmatprep.subr.mxu0 0.0
      %2190 = vmatpush1.msra.mxu0 0.0
      %2191 = vmatprep.subr.mxu0 0.0
      %2192 = vmatpush1.msra.mxu0 0.0
      %2193 = vmatprep.subr.mxu0 0.0
      %2194 = vmatpush1.msra.mxu0 0.0
      %2195 = vmatprep.subr.mxu0 0.0
      %2196 = vmatpush1.msra.mxu0 0.0
      %2197 = vmatprep.subr.mxu0 0.0
      %2198 = vmatpush1.msra.mxu0 0.0
      %2199 = vmatprep.subr.mxu0 0.0
      %2200 = vmatpush1.msra.mxu0 0.0
      %2201 = vmatprep.subr.mxu0 0.0
      %2202 = vmatpush1.msra.mxu0 0.0
      %2203 = vmatprep.subr.mxu0 0.0
      %2204 = vmatpush1.msra.mxu0 0.0
      %2205 = vmatprep.subr.mxu0 0.0
      %2206 = vmatpush1.msra.mxu0 0.0
      %2207 = vmatprep.subr.mxu0 0.0
      %2208 = vmatpush1.msra.mxu0 0.0
      %2209 = vmatprep.subr.mxu0 0.0
      %2210 = vmatpush1.msra.mxu0 0.0
      %2211 = vmatprep.subr.mxu0 0.0
      %2212 = vmatpush1.msra.mxu0 0.0
      %2213 = vmatprep.subr.mxu0 0.0
      %2214 = vmatpush1.msra.mxu0 0.0
      %2215 = vmatprep.subr.mxu0 0.0
      %2216 = vmatpush1.msra.mxu0 0.0
      %2217 = vmatprep.subr.mxu0 0.0
      %2218 = vmatpush1.msra.mxu0 0.0
      %2219 = vmatprep.subr.mxu0 0.0
      %2220 = vmatpush1.msra.mxu0 0.0
      %2221 = vmatprep.subr.mxu0 0.0
      %2222 = vmatpush1.msra.mxu0 0.0
      %2223 = vmatprep.subr.mxu0 0.0
      %2224 = vmatpush1.msra.mxu0 0.0
      %2225 = vmatprep.subr.mxu0 0.0
      %2226 = vmatpush1.msra.mxu0 0.0
      %2227 = vmatprep.subr.mxu0 0.0
      %2228 = vmatpush1.msra.mxu0 0.0
      %2229 = vmatprep.subr.mxu0 0.0
      %2230 = vmatpush1.msra.mxu0 0.0
      %2231 = vmatprep.subr.mxu0 0.0
      %2232 = vmatpush1.msra.mxu0 0.0
      %2233 = vmatprep.subr.mxu0 0.0
      %2234 = vmatpush1.msra.mxu0 0.0
      %2235 = vmatprep.subr.mxu0 0.0
      %2236 = vmatpush1.msra.mxu0 0.0
      %2237 = vmatprep.mubr.f32.mxu0 0.0
      %2238 = vmatmul.mubr.f32.gmra.mrb[0].mxu0 %v2150
      %v2239 = vpop.f32.mrb[0].mxu0
      %v2240 = vadd.f32 0.0, %v2239
      %v2241 = vpop.f32.mrb[0].mxu0
      %2242 = vmatprep.mubr.f32.mxu0 0.0
      %2243 = vmatmul.mubr.f32.gmra.mrb[0].mxu0 %v2153
      %v2244 = vpop.f32.mrb[0].mxu0
      %v2245 = vadd.f32 0.0, %v2244
      %v2246 = vpop.f32.mrb[0].mxu0
      %2247 = vmatprep.mubr.f32.mxu0 0.0
      %2248 = vmatmul.mubr.f32.gmra.mrb[0].mxu0 %v2156
      %v2249 = vpop.f32.mrb[0].mxu0
      %v2250 = vadd.f32 0.0, %v2249
      %v2251 = vpop.f32.mrb[0].mxu0
      %2252 = vmatprep.mubr.f32.mxu0 0.0
      %2253 = vmatmul.mubr.f32.gmra.mrb[0].mxu0 %v2159
      %v2254 = vpop.f32.mrb[0].mxu0
      %v2255 = vadd.f32 0.0, %v2254
      %v2256 = vpop.f32.mrb[0].mxu0
      %2257 = vmatprep.mubr.f32.mxu0 0.0
      %2258 = vmatmul.mubr.f32.gmra.mrb[0].mxu0 %v2162
      %v2259 = vpop.f32.mrb[0].mxu0
      %v2260 = vadd.f32 0.0, %v2259
      %v2261 = vpop.f32.mrb[0].mxu0
      %2262 = vmatprep.mubr.f32.mxu0 0.0
      %2263 = vmatmul.mubr.f32.gmra.mrb[0].mxu0 %v2165
      %v2264 = vpop.f32.mrb[0].mxu0
      %v2265 = vadd.f32 0.0, %v2264
      %v2266 = vpop.f32.mrb[0].mxu0
      %2267 = vmatprep.mubr.f32.mxu0 0.0
      %2268 = vmatmul.mubr.f32.gmra.mrb[0].mxu0 %v2168
      %v2269 = vpop.f32.mrb[0].mxu0
      %v2270 = vadd.f32 0.0, %v2269
      %v2271 = vpop.f32.mrb[0].mxu0
      %2272 = vmatprep.mubr.f32.mxu0 0.0
      %2273 = vmatmul.mubr.f32.gmra.mrb[0].mxu0 %v2171
      %v2274 = vpop.f32.mrb[0].mxu0
      %v2275 = vadd.f32 0.0, %v2274
      %v2276 = vpop.f32.mrb[0].mxu0
      %2277 = vdwg.mxu0
      %v2278 = vld [vmem:[%s4 + $0x10] sm:$0xff]
      %v2280 = vsel %vm792, %v2240, 0
      %v2283 = vsel %vm792, %v2245, 0
      %v2286 = vsel %vm792, %v2250, 0
      %v2289 = vsel %vm792, %v2255, 0
      %v2292 = vsel %vm792, %v2260, 0
      %v2295 = vsel %vm792, %v2265, 0
      %v2298 = vsel %vm792, %v2270, 0
      %v2301 = vsel %vm792, %v2275, 0
      %2303 = vmatprep.subr.mxu0 0.0
      %2304 = vmatpush1.msra.mxu0 %v2278
      %2305 = vmatprep.subr.mxu0 0.0
      %2306 = vmatpush1.msra.mxu0 0.0
      %2307 = vmatprep.subr.mxu0 0.0
      %2308 = vmatpush1.msra.mxu0 0.0
      %2309 = vmatprep.subr.mxu0 0.0
      %2310 = vmatpush1.msra.mxu0 0.0
      %2311 = vmatprep.subr.mxu0 0.0
      %2312 = vmatpush1.msra.mxu0 0.0
      %2313 = vmatprep.subr.mxu0 0.0
      %2314 = vmatpush1.msra.mxu0 0.0
      %2315 = vmatprep.subr.mxu0 0.0
      %2316 = vmatpush1.msra.mxu0 0.0
      %2317 = vmatprep.subr.mxu0 0.0
      %2318 = vmatpush1.msra.mxu0 0.0
      %2319 = vmatprep.subr.mxu0 0.0
      %2320 = vmatpush1.msra.mxu0 0.0
      %2321 = vmatprep.subr.mxu0 0.0
      %2322 = vmatpush1.msra.mxu0 0.0
      %2323 = vmatprep.subr.mxu0 0.0
      %2324 = vmatpush1.msra.mxu0 0.0
      %2325 = vmatprep.subr.mxu0 0.0
      %2326 = vmatpush1.msra.mxu0 0.0
      %2327 = vmatprep.subr.mxu0 0.0
      %2328 = vmatpush1.msra.mxu0 0.0
      %2329 = vmatprep.subr.mxu0 0.0
      %2330 = vmatpush1.msra.mxu0 0.0
      %2331 = vmatprep.subr.mxu0 0.0
      %2332 = vmatpush1.msra.mxu0 0.0
      %2333 = vmatprep.subr.mxu0 0.0
      %2334 = vmatpush1.msra.mxu0 0.0
      %2335 = vmatprep.subr.mxu0 0.0
      %2336 = vmatpush1.msra.mxu0 0.0
      %2337 = vmatprep.subr.mxu0 0.0
      %2338 = vmatpush1.msra.mxu0 0.0
      %2339 = vmatprep.subr.mxu0 0.0
      %2340 = vmatpush1.msra.mxu0 0.0
      %2341 = vmatprep.subr.mxu0 0.0
      %2342 = vmatpush1.msra.mxu0 0.0
      %2343 = vmatprep.subr.mxu0 0.0
      %2344 = vmatpush1.msra.mxu0 0.0
      %2345 = vmatprep.subr.mxu0 0.0
      %2346 = vmatpush1.msra.mxu0 0.0
      %2347 = vmatprep.subr.mxu0 0.0
      %2348 = vmatpush1.msra.mxu0 0.0
      %2349 = vmatprep.subr.mxu0 0.0
      %2350 = vmatpush1.msra.mxu0 0.0
      %2351 = vmatprep.subr.mxu0 0.0
      %2352 = vmatpush1.msra.mxu0 0.0
      %2353 = vmatprep.subr.mxu0 0.0
      %2354 = vmatpush1.msra.mxu0 0.0
      %2355 = vmatprep.subr.mxu0 0.0
      %2356 = vmatpush1.msra.mxu0 0.0
      %2357 = vmatprep.subr.mxu0 0.0
      %2358 = vmatpush1.msra.mxu0 0.0
      %2359 = vmatprep.subr.mxu0 0.0
      %2360 = vmatpush1.msra.mxu0 0.0
      %2361 = vmatprep.subr.mxu0 0.0
      %2362 = vmatpush1.msra.mxu0 0.0
      %2363 = vmatprep.subr.mxu0 0.0
      %2364 = vmatpush1.msra.mxu0 0.0
      %2365 = vmatprep.subr.mxu0 0.0
      %2366 = vmatpush1.msra.mxu0 0.0
      %2367 = vmatprep.mubr.f32.mxu0 0.0
      %2368 = vmatmul.mubr.f32.gmra.mrb[0].mxu0 %v2280
      %v2369 = vpop.f32.mrb[0].mxu0
      %v2370 = vadd.f32 0.0, %v2369
      %v2371 = vpop.f32.mrb[0].mxu0
      %2372 = vmatprep.mubr.f32.mxu0 0.0
      %2373 = vmatmul.mubr.f32.gmra.mrb[0].mxu0 %v2283
      %v2374 = vpop.f32.mrb[0].mxu0
      %v2375 = vadd.f32 0.0, %v2374
      %v2376 = vpop.f32.mrb[0].mxu0
      %2377 = vmatprep.mubr.f32.mxu0 0.0
      %2378 = vmatmul.mubr.f32.gmra.mrb[0].mxu0 %v2286
      %v2379 = vpop.f32.mrb[0].mxu0
      %v2380 = vadd.f32 0.0, %v2379
      %v2381 = vpop.f32.mrb[0].mxu0
      %2382 = vmatprep.mubr.f32.mxu0 0.0
      %2383 = vmatmul.mubr.f32.gmra.mrb[0].mxu0 %v2289
      %v2384 = vpop.f32.mrb[0].mxu0
      %v2385 = vadd.f32 0.0, %v2384
      %v2386 = vpop.f32.mrb[0].mxu0
      %2387 = vmatprep.mubr.f32.mxu0 0.0
      %2388 = vmatmul.mubr.f32.gmra.mrb[0].mxu0 %v2292
      %v2389 = vpop.f32.mrb[0].mxu0
      %v2390 = vadd.f32 0.0, %v2389
      %v2391 = vpop.f32.mrb[0].mxu0
      %2392 = vmatprep.mubr.f32.mxu0 0.0
      %2393 = vmatmul.mubr.f32.gmra.mrb[0].mxu0 %v2295
      %v2394 = vpop.f32.mrb[0].mxu0
      %v2395 = vadd.f32 0.0, %v2394
      %v2396 = vpop.f32.mrb[0].mxu0
      %2397 = vmatprep.mubr.f32.mxu0 0.0
      %2398 = vmatmul.mubr.f32.gmra.mrb[0].mxu0 %v2298
      %v2399 = vpop.f32.mrb[0].mxu0
      %v2400 = vadd.f32 0.0, %v2399
      %v2401 = vpop.f32.mrb[0].mxu0
      %2402 = vmatprep.mubr.f32.mxu0 0.0
      %2403 = vmatmul.mubr.f32.gmra.mrb[0].mxu0 %v2301
      %v2404 = vpop.f32.mrb[0].mxu0
      %v2405 = vadd.f32 0.0, %v2404
      %v2406 = vpop.f32.mrb[0].mxu0
      %2407 = vdwg.mxu0
      %v2408 = vadd.f32 %v1821, %v2370
      %v2409 = vadd.f32 %v1826, %v2375
      %v2410 = vadd.f32 %v1831, %v2380
      %v2411 = vadd.f32 %v1836, %v2385
      %v2412 = vadd.f32 %v1841, %v2390
      %v2413 = vadd.f32 %v1846, %v2395
      %v2414 = vadd.f32 %v1851, %v2400
      %v2415 = vadd.f32 %v1856, %v2405
      %s2416 = scalar_lea.vmem %s1, 192
      %v2417 = vld [vmem:[%s2416] sm:$0xff]
      %v2418 = vld [vmem:[%s2416 + $0x8] sm:$0xff]
      %v2419 = vld [vmem:[%s2416 + $0x10] sm:$0xff]
      %v2420 = vld [vmem:[%s2416 + $0x18] sm:$0xff]
      %v2421 = vld [vmem:[%s2416 + $0x20] sm:$0xff]
      %v2422 = vld [vmem:[%s2416 + $0x28] sm:$0xff]
      %v2423 = vld [vmem:[%s2416 + $0x30] sm:$0xff]
      %v2424 = vld [vmem:[%s2416 + $0x38] sm:$0xff]
      %2425 = vrot.lane.b32.xlu0 %v752, 104
      %v2426 = vpop.permute.xlu0 %2425
      %2427 = vrot.lane.b32.xlu0 %v753, 104
      %v2428 = vpop.permute.xlu0 %2427
      %2429 = vrot.lane.b32.xlu0 %v754, 104
      %v2430 = vpop.permute.xlu0 %2429
      %2431 = vrot.lane.b32.xlu0 %v755, 104
      %v2432 = vpop.permute.xlu0 %2431
      %2433 = vrot.lane.b32.xlu0 %v756, 104
      %v2434 = vpop.permute.xlu0 %2433
      %2435 = vrot.lane.b32.xlu0 %v757, 104
      %v2436 = vpop.permute.xlu0 %2435
      %2437 = vrot.lane.b32.xlu0 %v758, 104
      %v2438 = vpop.permute.xlu0 %2437
      %2439 = vrot.lane.b32.xlu0 %v759, 104
      %v2440 = vpop.permute.xlu0 %2439
      %2441 = vrot.lane.b32.xlu0 %v714, 72
      %v2442 = vpop.permute.xlu0 %2441
      %2443 = vrot.lane.b32.xlu0 %v719, 72
      %v2444 = vpop.permute.xlu0 %2443
      %2445 = vrot.lane.b32.xlu0 %v724, 72
      %v2446 = vpop.permute.xlu0 %2445
      %2447 = vrot.lane.b32.xlu0 %v729, 72
      %v2448 = vpop.permute.xlu0 %2447
      %2449 = vrot.lane.b32.xlu0 %v734, 72
      %v2450 = vpop.permute.xlu0 %2449
      %2451 = vrot.lane.b32.xlu0 %v739, 72
      %v2452 = vpop.permute.xlu0 %2451
      %2453 = vrot.lane.b32.xlu0 %v744, 72
      %v2454 = vpop.permute.xlu0 %2453
      %2455 = vrot.lane.b32.xlu0 %v749, 72
      %v2456 = vpop.permute.xlu0 %2455
      %v2457 = vsel %vm792, %v2426, 0
      %v2459 = vsel %vm792, %v2428, 0
      %v2461 = vsel %vm792, %v2430, 0
      %v2463 = vsel %vm792, %v2432, 0
      %v2465 = vsel %vm792, %v2434, 0
      %v2467 = vsel %vm792, %v2436, 0
      %v2469 = vsel %vm792, %v2438, 0
      %v2471 = vsel %vm792, %v2440, 0
      %v2473 = vsel %vm792, %v2442, 0
      %v2475 = vsel %vm792, %v2444, 0
      %v2477 = vsel %vm792, %v2446, 0
      %v2479 = vsel %vm792, %v2448, 0
      %v2481 = vsel %vm792, %v2450, 0
      %v2483 = vsel %vm792, %v2452, 0
      %v2485 = vsel %vm792, %v2454, 0
      %v2487 = vsel %vm792, %v2456, 0
      %2489 = vmatprep.subr.mxu0 0.0
      %2490 = vmatpush1.xpose.msra.mxu0 %v2473
      %2491 = vmatprep.subr.mxu0 0.0
      %2492 = vmatpush1.xpose.msra.mxu0 %v2475
      %2493 = vmatprep.subr.mxu0 0.0
      %2494 = vmatpush1.xpose.msra.mxu0 %v2477
      %2495 = vmatprep.subr.mxu0 0.0
      %2496 = vmatpush1.xpose.msra.mxu0 %v2479
      %2497 = vmatprep.subr.mxu0 0.0
      %2498 = vmatpush1.xpose.msra.mxu0 %v2481
      %2499 = vmatprep.subr.mxu0 0.0
      %2500 = vmatpush1.xpose.msra.mxu0 %v2483
      %2501 = vmatprep.subr.mxu0 0.0
      %2502 = vmatpush1.xpose.msra.mxu0 %v2485
      %2503 = vmatprep.subr.mxu0 0.0
      %2504 = vmatpush1.xpose.msra.mxu0 %v2487
      %2505 = vmatprep.subr.mxu0 0.0
      %2506 = vmatpush1.xpose.msra.mxu0 0.0
      %2507 = vmatprep.subr.mxu0 0.0
      %2508 = vmatpush1.xpose.msra.mxu0 0.0
      %2509 = vmatprep.subr.mxu0 0.0
      %2510 = vmatpush1.xpose.msra.mxu0 0.0
      %2511 = vmatprep.subr.mxu0 0.0
      %2512 = vmatpush1.xpose.msra.mxu0 0.0
      %2513 = vmatprep.subr.mxu0 0.0
      %2514 = vmatpush1.xpose.msra.mxu0 0.0
      %2515 = vmatprep.subr.mxu0 0.0
      %2516 = vmatpush1.xpose.msra.mxu0 0.0
      %2517 = vmatprep.subr.mxu0 0.0
      %2518 = vmatpush1.xpose.msra.mxu0 0.0
      %2519 = vmatprep.subr.mxu0 0.0
      %2520 = vmatpush1.xpose.msra.mxu0 0.0
      %2521 = vmatprep.subr.mxu0 0.0
      %2522 = vmatpush1.xpose.msra.mxu0 0.0
      %2523 = vmatprep.subr.mxu0 0.0
      %2524 = vmatpush1.xpose.msra.mxu0 0.0
      %2525 = vmatprep.subr.mxu0 0.0
      %2526 = vmatpush1.xpose.msra.mxu0 0.0
      %2527 = vmatprep.subr.mxu0 0.0
      %2528 = vmatpush1.xpose.msra.mxu0 0.0
      %2529 = vmatprep.subr.mxu0 0.0
      %2530 = vmatpush1.xpose.msra.mxu0 0.0
      %2531 = vmatprep.subr.mxu0 0.0
      %2532 = vmatpush1.xpose.msra.mxu0 0.0
      %2533 = vmatprep.subr.mxu0 0.0
      %2534 = vmatpush1.xpose.msra.mxu0 0.0
      %2535 = vmatprep.subr.mxu0 0.0
      %2536 = vmatpush1.xpose.msra.mxu0 0.0
      %2537 = vmatprep.subr.mxu0 0.0
      %2538 = vmatpush1.xpose.msra.mxu0 0.0
      %2539 = vmatprep.subr.mxu0 0.0
      %2540 = vmatpush1.xpose.msra.mxu0 0.0
      %2541 = vmatprep.subr.mxu0 0.0
      %2542 = vmatpush1.xpose.msra.mxu0 0.0
      %2543 = vmatprep.subr.mxu0 0.0
      %2544 = vmatpush1.xpose.msra.mxu0 0.0
      %2545 = vmatprep.subr.mxu0 0.0
      %2546 = vmatpush1.xpose.msra.mxu0 0.0
      %2547 = vmatprep.subr.mxu0 0.0
      %2548 = vmatpush1.xpose.msra.mxu0 0.0
      %2549 = vmatprep.subr.mxu0 0.0
      %2550 = vmatpush1.xpose.msra.mxu0 0.0
      %2551 = vmatprep.subr.mxu0 0.0
      %2552 = vmatpush1.xpose.msra.mxu0 0.0
      %2553 = vmatprep.mubr.f32.mxu0 0.0
      %2554 = vmatmul.mubr.f32.gmra.mrb[0].mxu0 %v2457
      %v2555 = vpop.f32.mrb[0].mxu0
      %v2556 = vadd.f32 %v2417, %v2555
      %v2557 = vpop.f32.mrb[0].mxu0
      %2558 = vmatprep.mubr.f32.mxu0 0.0
      %2559 = vmatmul.mubr.f32.gmra.mrb[0].mxu0 %v2459
      %v2560 = vpop.f32.mrb[0].mxu0
      %v2561 = vadd.f32 %v2418, %v2560
      %v2562 = vpop.f32.mrb[0].mxu0
      %2563 = vmatprep.mubr.f32.mxu0 0.0
      %2564 = vmatmul.mubr.f32.gmra.mrb[0].mxu0 %v2461
      %v2565 = vpop.f32.mrb[0].mxu0
      %v2566 = vadd.f32 %v2419, %v2565
      %v2567 = vpop.f32.mrb[0].mxu0
      %2568 = vmatprep.mubr.f32.mxu0 0.0
      %2569 = vmatmul.mubr.f32.gmra.mrb[0].mxu0 %v2463
      %v2570 = vpop.f32.mrb[0].mxu0
      %v2571 = vadd.f32 %v2420, %v2570
      %v2572 = vpop.f32.mrb[0].mxu0
      %2573 = vmatprep.mubr.f32.mxu0 0.0
      %2574 = vmatmul.mubr.f32.gmra.mrb[0].mxu0 %v2465
      %v2575 = vpop.f32.mrb[0].mxu0
      %v2576 = vadd.f32 %v2421, %v2575
      %v2577 = vpop.f32.mrb[0].mxu0
      %2578 = vmatprep.mubr.f32.mxu0 0.0
      %2579 = vmatmul.mubr.f32.gmra.mrb[0].mxu0 %v2467
      %v2580 = vpop.f32.mrb[0].mxu0
      %v2581 = vadd.f32 %v2422, %v2580
      %v2582 = vpop.f32.mrb[0].mxu0
      %2583 = vmatprep.mubr.f32.mxu0 0.0
      %2584 = vmatmul.mubr.f32.gmra.mrb[0].mxu0 %v2469
      %v2585 = vpop.f32.mrb[0].mxu0
      %v2586 = vadd.f32 %v2423, %v2585
      %v2587 = vpop.f32.mrb[0].mxu0
      %2588 = vmatprep.mubr.f32.mxu0 0.0
      %2589 = vmatmul.mubr.f32.gmra.mrb[0].mxu0 %v2471
      %v2590 = vpop.f32.mrb[0].mxu0
      %v2591 = vadd.f32 %v2424, %v2590
      %v2592 = vpop.f32.mrb[0].mxu0
      %2593 = vdwg.mxu0
      %v2594 = vsel %vm938, %v2556, -inf
      %2595 = vmax.xlane.f32.xlu0 %v2594
      %v2596 = vpop.xlane.xlu0 %2595
      %v2597 = vsel %vm938, %v2561, -inf
      %2598 = vmax.xlane.f32.xlu0 %v2597
      %v2599 = vpop.xlane.xlu0 %2598
      %v2600 = vsel %vm938, %v2566, -inf
      %2601 = vmax.xlane.f32.xlu0 %v2600
      %v2602 = vpop.xlane.xlu0 %2601
      %v2603 = vsel %vm938, %v2571, -inf
      %2604 = vmax.xlane.f32.xlu0 %v2603
      %v2605 = vpop.xlane.xlu0 %2604
      %v2606 = vsel %vm938, %v2576, -inf
      %2607 = vmax.xlane.f32.xlu0 %v2606
      %v2608 = vpop.xlane.xlu0 %2607
      %v2609 = vsel %vm938, %v2581, -inf
      %2610 = vmax.xlane.f32.xlu0 %v2609
      %v2611 = vpop.xlane.xlu0 %2610
      %v2612 = vsel %vm938, %v2586, -inf
      %2613 = vmax.xlane.f32.xlu0 %v2612
      %v2614 = vpop.xlane.xlu0 %2613
      %v2615 = vsel %vm938, %v2591, -inf
      %2616 = vmax.xlane.f32.xlu0 %v2615
      %v2617 = vpop.xlane.xlu0 %2616
      %v2618 = vsub.f32 %v2556, %v2596
      %v2619 = vsub.f32 %v2561, %v2599
      %v2620 = vsub.f32 %v2566, %v2602
      %v2621 = vsub.f32 %v2571, %v2605
      %v2622 = vsub.f32 %v2576, %v2608
      %v2623 = vsub.f32 %v2581, %v2611
      %v2624 = vsub.f32 %v2586, %v2614
      %v2625 = vsub.f32 %v2591, %v2617
      %v2626 = vmul.f32 %v2618, 1.442695
      %v2627 = vpow.pop %v2626
      %v2628 = vmul.f32 %v2619, 1.442695
      %v2629 = vpow.pop %v2628
      %v2630 = vmul.f32 %v2620, 1.442695
      %v2631 = vpow.pop %v2630
      %v2632 = vmul.f32 %v2621, 1.442695
      %v2633 = vpow.pop %v2632
      %v2634 = vmul.f32 %v2622, 1.442695
      %v2635 = vpow.pop %v2634
      %v2636 = vmul.f32 %v2623, 1.442695
      %v2637 = vpow.pop %v2636
      %v2638 = vmul.f32 %v2624, 1.442695
      %v2639 = vpow.pop %v2638
      %v2640 = vmul.f32 %v2625, 1.442695
      %v2641 = vpow.pop %v2640
      %v2642 = vsel %vm938, %v2627, 0.0
      %2643 = vadd.xlane.f32.xlu0 %v2642
      %v2644 = vpop.xlane.xlu0 %2643
      %v2645 = vsel %vm938, %v2629, 0.0
      %2646 = vadd.xlane.f32.xlu0 %v2645
      %v2647 = vpop.xlane.xlu0 %2646
      %v2648 = vsel %vm938, %v2631, 0.0
      %2649 = vadd.xlane.f32.xlu0 %v2648
      %v2650 = vpop.xlane.xlu0 %2649
      %v2651 = vsel %vm938, %v2633, 0.0
      %2652 = vadd.xlane.f32.xlu0 %v2651
      %v2653 = vpop.xlane.xlu0 %2652
      %v2654 = vsel %vm938, %v2635, 0.0
      %2655 = vadd.xlane.f32.xlu0 %v2654
      %v2656 = vpop.xlane.xlu0 %2655
      %v2657 = vsel %vm938, %v2637, 0.0
      %2658 = vadd.xlane.f32.xlu0 %v2657
      %v2659 = vpop.xlane.xlu0 %2658
      %v2660 = vsel %vm938, %v2639, 0.0
      %2661 = vadd.xlane.f32.xlu0 %v2660
      %v2662 = vpop.xlane.xlu0 %2661
      %v2663 = vsel %vm938, %v2641, 0.0
      %2664 = vadd.xlane.f32.xlu0 %v2663
      %v2665 = vpop.xlane.xlu0 %2664
      %v2666 = vrcp.pop %v2644
      %v2667 = vrcp.pop %v2647
      %v2668 = vrcp.pop %v2650
      %v2669 = vrcp.pop %v2653
      %v2670 = vrcp.pop %v2656
      %v2671 = vrcp.pop %v2659
      %v2672 = vrcp.pop %v2662
      %v2673 = vrcp.pop %v2665
      %v2674 = vmul.f32 %v2627, %v2666
      %v2675 = vmul.f32 %v2629, %v2667
      %v2676 = vmul.f32 %v2631, %v2668
      %v2677 = vmul.f32 %v2633, %v2669
      %v2678 = vmul.f32 %v2635, %v2670
      %v2679 = vmul.f32 %v2637, %v2671
      %v2680 = vmul.f32 %v2639, %v2672
      %v2681 = vmul.f32 %v2641, %v2673
      %2682 = vrot.lane.b32.xlu0 %v714, 40
      %v2683 = vpop.permute.xlu0 %2682
      %2684 = vrot.lane.b32.xlu0 %v719, 40
      %v2685 = vpop.permute.xlu0 %2684
      %2686 = vrot.lane.b32.xlu0 %v724, 40
      %v2687 = vpop.permute.xlu0 %2686
      %2688 = vrot.lane.b32.xlu0 %v729, 40
      %v2689 = vpop.permute.xlu0 %2688
      %2690 = vrot.lane.b32.xlu0 %v734, 40
      %v2691 = vpop.permute.xlu0 %2690
      %2692 = vrot.lane.b32.xlu0 %v739, 40
      %v2693 = vpop.permute.xlu0 %2692
      %2694 = vrot.lane.b32.xlu0 %v744, 40
      %v2695 = vpop.permute.xlu0 %2694
      %2696 = vrot.lane.b32.xlu0 %v749, 40
      %v2697 = vpop.permute.xlu0 %2696
      %v2707 = vsel %vm938, %v2674, 0
      %v2710 = vsel %vm938, %v2675, 0
      %v2713 = vsel %vm938, %v2676, 0
      %v2716 = vsel %vm938, %v2677, 0
      %v2719 = vsel %vm938, %v2678, 0
      %v2722 = vsel %vm938, %v2679, 0
      %v2725 = vsel %vm938, %v2680, 0
      %v2728 = vsel %vm938, %v2681, 0
      %2730 = vmatprep.subr.mxu0 0.0
      %2731 = vmatpush1.msra.mxu0 %v2683
      %2732 = vmatprep.subr.mxu0 0.0
      %2733 = vmatpush1.msra.mxu0 %v2685
      %2734 = vmatprep.subr.mxu0 0.0
      %2735 = vmatpush1.msra.mxu0 %v2687
      %2736 = vmatprep.subr.mxu0 0.0
      %2737 = vmatpush1.msra.mxu0 %v2689
      %2738 = vmatprep.subr.mxu0 0.0
      %2739 = vmatpush1.msra.mxu0 %v2691
      %2740 = vmatprep.subr.mxu0 0.0
      %2741 = vmatpush1.msra.mxu0 %v2693
      %2742 = vmatprep.subr.mxu0 0.0
      %2743 = vmatpush1.msra.mxu0 %v2695
      %2744 = vmatprep.subr.mxu0 0.0
      %2745 = vmatpush1.msra.mxu0 %v2697
      %2746 = vmatprep.subr.mxu0 0.0
      %2747 = vmatpush1.msra.mxu0 0.0
      %2748 = vmatprep.subr.mxu0 0.0
      %2749 = vmatpush1.msra.mxu0 0.0
      %2750 = vmatprep.subr.mxu0 0.0
      %2751 = vmatpush1.msra.mxu0 0.0
      %2752 = vmatprep.subr.mxu0 0.0
      %2753 = vmatpush1.msra.mxu0 0.0
      %2754 = vmatprep.subr.mxu0 0.0
      %2755 = vmatpush1.msra.mxu0 0.0
      %2756 = vmatprep.subr.mxu0 0.0
      %2757 = vmatpush1.msra.mxu0 0.0
      %2758 = vmatprep.subr.mxu0 0.0
      %2759 = vmatpush1.msra.mxu0 0.0
      %2760 = vmatprep.subr.mxu0 0.0
      %2761 = vmatpush1.msra.mxu0 0.0
      %2762 = vmatprep.subr.mxu0 0.0
      %2763 = vmatpush1.msra.mxu0 0.0
      %2764 = vmatprep.subr.mxu0 0.0
      %2765 = vmatpush1.msra.mxu0 0.0
      %2766 = vmatprep.subr.mxu0 0.0
      %2767 = vmatpush1.msra.mxu0 0.0
      %2768 = vmatprep.subr.mxu0 0.0
      %2769 = vmatpush1.msra.mxu0 0.0
      %2770 = vmatprep.subr.mxu0 0.0
      %2771 = vmatpush1.msra.mxu0 0.0
      %2772 = vmatprep.subr.mxu0 0.0
      %2773 = vmatpush1.msra.mxu0 0.0
      %2774 = vmatprep.subr.mxu0 0.0
      %2775 = vmatpush1.msra.mxu0 0.0
      %2776 = vmatprep.subr.mxu0 0.0
      %2777 = vmatpush1.msra.mxu0 0.0
      %2778 = vmatprep.subr.mxu0 0.0
      %2779 = vmatpush1.msra.mxu0 0.0
      %2780 = vmatprep.subr.mxu0 0.0
      %2781 = vmatpush1.msra.mxu0 0.0
      %2782 = vmatprep.subr.mxu0 0.0
      %2783 = vmatpush1.msra.mxu0 0.0
      %2784 = vmatprep.subr.mxu0 0.0
      %2785 = vmatpush1.msra.mxu0 0.0
      %2786 = vmatprep.subr.mxu0 0.0
      %2787 = vmatpush1.msra.mxu0 0.0
      %2788 = vmatprep.subr.mxu0 0.0
      %2789 = vmatpush1.msra.mxu0 0.0
      %2790 = vmatprep.subr.mxu0 0.0
      %2791 = vmatpush1.msra.mxu0 0.0
      %2792 = vmatprep.subr.mxu0 0.0
      %2793 = vmatpush1.msra.mxu0 0.0
      %2794 = vmatprep.mubr.f32.mxu0 0.0
      %2795 = vmatmul.mubr.f32.gmra.mrb[0].mxu0 %v2707
      %v2796 = vpop.f32.mrb[0].mxu0
      %v2797 = vadd.f32 0.0, %v2796
      %v2798 = vpop.f32.mrb[0].mxu0
      %2799 = vmatprep.mubr.f32.mxu0 0.0
      %2800 = vmatmul.mubr.f32.gmra.mrb[0].mxu0 %v2710
      %v2801 = vpop.f32.mrb[0].mxu0
      %v2802 = vadd.f32 0.0, %v2801
      %v2803 = vpop.f32.mrb[0].mxu0
      %2804 = vmatprep.mubr.f32.mxu0 0.0
      %2805 = vmatmul.mubr.f32.gmra.mrb[0].mxu0 %v2713
      %v2806 = vpop.f32.mrb[0].mxu0
      %v2807 = vadd.f32 0.0, %v2806
      %v2808 = vpop.f32.mrb[0].mxu0
      %2809 = vmatprep.mubr.f32.mxu0 0.0
      %2810 = vmatmul.mubr.f32.gmra.mrb[0].mxu0 %v2716
      %v2811 = vpop.f32.mrb[0].mxu0
      %v2812 = vadd.f32 0.0, %v2811
      %v2813 = vpop.f32.mrb[0].mxu0
      %2814 = vmatprep.mubr.f32.mxu0 0.0
      %2815 = vmatmul.mubr.f32.gmra.mrb[0].mxu0 %v2719
      %v2816 = vpop.f32.mrb[0].mxu0
      %v2817 = vadd.f32 0.0, %v2816
      %v2818 = vpop.f32.mrb[0].mxu0
      %2819 = vmatprep.mubr.f32.mxu0 0.0
      %2820 = vmatmul.mubr.f32.gmra.mrb[0].mxu0 %v2722
      %v2821 = vpop.f32.mrb[0].mxu0
      %v2822 = vadd.f32 0.0, %v2821
      %v2823 = vpop.f32.mrb[0].mxu0
      %2824 = vmatprep.mubr.f32.mxu0 0.0
      %2825 = vmatmul.mubr.f32.gmra.mrb[0].mxu0 %v2725
      %v2826 = vpop.f32.mrb[0].mxu0
      %v2827 = vadd.f32 0.0, %v2826
      %v2828 = vpop.f32.mrb[0].mxu0
      %2829 = vmatprep.mubr.f32.mxu0 0.0
      %2830 = vmatmul.mubr.f32.gmra.mrb[0].mxu0 %v2728
      %v2831 = vpop.f32.mrb[0].mxu0
      %v2832 = vadd.f32 0.0, %v2831
      %v2833 = vpop.f32.mrb[0].mxu0
      %2834 = vdwg.mxu0
      %v2835 = vld [vmem:[%s4 + $0x18] sm:$0xff]
      %v2837 = vsel %vm792, %v2797, 0
      %v2840 = vsel %vm792, %v2802, 0
      %v2843 = vsel %vm792, %v2807, 0
      %v2846 = vsel %vm792, %v2812, 0
      %v2849 = vsel %vm792, %v2817, 0
      %v2852 = vsel %vm792, %v2822, 0
      %v2855 = vsel %vm792, %v2827, 0
      %v2858 = vsel %vm792, %v2832, 0
      %2860 = vmatprep.subr.mxu0 0.0
      %2861 = vmatpush1.msra.mxu0 %v2835
      %2862 = vmatprep.subr.mxu0 0.0
      %2863 = vmatpush1.msra.mxu0 0.0
      %2864 = vmatprep.subr.mxu0 0.0
      %2865 = vmatpush1.msra.mxu0 0.0
      %2866 = vmatprep.subr.mxu0 0.0
      %2867 = vmatpush1.msra.mxu0 0.0
      %2868 = vmatprep.subr.mxu0 0.0
      %2869 = vmatpush1.msra.mxu0 0.0
      %2870 = vmatprep.subr.mxu0 0.0
      %2871 = vmatpush1.msra.mxu0 0.0
      %2872 = vmatprep.subr.mxu0 0.0
      %2873 = vmatpush1.msra.mxu0 0.0
      %2874 = vmatprep.subr.mxu0 0.0
      %2875 = vmatpush1.msra.mxu0 0.0
      %2876 = vmatprep.subr.mxu0 0.0
      %2877 = vmatpush1.msra.mxu0 0.0
      %2878 = vmatprep.subr.mxu0 0.0
      %2879 = vmatpush1.msra.mxu0 0.0
      %2880 = vmatprep.subr.mxu0 0.0
      %2881 = vmatpush1.msra.mxu0 0.0
      %2882 = vmatprep.subr.mxu0 0.0
      %2883 = vmatpush1.msra.mxu0 0.0
      %2884 = vmatprep.subr.mxu0 0.0
      %2885 = vmatpush1.msra.mxu0 0.0
      %2886 = vmatprep.subr.mxu0 0.0
      %2887 = vmatpush1.msra.mxu0 0.0
      %2888 = vmatprep.subr.mxu0 0.0
      %2889 = vmatpush1.msra.mxu0 0.0
      %2890 = vmatprep.subr.mxu0 0.0
      %2891 = vmatpush1.msra.mxu0 0.0
      %2892 = vmatprep.subr.mxu0 0.0
      %2893 = vmatpush1.msra.mxu0 0.0
      %2894 = vmatprep.subr.mxu0 0.0
      %2895 = vmatpush1.msra.mxu0 0.0
      %2896 = vmatprep.subr.mxu0 0.0
      %2897 = vmatpush1.msra.mxu0 0.0
      %2898 = vmatprep.subr.mxu0 0.0
      %2899 = vmatpush1.msra.mxu0 0.0
      %2900 = vmatprep.subr.mxu0 0.0
      %2901 = vmatpush1.msra.mxu0 0.0
      %2902 = vmatprep.subr.mxu0 0.0
      %2903 = vmatpush1.msra.mxu0 0.0
      %2904 = vmatprep.subr.mxu0 0.0
      %2905 = vmatpush1.msra.mxu0 0.0
      %2906 = vmatprep.subr.mxu0 0.0
      %2907 = vmatpush1.msra.mxu0 0.0
      %2908 = vmatprep.subr.mxu0 0.0
      %2909 = vmatpush1.msra.mxu0 0.0
      %2910 = vmatprep.subr.mxu0 0.0
      %2911 = vmatpush1.msra.mxu0 0.0
      %2912 = vmatprep.subr.mxu0 0.0
      %2913 = vmatpush1.msra.mxu0 0.0
      %2914 = vmatprep.subr.mxu0 0.0
      %2915 = vmatpush1.msra.mxu0 0.0
      %2916 = vmatprep.subr.mxu0 0.0
      %2917 = vmatpush1.msra.mxu0 0.0
      %2918 = vmatprep.subr.mxu0 0.0
      %2919 = vmatpush1.msra.mxu0 0.0
      %2920 = vmatprep.subr.mxu0 0.0
      %2921 = vmatpush1.msra.mxu0 0.0
      %2922 = vmatprep.subr.mxu0 0.0
      %2923 = vmatpush1.msra.mxu0 0.0
      %2924 = vmatprep.mubr.f32.mxu0 0.0
      %2925 = vmatmul.mubr.f32.gmra.mrb[0].mxu0 %v2837
      %v2926 = vpop.f32.mrb[0].mxu0
      %v2927 = vadd.f32 0.0, %v2926
      %v2928 = vpop.f32.mrb[0].mxu0
      %2929 = vmatprep.mubr.f32.mxu0 0.0
      %2930 = vmatmul.mubr.f32.gmra.mrb[0].mxu0 %v2840
      %v2931 = vpop.f32.mrb[0].mxu0
      %v2932 = vadd.f32 0.0, %v2931
      %v2933 = vpop.f32.mrb[0].mxu0
      %2934 = vmatprep.mubr.f32.mxu0 0.0
      %2935 = vmatmul.mubr.f32.gmra.mrb[0].mxu0 %v2843
      %v2936 = vpop.f32.mrb[0].mxu0
      %v2937 = vadd.f32 0.0, %v2936
      %v2938 = vpop.f32.mrb[0].mxu0
      %2939 = vmatprep.mubr.f32.mxu0 0.0
      %2940 = vmatmul.mubr.f32.gmra.mrb[0].mxu0 %v2846
      %v2941 = vpop.f32.mrb[0].mxu0
      %v2942 = vadd.f32 0.0, %v2941
      %v2943 = vpop.f32.mrb[0].mxu0
      %2944 = vmatprep.mubr.f32.mxu0 0.0
      %2945 = vmatmul.mubr.f32.gmra.mrb[0].mxu0 %v2849
      %v2946 = vpop.f32.mrb[0].mxu0
      %v2947 = vadd.f32 0.0, %v2946
      %v2948 = vpop.f32.mrb[0].mxu0
      %2949 = vmatprep.mubr.f32.mxu0 0.0
      %2950 = vmatmul.mubr.f32.gmra.mrb[0].mxu0 %v2852
      %v2951 = vpop.f32.mrb[0].mxu0
      %v2952 = vadd.f32 0.0, %v2951
      %v2953 = vpop.f32.mrb[0].mxu0
      %2954 = vmatprep.mubr.f32.mxu0 0.0
      %2955 = vmatmul.mubr.f32.gmra.mrb[0].mxu0 %v2855
      %v2956 = vpop.f32.mrb[0].mxu0
      %v2957 = vadd.f32 0.0, %v2956
      %v2958 = vpop.f32.mrb[0].mxu0
      %2959 = vmatprep.mubr.f32.mxu0 0.0
      %2960 = vmatmul.mubr.f32.gmra.mrb[0].mxu0 %v2858
      %v2961 = vpop.f32.mrb[0].mxu0
      %v2962 = vadd.f32 0.0, %v2961
      %v2963 = vpop.f32.mrb[0].mxu0
      %2964 = vdwg.mxu0
      %v2965 = vadd.f32 %v2408, %v2927
      %v2966 = vadd.f32 %v2409, %v2932
      %v2967 = vadd.f32 %v2410, %v2937
      %v2968 = vadd.f32 %v2411, %v2942
      %v2969 = vadd.f32 %v2412, %v2947
      %v2970 = vadd.f32 %v2413, %v2952
      %v2971 = vadd.f32 %v2414, %v2957
      %v2972 = vadd.f32 %v2415, %v2962
      %v2973 = vadd.f32 %v468, %v2965
      %v2974 = vadd.f32 %v469, %v2966
      %v2975 = vadd.f32 %v470, %v2967
      %v2976 = vadd.f32 %v471, %v2968
      %v2977 = vadd.f32 %v472, %v2969
      %v2978 = vadd.f32 %v473, %v2970
      %v2979 = vadd.f32 %v474, %v2971
      %v2980 = vadd.f32 %v475, %v2972
      %v2981 = vld [vmem:[%s5] sm:$0x1]
      %v2983 = vlaneseq
      %v2984 = vshrl.u32 %v2983, 7
      %v2985 = vsub.s32 0, %v2984
      %v2986 = vrot.slane %v2981, %v2985
      %v2988 = vadd.f32 %v2973, %v2986
      %v2989 = vadd.f32 %v2974, %v2986
      %v2990 = vadd.f32 %v2975, %v2986
      %v2991 = vadd.f32 %v2976, %v2986
      %v2992 = vadd.f32 %v2977, %v2986
      %v2993 = vadd.f32 %v2978, %v2986
      %v2994 = vadd.f32 %v2979, %v2986
      %v2995 = vadd.f32 %v2980, %v2986
      %v2996 = vsel %vm476, %v2988, 0.0
      %2997 = vadd.xlane.f32.xlu0 %v2996
      %v2998 = vpop.xlane.xlu0 %2997
      %v2999 = vsel %vm476, %v2989, 0.0
      %3000 = vadd.xlane.f32.xlu0 %v2999
      %v3001 = vpop.xlane.xlu0 %3000
      %v3002 = vsel %vm476, %v2990, 0.0
      %3003 = vadd.xlane.f32.xlu0 %v3002
      %v3004 = vpop.xlane.xlu0 %3003
      %v3005 = vsel %vm476, %v2991, 0.0
      %3006 = vadd.xlane.f32.xlu0 %v3005
      %v3007 = vpop.xlane.xlu0 %3006
      %v3008 = vsel %vm476, %v2992, 0.0
      %3009 = vadd.xlane.f32.xlu0 %v3008
      %v3010 = vpop.xlane.xlu0 %3009
      %v3011 = vsel %vm476, %v2993, 0.0
      %3012 = vadd.xlane.f32.xlu0 %v3011
      %v3013 = vpop.xlane.xlu0 %3012
      %v3014 = vsel %vm476, %v2994, 0.0
      %3015 = vadd.xlane.f32.xlu0 %v3014
      %v3016 = vpop.xlane.xlu0 %3015
      %v3017 = vsel %vm476, %v2995, 0.0
      %3018 = vadd.xlane.f32.xlu0 %v3017
      %v3019 = vpop.xlane.xlu0 %3018
      %v3020 = vmul.f32 %v2998, %v501
      %v3021 = vmul.f32 %v3001, %v501
      %v3022 = vmul.f32 %v3004, %v501
      %v3023 = vmul.f32 %v3007, %v501
      %v3024 = vmul.f32 %v3010, %v501
      %v3025 = vmul.f32 %v3013, %v501
      %v3026 = vmul.f32 %v3016, %v501
      %v3027 = vmul.f32 %v3019, %v501
      %v3028 = vsub.f32 %v2988, %v3020
      %v3029 = vsub.f32 %v2989, %v3021
      %v3030 = vsub.f32 %v2990, %v3022
      %v3031 = vsub.f32 %v2991, %v3023
      %v3032 = vsub.f32 %v2992, %v3024
      %v3033 = vsub.f32 %v2993, %v3025
      %v3034 = vsub.f32 %v2994, %v3026
      %v3035 = vsub.f32 %v2995, %v3027
      %v3036 = vmul.f32 %v3028, %v3028
      %v3037 = vmul.f32 %v3029, %v3029
      %v3038 = vmul.f32 %v3030, %v3030
      %v3039 = vmul.f32 %v3031, %v3031
      %v3040 = vmul.f32 %v3032, %v3032
      %v3041 = vmul.f32 %v3033, %v3033
      %v3042 = vmul.f32 %v3034, %v3034
      %v3043 = vmul.f32 %v3035, %v3035
      %v3044 = vsel %vm476, %v3036, 0.0
      %3045 = vadd.xlane.f32.xlu0 %v3044
      %v3046 = vpop.xlane.xlu0 %3045
      %v3047 = vsel %vm476, %v3037, 0.0
      %3048 = vadd.xlane.f32.xlu0 %v3047
      %v3049 = vpop.xlane.xlu0 %3048
      %v3050 = vsel %vm476, %v3038, 0.0
      %3051 = vadd.xlane.f32.xlu0 %v3050
      %v3052 = vpop.xlane.xlu0 %3051
      %v3053 = vsel %vm476, %v3039, 0.0
      %3054 = vadd.xlane.f32.xlu0 %v3053
      %v3055 = vpop.xlane.xlu0 %3054
      %v3056 = vsel %vm476, %v3040, 0.0
      %3057 = vadd.xlane.f32.xlu0 %v3056
      %v3058 = vpop.xlane.xlu0 %3057
      %v3059 = vsel %vm476, %v3041, 0.0
      %3060 = vadd.xlane.f32.xlu0 %v3059
      %v3061 = vpop.xlane.xlu0 %3060
      %v3062 = vsel %vm476, %v3042, 0.0
      %3063 = vadd.xlane.f32.xlu0 %v3062
      %v3064 = vpop.xlane.xlu0 %3063
      %v3065 = vsel %vm476, %v3043, 0.0
      %3066 = vadd.xlane.f32.xlu0 %v3065
      %v3067 = vpop.xlane.xlu0 %3066
      %v3068 = vmul.f32 %v3046, %v501
      %v3069 = vmul.f32 %v3049, %v501
      %v3070 = vmul.f32 %v3052, %v501
      %v3071 = vmul.f32 %v3055, %v501
      %v3072 = vmul.f32 %v3058, %v501
      %v3073 = vmul.f32 %v3061, %v501
      %v3074 = vmul.f32 %v3064, %v501
      %v3075 = vmul.f32 %v3067, %v501
      %v3076 = vadd.f32 %v3068, 1e-05
      %v3077 = vadd.f32 %v3069, 1e-05
      %v3078 = vadd.f32 %v3070, 1e-05
      %v3079 = vadd.f32 %v3071, 1e-05
      %v3080 = vadd.f32 %v3072, 1e-05
      %v3081 = vadd.f32 %v3073, 1e-05
      %v3082 = vadd.f32 %v3074, 1e-05
      %v3083 = vadd.f32 %v3075, 1e-05
      %v3084 = vrsqrt.pop %v3076
      %v3085 = vrsqrt.pop %v3077
      %v3086 = vrsqrt.pop %v3078
      %v3087 = vrsqrt.pop %v3079
      %v3088 = vrsqrt.pop %v3080
      %v3089 = vrsqrt.pop %v3081
      %v3090 = vrsqrt.pop %v3082
      %v3091 = vrsqrt.pop %v3083
      %v3092 = vmul.f32 %v3028, %v3084
      %v3093 = vmul.f32 %v3029, %v3085
      %v3094 = vmul.f32 %v3030, %v3086
      %v3095 = vmul.f32 %v3031, %v3087
      %v3096 = vmul.f32 %v3032, %v3088
      %v3097 = vmul.f32 %v3033, %v3089
      %v3098 = vmul.f32 %v3034, %v3090
      %v3099 = vmul.f32 %v3035, %v3091
      %v3100 = vld [vmem:[%s8] sm:$0x1]
      %v3102 = vlaneseq
      %v3103 = vshrl.u32 %v3102, 7
      %v3104 = vsub.s32 0, %v3103
      %v3105 = vrot.slane %v3100, %v3104
      %v3107 = vmul.f32 %v3092, %v3105
      %v3108 = vmul.f32 %v3093, %v3105
      %v3109 = vmul.f32 %v3094, %v3105
      %v3110 = vmul.f32 %v3095, %v3105
      %v3111 = vmul.f32 %v3096, %v3105
      %v3112 = vmul.f32 %v3097, %v3105
      %v3113 = vmul.f32 %v3098, %v3105
      %v3114 = vmul.f32 %v3099, %v3105
      %v3115 = vld [vmem:[%s9] sm:$0x1]
      %v3117 = vlaneseq
      %v3118 = vshrl.u32 %v3117, 7
      %v3119 = vsub.s32 0, %v3118
      %v3120 = vrot.slane %v3115, %v3119
      %v3122 = vadd.f32 %v3107, %v3120
      %v3123 = vadd.f32 %v3108, %v3120
      %v3124 = vadd.f32 %v3109, %v3120
      %v3125 = vadd.f32 %v3110, %v3120
      %v3126 = vadd.f32 %v3111, %v3120
      %v3127 = vadd.f32 %v3112, %v3120
      %v3128 = vadd.f32 %v3113, %v3120
      %v3129 = vadd.f32 %v3114, %v3120
      %v3130 = vld [vmem:[%s10] sm:$0xff]
      %v3131 = vld [vmem:[%s10 + $0x8] sm:$0xff]
      %v3132 = vld [vmem:[%s10 + $0x10] sm:$0xff]
      %v3133 = vld [vmem:[%s10 + $0x18] sm:$0xff]
      %v3134 = vld [vmem:[%s11] sm:$0x1]
      %v3136 = vlaneseq
      %v3137 = vshrl.u32 %v3136, 7
      %v3138 = vsub.s32 0, %v3137
      %v3139 = vrot.slane %v3134, %v3138
      %v3142 = vsel %vm476, %v3122, 0
      %v3145 = vsel %vm476, %v3123, 0
      %v3148 = vsel %vm476, %v3124, 0
      %v3151 = vsel %vm476, %v3125, 0
      %v3154 = vsel %vm476, %v3126, 0
      %v3157 = vsel %vm476, %v3127, 0
      %v3160 = vsel %vm476, %v3128, 0
      %v3163 = vsel %vm476, %v3129, 0
      %3165 = vmatprep.subr.mxu0 0.0
      %3166 = vmatpush1.msra.mxu0 %v3130
      %3167 = vmatprep.subr.mxu0 0.0
      %3168 = vmatpush1.msra.mxu0 %v3131
      %3169 = vmatprep.subr.mxu0 0.0
      %3170 = vmatpush1.msra.mxu0 %v3132
      %3171 = vmatprep.subr.mxu0 0.0
      %3172 = vmatpush1.msra.mxu0 %v3133
      %3173 = vmatprep.subr.mxu0 0.0
      %3174 = vmatpush1.msra.mxu0 0.0
      %3175 = vmatprep.subr.mxu0 0.0
      %3176 = vmatpush1.msra.mxu0 0.0
      %3177 = vmatprep.subr.mxu0 0.0
      %3178 = vmatpush1.msra.mxu0 0.0
      %3179 = vmatprep.subr.mxu0 0.0
      %3180 = vmatpush1.msra.mxu0 0.0
      %3181 = vmatprep.subr.mxu0 0.0
      %3182 = vmatpush1.msra.mxu0 0.0
      %3183 = vmatprep.subr.mxu0 0.0
      %3184 = vmatpush1.msra.mxu0 0.0
      %3185 = vmatprep.subr.mxu0 0.0
      %3186 = vmatpush1.msra.mxu0 0.0
      %3187 = vmatprep.subr.mxu0 0.0
      %3188 = vmatpush1.msra.mxu0 0.0
      %3189 = vmatprep.subr.mxu0 0.0
      %3190 = vmatpush1.msra.mxu0 0.0
      %3191 = vmatprep.subr.mxu0 0.0
      %3192 = vmatpush1.msra.mxu0 0.0
      %3193 = vmatprep.subr.mxu0 0.0
      %3194 = vmatpush1.msra.mxu0 0.0
      %3195 = vmatprep.subr.mxu0 0.0
      %3196 = vmatpush1.msra.mxu0 0.0
      %3197 = vmatprep.subr.mxu0 0.0
      %3198 = vmatpush1.msra.mxu0 0.0
      %3199 = vmatprep.subr.mxu0 0.0
      %3200 = vmatpush1.msra.mxu0 0.0
      %3201 = vmatprep.subr.mxu0 0.0
      %3202 = vmatpush1.msra.mxu0 0.0
      %3203 = vmatprep.subr.mxu0 0.0
      %3204 = vmatpush1.msra.mxu0 0.0
      %3205 = vmatprep.subr.mxu0 0.0
      %3206 = vmatpush1.msra.mxu0 0.0
      %3207 = vmatprep.subr.mxu0 0.0
      %3208 = vmatpush1.msra.mxu0 0.0
      %3209 = vmatprep.subr.mxu0 0.0
      %3210 = vmatpush1.msra.mxu0 0.0
      %3211 = vmatprep.subr.mxu0 0.0
      %3212 = vmatpush1.msra.mxu0 0.0
      %3213 = vmatprep.subr.mxu0 0.0
      %3214 = vmatpush1.msra.mxu0 0.0
      %3215 = vmatprep.subr.mxu0 0.0
      %3216 = vmatpush1.msra.mxu0 0.0
      %3217 = vmatprep.subr.mxu0 0.0
      %3218 = vmatpush1.msra.mxu0 0.0
      %3219 = vmatprep.subr.mxu0 0.0
      %3220 = vmatpush1.msra.mxu0 0.0
      %3221 = vmatprep.subr.mxu0 0.0
      %3222 = vmatpush1.msra.mxu0 0.0
      %3223 = vmatprep.subr.mxu0 0.0
      %3224 = vmatpush1.msra.mxu0 0.0
      %3225 = vmatprep.subr.mxu0 0.0
      %3226 = vmatpush1.msra.mxu0 0.0
      %3227 = vmatprep.subr.mxu0 0.0
      %3228 = vmatpush1.msra.mxu0 0.0
      %3229 = vmatprep.mubr.f32.mxu0 0.0
      %3230 = vmatmul.mubr.f32.gmra.mrb[0].mxu0 %v3142
      %v3231 = vpop.f32.mrb[0].mxu0
      %v3232 = vadd.f32 %v3139, %v3231
      %v3233 = vpop.f32.mrb[0].mxu0
      %3234 = vmatprep.mubr.f32.mxu0 0.0
      %3235 = vmatmul.mubr.f32.gmra.mrb[0].mxu0 %v3145
      %v3236 = vpop.f32.mrb[0].mxu0
      %v3237 = vadd.f32 %v3139, %v3236
      %v3238 = vpop.f32.mrb[0].mxu0
      %3239 = vmatprep.mubr.f32.mxu0 0.0
      %3240 = vmatmul.mubr.f32.gmra.mrb[0].mxu0 %v3148
      %v3241 = vpop.f32.mrb[0].mxu0
      %v3242 = vadd.f32 %v3139, %v3241
      %v3243 = vpop.f32.mrb[0].mxu0
      %3244 = vmatprep.mubr.f32.mxu0 0.0
      %3245 = vmatmul.mubr.f32.gmra.mrb[0].mxu0 %v3151
      %v3246 = vpop.f32.mrb[0].mxu0
      %v3247 = vadd.f32 %v3139, %v3246
      %v3248 = vpop.f32.mrb[0].mxu0
      %3249 = vmatprep.mubr.f32.mxu0 0.0
      %3250 = vmatmul.mubr.f32.gmra.mrb[0].mxu0 %v3154
      %v3251 = vpop.f32.mrb[0].mxu0
      %v3252 = vadd.f32 %v3139, %v3251
      %v3253 = vpop.f32.mrb[0].mxu0
      %3254 = vmatprep.mubr.f32.mxu0 0.0
      %3255 = vmatmul.mubr.f32.gmra.mrb[0].mxu0 %v3157
      %v3256 = vpop.f32.mrb[0].mxu0
      %v3257 = vadd.f32 %v3139, %v3256
      %v3258 = vpop.f32.mrb[0].mxu0
      %3259 = vmatprep.mubr.f32.mxu0 0.0
      %3260 = vmatmul.mubr.f32.gmra.mrb[0].mxu0 %v3160
      %v3261 = vpop.f32.mrb[0].mxu0
      %v3262 = vadd.f32 %v3139, %v3261
      %v3263 = vpop.f32.mrb[0].mxu0
      %3264 = vmatprep.mubr.f32.mxu0 0.0
      %3265 = vmatmul.mubr.f32.gmra.mrb[0].mxu0 %v3163
      %v3266 = vpop.f32.mrb[0].mxu0
      %v3267 = vadd.f32 %v3139, %v3266
      %v3268 = vpop.f32.mrb[0].mxu0
      %3269 = vdwg.mxu0
      %v3270 = vmul.f32 %v3232, 0.5
      %v3271 = vmul.f32 %v3237, 0.5
      %v3272 = vmul.f32 %v3242, 0.5
      %v3273 = vmul.f32 %v3247, 0.5
      %v3274 = vmul.f32 %v3252, 0.5
      %v3275 = vmul.f32 %v3257, 0.5
      %v3276 = vmul.f32 %v3262, 0.5
      %v3277 = vmul.f32 %v3267, 0.5
      %v3278 = vmul.f32 %v3232, 0.70710677
      %v3279 = vmul.f32 %v3237, 0.70710677
      %v3280 = vmul.f32 %v3242, 0.70710677
      %v3281 = vmul.f32 %v3247, 0.70710677
      %v3282 = vmul.f32 %v3252, 0.70710677
      %v3283 = vmul.f32 %v3257, 0.70710677
      %v3284 = vmul.f32 %v3262, 0.70710677
      %v3285 = vmul.f32 %v3267, 0.70710677
      %v3286 = verf.f32.pop %v3278
      %v3287 = verf.f32.pop %v3279
      %v3288 = verf.f32.pop %v3280
      %v3289 = verf.f32.pop %v3281
      %v3290 = verf.f32.pop %v3282
      %v3291 = verf.f32.pop %v3283
      %v3292 = verf.f32.pop %v3284
      %v3293 = verf.f32.pop %v3285
      %v3294 = vadd.f32 %v3286, 1.0
      %v3295 = vadd.f32 %v3287, 1.0
      %v3296 = vadd.f32 %v3288, 1.0
      %v3297 = vadd.f32 %v3289, 1.0
      %v3298 = vadd.f32 %v3290, 1.0
      %v3299 = vadd.f32 %v3291, 1.0
      %v3300 = vadd.f32 %v3292, 1.0
      %v3301 = vadd.f32 %v3293, 1.0
      %v3302 = vmul.f32 %v3270, %v3294
      %v3303 = vmul.f32 %v3271, %v3295
      %v3304 = vmul.f32 %v3272, %v3296
      %v3305 = vmul.f32 %v3273, %v3297
      %v3306 = vmul.f32 %v3274, %v3298
      %v3307 = vmul.f32 %v3275, %v3299
      %v3308 = vmul.f32 %v3276, %v3300
      %v3309 = vmul.f32 %v3277, %v3301
      %v3310 = vld [vmem:[%s12] sm:$0xff]
      %v3311 = vld [vmem:[%s12 + $0x8] sm:$0xff]
      %v3312 = vld [vmem:[%s12 + $0x10] sm:$0xff]
      %v3313 = vld [vmem:[%s12 + $0x18] sm:$0xff]
      %v3314 = vld [vmem:[%s12 + $0x20] sm:$0xff]
      %v3315 = vld [vmem:[%s12 + $0x28] sm:$0xff]
      %v3316 = vld [vmem:[%s12 + $0x30] sm:$0xff]
      %v3317 = vld [vmem:[%s12 + $0x38] sm:$0xff]
      %v3318 = vld [vmem:[%s12 + $0x40] sm:$0xff]
      %v3319 = vld [vmem:[%s12 + $0x48] sm:$0xff]
      %v3320 = vld [vmem:[%s12 + $0x50] sm:$0xff]
      %v3321 = vld [vmem:[%s12 + $0x58] sm:$0xff]
      %v3322 = vld [vmem:[%s12 + $0x60] sm:$0xff]
      %v3323 = vld [vmem:[%s12 + $0x68] sm:$0xff]
      %v3324 = vld [vmem:[%s12 + $0x70] sm:$0xff]
      %v3325 = vld [vmem:[%s12 + $0x78] sm:$0xff]
      %v3326 = vld [vmem:[%s13] sm:$0x1]
      %v3328 = vlaneseq
      %v3329 = vshrl.u32 %v3328, 7
      %v3330 = vsub.s32 0, %v3329
      %v3331 = vrot.slane %v3326, %v3330
      %3333 = vmatprep.subr.mxu0 0.0
      %3334 = vmatpush1.msra.mxu0 %v3310
      %3335 = vmatprep.subr.mxu0 0.0
      %3336 = vmatpush1.msra.mxu0 %v3311
      %3337 = vmatprep.subr.mxu0 0.0
      %3338 = vmatpush1.msra.mxu0 %v3312
      %3339 = vmatprep.subr.mxu0 0.0
      %3340 = vmatpush1.msra.mxu0 %v3313
      %3341 = vmatprep.subr.mxu0 0.0
      %3342 = vmatpush1.msra.mxu0 %v3314
      %3343 = vmatprep.subr.mxu0 0.0
      %3344 = vmatpush1.msra.mxu0 %v3315
      %3345 = vmatprep.subr.mxu0 0.0
      %3346 = vmatpush1.msra.mxu0 %v3316
      %3347 = vmatprep.subr.mxu0 0.0
      %3348 = vmatpush1.msra.mxu0 %v3317
      %3349 = vmatprep.subr.mxu0 0.0
      %3350 = vmatpush1.msra.mxu0 %v3318
      %3351 = vmatprep.subr.mxu0 0.0
      %3352 = vmatpush1.msra.mxu0 %v3319
      %3353 = vmatprep.subr.mxu0 0.0
      %3354 = vmatpush1.msra.mxu0 %v3320
      %3355 = vmatprep.subr.mxu0 0.0
      %3356 = vmatpush1.msra.mxu0 %v3321
      %3357 = vmatprep.subr.mxu0 0.0
      %3358 = vmatpush1.msra.mxu0 %v3322
      %3359 = vmatprep.subr.mxu0 0.0
      %3360 = vmatpush1.msra.mxu0 %v3323
      %3361 = vmatprep.subr.mxu0 0.0
      %3362 = vmatpush1.msra.mxu0 %v3324
      %3363 = vmatprep.subr.mxu0 0.0
      %3364 = vmatpush1.msra.mxu0 %v3325
      %3365 = vmatprep.subr.mxu0 0.0
      %3366 = vmatpush1.msra.mxu0 0.0
      %3367 = vmatprep.subr.mxu0 0.0
      %3368 = vmatpush1.msra.mxu0 0.0
      %3369 = vmatprep.subr.mxu0 0.0
      %3370 = vmatpush1.msra.mxu0 0.0
      %3371 = vmatprep.subr.mxu0 0.0
      %3372 = vmatpush1.msra.mxu0 0.0
      %3373 = vmatprep.subr.mxu0 0.0
      %3374 = vmatpush1.msra.mxu0 0.0
      %3375 = vmatprep.subr.mxu0 0.0
      %3376 = vmatpush1.msra.mxu0 0.0
      %3377 = vmatprep.subr.mxu0 0.0
      %3378 = vmatpush1.msra.mxu0 0.0
      %3379 = vmatprep.subr.mxu0 0.0
      %3380 = vmatpush1.msra.mxu0 0.0
      %3381 = vmatprep.subr.mxu0 0.0
      %3382 = vmatpush1.msra.mxu0 0.0
      %3383 = vmatprep.subr.mxu0 0.0
      %3384 = vmatpush1.msra.mxu0 0.0
      %3385 = vmatprep.subr.mxu0 0.0
      %3386 = vmatpush1.msra.mxu0 0.0
      %3387 = vmatprep.subr.mxu0 0.0
      %3388 = vmatpush1.msra.mxu0 0.0
      %3389 = vmatprep.subr.mxu0 0.0
      %3390 = vmatpush1.msra.mxu0 0.0
      %3391 = vmatprep.subr.mxu0 0.0
      %3392 = vmatpush1.msra.mxu0 0.0
      %3393 = vmatprep.subr.mxu0 0.0
      %3394 = vmatpush1.msra.mxu0 0.0
      %3395 = vmatprep.subr.mxu0 0.0
      %3396 = vmatpush1.msra.mxu0 0.0
      %3397 = vmatprep.mubr.f32.mxu0 0.0
      %3398 = vmatmul.mubr.f32.gmra.mrb[0].mxu0 %v3302
      %v3399 = vpop.f32.mrb[0].mxu0
      %v3400 = vadd.f32 %v3331, %v3399
      %v3401 = vpop.f32.mrb[0].mxu0
      %3402 = vmatprep.mubr.f32.mxu0 0.0
      %3403 = vmatmul.mubr.f32.gmra.mrb[0].mxu0 %v3303
      %v3404 = vpop.f32.mrb[0].mxu0
      %v3405 = vadd.f32 %v3331, %v3404
      %v3406 = vpop.f32.mrb[0].mxu0
      %3407 = vmatprep.mubr.f32.mxu0 0.0
      %3408 = vmatmul.mubr.f32.gmra.mrb[0].mxu0 %v3304
      %v3409 = vpop.f32.mrb[0].mxu0
      %v3410 = vadd.f32 %v3331, %v3409
      %v3411 = vpop.f32.mrb[0].mxu0
      %3412 = vmatprep.mubr.f32.mxu0 0.0
      %3413 = vmatmul.mubr.f32.gmra.mrb[0].mxu0 %v3305
      %v3414 = vpop.f32.mrb[0].mxu0
      %v3415 = vadd.f32 %v3331, %v3414
      %v3416 = vpop.f32.mrb[0].mxu0
      %3417 = vmatprep.mubr.f32.mxu0 0.0
      %3418 = vmatmul.mubr.f32.gmra.mrb[0].mxu0 %v3306
      %v3419 = vpop.f32.mrb[0].mxu0
      %v3420 = vadd.f32 %v3331, %v3419
      %v3421 = vpop.f32.mrb[0].mxu0
      %3422 = vmatprep.mubr.f32.mxu0 0.0
      %3423 = vmatmul.mubr.f32.gmra.mrb[0].mxu0 %v3307
      %v3424 = vpop.f32.mrb[0].mxu0
      %v3425 = vadd.f32 %v3331, %v3424
      %v3426 = vpop.f32.mrb[0].mxu0
      %3427 = vmatprep.mubr.f32.mxu0 0.0
      %3428 = vmatmul.mubr.f32.gmra.mrb[0].mxu0 %v3308
      %v3429 = vpop.f32.mrb[0].mxu0
      %v3430 = vadd.f32 %v3331, %v3429
      %v3431 = vpop.f32.mrb[0].mxu0
      %3432 = vmatprep.mubr.f32.mxu0 0.0
      %3433 = vmatmul.mubr.f32.gmra.mrb[0].mxu0 %v3309
      %v3434 = vpop.f32.mrb[0].mxu0
      %v3435 = vadd.f32 %v3331, %v3434
      %v3436 = vpop.f32.mrb[0].mxu0
      %3437 = vdwg.mxu0
      %v3438 = vadd.f32 %v2988, %v3400
      %v3439 = vadd.f32 %v2989, %v3405
      %v3440 = vadd.f32 %v2990, %v3410
      %v3441 = vadd.f32 %v2991, %v3415
      %v3442 = vadd.f32 %v2992, %v3420
      %v3443 = vadd.f32 %v2993, %v3425
      %v3444 = vadd.f32 %v2994, %v3430
      %v3445 = vadd.f32 %v2995, %v3435
      %3446 = vst.msk [vmem:[%s467] sm:$0xff] %vm476, %v3438
      %3447 = vst.msk [vmem:[%s467 + $0x8] sm:$0xff] %vm476, %v3439
      %3448 = vst.msk [vmem:[%s467 + $0x10] sm:$0xff] %vm476, %v3440
      %3449 = vst.msk [vmem:[%s467 + $0x18] sm:$0xff] %vm476, %v3441
      %3450 = vst.msk [vmem:[%s467 + $0x20] sm:$0xff] %vm476, %v3442
      %3451 = vst.msk [vmem:[%s467 + $0x28] sm:$0xff] %vm476, %v3443
      %3452 = vst.msk [vmem:[%s467 + $0x30] sm:$0xff] %vm476, %v3444
      %3453 = vst.msk [vmem:[%s467 + $0x38] sm:$0xff] %vm476, %v3445
      %p3454 = scmp.lt.s32.totalorder %s25, 1
      %s3455 = scalar_select %p3454, %s25, 1
      %s3456 = smul.addr %s3455, 8
      %s3457 = smul.addr %s3456, 8
      %s3458 = scalar_lea.vmem %s14, %s3457
      // Predicated region
      $region77: #{_lambda_.1} parent=75 // pred_check
        %p3459 = pneg %p342
      $region78: #{_lambda_.1} parent=75 // pred_check_branch
        %3461 = sbr.rel (%p3459) target = $region80
      $region79: #{_lambda_.1} parent=75 // pred_region
        _
      $region80: #{_lambda_.1} parent=75 // pred_fallthru
        _
    $region76: #{_lambda_.1} parent=5 // pred_fallthru
      _
    %p3462 = scmp.le.s32.totalorder 2, %s20
    // Predicated region
    $region81: #{_lambda_.1} parent=5 // pred_check
      %p3463 = pneg %p3462
    $region82: #{_lambda_.1} parent=5 // pred_check_branch
      %3465 = sbr.rel (%p3463) target = $region84
    $region83: #{_lambda_.1} parent=5 // pred_region
      %s3466 = ssub.s32 %s20, 2
      // Predicated region
      $region85: #{_lambda_.1} parent=83 // pred_check
        %p3467 = pneg %p348
      $region86: #{_lambda_.1} parent=83 // pred_check_branch
        %3469 = sbr.rel (%p3467) target = $region88
      $region87: #{_lambda_.1} parent=83 // pred_region
        %p3470 = scmp.lt.s32.totalorder %s26, 1
        %s3471 = scalar_select %p3470, %s26, 1
        %s3472 = smul.addr %s3471, 8
        %s3473 = smul.addr %s3472, 8
        %s3474 = scalar_lea.vmem %s14, %s3473
      $region88: #{_lambda_.1} parent=83 // pred_fallthru
        _
    $region84: #{_lambda_.1} parent=5 // pred_fallthru
      _
  $region6: #{_lambda_.1} parent=0 // loop_footer
    %s24 = sadd.s32 1, %s20
  $region7: #{_lambda_.1} parent=0 // loop_footer_branch
    %19 = sbr.rel target = $region3
  $region8: #{_lambda_.1} parent=0 // loop_exit
    _

</llo_original>
